<compile_context>
chip_gen: v7x
topology: tpu7x:2x2x1
jax: 0.10.0
libtpu: 0.0.40
codegen_flags: <defaults>
</compile_context>

<pallas_src>
import functools

import jax
import jax.numpy as jnp
from jax import lax
from jax.experimental import pallas as pl
from jax.experimental.pallas import tpu as pltpu

NUM_LEVELS = 3      # stands in for cfg.NUM_LEVELS
BN_EPS = 1e-3       # BatchNorm2d(eps=0.001)
LANES = 128         # TPU lane width
LPAD = 8            # left halo width in the canvas (sublane-aligned stores)


def _round_up(x, m):
    return (x + m - 1) // m * m


# ---------------------------------------------------------------------------
# Fused per-level kernel: all repeats + head for one image, VMEM resident.
# ---------------------------------------------------------------------------
def _fused_level_kernel(x_ref, dw_ref, pw_ref, shift_ref,
                        hdw_ref, hpw_ref, hbias_ref, o_ref,
                        buf0_ref, buf1_ref, *, H, W, n_repeats):
    """
    x_ref:     (1, H, W, Cp)   channel-padded input, original dtype
    dw_ref:    (Rs, 3, 3, Cp)  depthwise weights (f32), one per repeat
    pw_ref:    (Rs, Cp, Cp)    pointwise weights, BN scale folded in (bf16)
    shift_ref: (Rs, 1, Cp)     folded BN shift (f32)
    hdw_ref:   (3, 3, Cp)      head depthwise weights (f32)
    hpw_ref:   (Cp, Op)        head pointwise weights (bf16)
    hbias_ref: (1, Op)         head bias (f32)
    o_ref:     (1, H, W, Op)   output, x.dtype
    buf{0,1}:  (H+2, CW, Cp)   f32 ping-pong canvases with zero halos
    """
    f32 = jnp.float32
    bf16 = jnp.bfloat16
    L = n_repeats + 1
    Wp8 = _round_up(W, 8)
    Cp = buf0_ref.shape[-1]
    bufs = (buf0_ref, buf1_ref)

    # Zero the canvases once: every conv relies on zero halos (1 row / 1 col) and
    # zero W->Wp8 alignment columns; interior writes never touch the halo region.
    buf0_ref[...] = jnp.zeros_like(buf0_ref)
    if L > 1:
        buf1_ref[...] = jnp.zeros_like(buf1_ref)

    # Load the image into canvas 0's interior (single cast to f32 in-kernel).
    buf0_ref[1:H + 1, LPAD:LPAD + W, :] = x_ref[0].astype(f32)

    # Tiny precomputed mask for the W -> Wp8 alignment columns (static; usually
    # not needed since real widths are multiples of 8).
    if Wp8 > W:
        col = lax.broadcasted_iota(jnp.int32, (Wp8, Cp), 0)
        wmask = (col < W).astype(f32)                  # (Wp8, Cp)
    else:
        wmask = None

    for l in range(L):                                 # statically unrolled chain
        src = bufs[l % 2]
        dst = bufs[(l + 1) % 2]
        if l < n_repeats:
            dw, pw, shift, swish = dw_ref[l], pw_ref[l], shift_ref[l], True
        else:                                          # shared head conv (+bias)
            dw, pw, shift, swish = hdw_ref[...], hpw_ref[...], hbias_ref[...], False

        # Depthwise 3x3 "valid" on the zero-padded canvas.  The three kw-shifted
        # column views are hoisted (only these need sublane relayout); the kh
        # shifts are slices of the untiled leading axis (free).
        cols = [src[:, LPAD - 1 + kw:LPAD - 1 + kw + Wp8, :] for kw in range(3)]
        acc = jnp.zeros((H, Wp8, Cp), f32)
        for kh in range(3):
            for kw in range(3):
                acc = acc + cols[kw][kh:kh + H, :, :] * dw[kh, kw, :]

        # Pointwise 1x1 == channel matmul on the MXU: bf16 inputs, f32 accumulate.
        # Wp8 % 8 == 0 keeps the 3D <-> 2D reshapes free views.
        y = jnp.dot(acc.reshape(H * Wp8, Cp).astype(bf16), pw,
                    preferred_element_type=f32)
        y = y + shift                                  # folded BN shift / head bias
        if swish:
            y = y * jax.nn.sigmoid(y)                  # Swish

        y3 = y.reshape(H, Wp8, y.shape[-1])
        if l < n_repeats:
            if wmask is not None:
                y3 = y3 * wmask                        # keep padding columns zero
            # Sublane-aligned, unmasked interior store into the other canvas.
            dst[1:H + 1, LPAD:LPAD + Wp8, :] = y3
        else:
            o_ref[...] = y3[:, :W, :].reshape(1, H, W, y3.shape[-1]).astype(o_ref.dtype)


def _fused_level(xp, dw_stack, pw_stack, shift_stack, hdw, hpw, hbias,
                 *, H, W, n_repeats):
    """xp: (N, H, W, Cp) -> (N, H, W, Op); one pallas_call, grid over batch."""
    N, Hq, Wq, Cp = xp.shape
    Rs = dw_stack.shape[0]
    Op = hpw.shape[1]
    L = n_repeats + 1
    Wp8 = _round_up(W, 8)
    CW = LPAD + Wp8 + 8                                 # canvas width (8-aligned)
    Hc = H + 2

    kernel = functools.partial(_fused_level_kernel, H=H, W=W, n_repeats=n_repeats)

    flops = N * (L * 2 * 9 * H * Wp8 * Cp
                 + n_repeats * 2 * H * Wp8 * Cp * Cp
                 + 2 * H * Wp8 * Cp * Op)
    transcendentals = N * n_repeats * H * Wp8 * Cp
    bytes_accessed = (xp.size * xp.dtype.itemsize
                      + dw_stack.size * 4 + pw_stack.size * 2
                      + shift_stack.size * 4 + hdw.size * 4 + hpw.size * 2
                      + hbias.size * 4
                      + N * H * W * Op * xp.dtype.itemsize)

    return pl.pallas_call(
        kernel,
        out_shape=jax.ShapeDtypeStruct((N, H, W, Op), xp.dtype),
        grid=(N,),
        in_specs=[
            pl.BlockSpec((1, H, W, Cp), lambda n: (n, 0, 0, 0)),   # x
            pl.BlockSpec((Rs, 3, 3, Cp), lambda n: (0, 0, 0, 0)),  # dw stack
            pl.BlockSpec((Rs, Cp, Cp), lambda n: (0, 0, 0)),       # pw stack (bf16)
            pl.BlockSpec((Rs, 1, Cp), lambda n: (0, 0, 0)),        # shift stack
            pl.BlockSpec((3, 3, Cp), lambda n: (0, 0, 0)),         # head dw
            pl.BlockSpec((Cp, Op), lambda n: (0, 0)),              # head pw (bf16)
            pl.BlockSpec((1, Op), lambda n: (0, 0)),               # head bias
        ],
        out_specs=pl.BlockSpec((1, H, W, Op), lambda n: (n, 0, 0, 0)),
        scratch_shapes=[pltpu.VMEM((Hc, CW, Cp), jnp.float32),
                        pltpu.VMEM((Hc, CW, Cp), jnp.float32)],
        compiler_params=pltpu.CompilerParams(
            dimension_semantics=("parallel",),
            vmem_limit_bytes=48 * 1024 * 1024),
        cost_estimate=pl.CostEstimate(
            flops=flops, transcendentals=transcendentals,
            bytes_accessed=bytes_accessed),
    )(xp, dw_stack, pw_stack, shift_stack, hdw, hpw, hbias)


# ---------------------------------------------------------------------------
# Pure-JAX reference (for correctness checking).
# ---------------------------------------------------------------------------
def _dws_ref(x, dw, pw, scale, shift, swish):
    N, H, W, C = x.shape
    xp = jnp.pad(x.astype(jnp.float32), ((0, 0), (1, 1), (1, 1), (0, 0)))
    acc = jnp.zeros((N, H, W, C), jnp.float32)
    for kh in range(3):
        for kw in range(3):
            acc = acc + xp[:, kh:kh + H, kw:kw + W, :] * dw[kh, kw, :]
    y = jnp.einsum('nhwc,cd->nhwd', acc, pw.astype(jnp.float32))
    if scale is not None:
        y = y * scale
    y = y + shift
    if swish:
        y = y * jax.nn.sigmoid(y)
    return y.astype(x.dtype)


def headnet_forward_ref(inputs, params):
    outs = list(inputs)
    for conv, bns in zip(params['convs'], params['bns']):
        for i, bn in enumerate(bns):
            scale = bn['gamma'] / jnp.sqrt(bn['var'] + BN_EPS)
            shift = bn['beta'] - bn['mean'] * scale
            outs[i] = _dws_ref(outs[i], conv['dw'], conv['pw'], scale, shift, True)
    head = params['head']
    for i in range(len(outs)):
        outs[i] = _dws_ref(outs[i], head['dw'], head['pw'], None, head['bias'], False)
    return outs


# ---------------------------------------------------------------------------
# HeadNet.forward
# ---------------------------------------------------------------------------
def headnet_forward(inputs, params, use_kernel=True):
    if not use_kernel:
        return headnet_forward_ref(inputs, params)

    R = len(params['convs'])
    C = params['head']['dw'].shape[-1]        # n_features
    Oc = params['head']['pw'].shape[-1]       # out_channels
    Cp = _round_up(C, LANES)
    Op = _round_up(Oc, LANES)
    Rs = max(R, 1)
    f32 = jnp.float32
    bf16 = jnp.bfloat16

    def cpad(a, axis, tgt):
        pads = [(0, 0)] * a.ndim
        pads[axis] = (0, tgt - a.shape[axis])
        return jnp.pad(a, pads)

    # Pad / stack weights once per forward (tiny wrapper-side ops).
    if R > 0:
        dw_stack = jnp.stack([cpad(c['dw'].astype(f32), 2, Cp)
                              for c in params['convs']])              # (R, 3, 3, Cp)
        pw_raw = jnp.stack([cpad(cpad(c['pw'].astype(f32), 0, Cp), 1, Cp)
                            for c in params['convs']])                # (R, Cp, Cp) f32
    else:
        dw_stack = jnp.zeros((Rs, 3, 3, Cp), f32)
        pw_raw = jnp.zeros((Rs, Cp, Cp), f32)

    head = params['head']
    hdw = cpad(head['dw'].astype(f32), 2, Cp)                         # (3, 3, Cp)
    hpw = cpad(cpad(head['pw'].astype(f32), 0, Cp), 1, Op).astype(bf16)  # (Cp, Op)
    hbias = cpad(head['bias'].astype(f32), 0, Op).reshape(1, Op)      # (1, Op)

    outs = []
    for i, x in enumerate(inputs):
        N, H, W, _ = x.shape
        # BatchNorm2d (eval mode) folded per (repeat, level): scale goes into the
        # pointwise weights (then bf16), shift stays additive in f32.
        if R > 0:
            scales, shifts = [], []
            for r in range(R):
                bn = params['bns'][r][i]
                s = bn['gamma'] / jnp.sqrt(bn['var'] + BN_EPS)
                b = bn['beta'] - bn['mean'] * s
                scales.append(cpad(s.astype(f32), 0, Cp))
                shifts.append(cpad(b.astype(f32), 0, Cp))
            pw_stack = (pw_raw * jnp.stack(scales)[:, None, :]).astype(bf16)
            shift_stack = jnp.stack(shifts)[:, None, :]               # (R, 1, Cp)
        else:
            pw_stack = pw_raw.astype(bf16)
            shift_stack = jnp.zeros((Rs, 1, Cp), f32)

        # Only layout work on the activations: channel pad to lane width.
        # No dtype cast, no spatial halo pad (the kernel builds halos in VMEM).
        xp = cpad(x, 3, Cp)                                           # (N, H, W, Cp)

        y = _fused_level(xp, dw_stack, pw_stack, shift_stack, hdw, hpw, hbias,
                         H=H, W=W, n_repeats=R)
        outs.append(y[..., :Oc])                                      # already x.dtype
    return outs


# ---------------------------------------------------------------------------
# Deterministic synthetic parameters matching HeadNet.__init__ shapes.
# DWSConv = depthwise 3x3 (no bias) + pointwise 1x1 (bias only on head).
# ---------------------------------------------------------------------------
def init_params(key, n_features, out_channels, n_repeats):
    params = {'convs': [], 'bns': [], 'head': None}
    for _ in range(n_repeats):
        key, k1, k2 = jax.random.split(key, 3)
        params['convs'].append({
            'dw': 0.1 * jax.random.normal(k1, (3, 3, n_features), jnp.float32),
            'pw': 0.1 * jax.random.normal(k2, (n_features, n_features), jnp.float32),
        })
        bns = []
        for _ in range(NUM_LEVELS):
            key, k1, k2, k3, k4 = jax.random.split(key, 5)
            bns.append({
                'gamma': 1.0 + 0.1 * jax.random.normal(k1, (n_features,), jnp.float32),
                'beta': 0.1 * jax.random.normal(k2, (n_features,), jnp.float32),
                'mean': 0.1 * jax.random.normal(k3, (n_features,), jnp.float32),
                'var': jnp.abs(jax.random.normal(k4, (n_features,), jnp.float32)) + 0.5,
            })
        params['bns'].append(bns)
    key, k1, k2, k3 = jax.random.split(key, 4)
    params['head'] = {
        'dw': 0.1 * jax.random.normal(k1, (3, 3, n_features), jnp.float32),
        'pw': 0.1 * jax.random.normal(k2, (n_features, out_channels), jnp.float32),
        'bias': 0.1 * jax.random.normal(k3, (out_channels,), jnp.float32),
    }
    return params


if __name__ == "__main__":
    key = jax.random.PRNGKey(0)
    N = 2               # batch
    n_features = 8
    out_channels = 12   # e.g. 3 anchors * 4 box coords
    n_repeats = 2
    spatial = [16, 8, 4]  # one size per pyramid level (NUM_LEVELS entries)

    key, *ikeys = jax.random.split(key, 1 + NUM_LEVELS)
    inputs = [jax.random.normal(ik, (N, s, s, n_features), jnp.float32)
              for ik, s in zip(ikeys, spatial)]
    params = init_params(key, n_features, out_channels, n_repeats)

    outs = headnet_forward(inputs, params, use_kernel=True)
    outs = jax.block_until_ready(outs)

    refs = headnet_forward(inputs, params, use_kernel=False)
    for o, r in zip(outs, refs):
        assert o.shape == r.shape, (o.shape, r.shape)
        # bf16 MXU inputs with f32 accumulation -> slightly looser tolerance.
        assert jnp.allclose(o, r, atol=1e-2, rtol=1e-2), \
            float(jnp.max(jnp.abs(o - r)))

    print("KERNEL_OK")
</pallas_src>

<mosaic_0001>
module attributes {stable_mosaic.version = 11 : i64} {
  func.func @_fused_level_kernel(%arg0: i32, %arg1: memref<1x16x16x128xf32, #tpu.memory_space<vmem>>, %arg2: memref<2x3x3x128xf32, #tpu.memory_space<vmem>>, %arg3: memref<2x128x128xbf16, #tpu.memory_space<vmem>>, %arg4: memref<2x1x128xf32, #tpu.memory_space<vmem>>, %arg5: memref<3x3x128xf32, #tpu.memory_space<vmem>>, %arg6: memref<128x128xbf16, #tpu.memory_space<vmem>>, %arg7: memref<1x128xf32, #tpu.memory_space<vmem>>, %arg8: memref<1x16x16x128xf32, #tpu.memory_space<vmem>>, %arg9: memref<18x32x128xf32, #tpu.memory_space<vmem>>, %arg10: memref<18x32x128xf32, #tpu.memory_space<vmem>>) attributes {dimension_semantics = [#tpu.dimension_semantics<parallel>], iteration_bounds = array<i64: 2>, scalar_prefetch = 0 : i64, scratch_operands = 2 : i64, tpu.core_type = #tpu.core_type<tc>, window_params = [{transform_indices = @transform_0, window_bounds = array<i64: 1, 16, 16, 128>}, {pipeline_mode = #tpu.pipeline_mode<synchronous>, transform_indices = @transform_1, window_bounds = array<i64: 2, 3, 3, 128>}, {pipeline_mode = #tpu.pipeline_mode<synchronous>, transform_indices = @transform_2, window_bounds = array<i64: 2, 128, 128>}, {pipeline_mode = #tpu.pipeline_mode<synchronous>, transform_indices = @transform_3, window_bounds = array<i64: 2, 1, 128>}, {pipeline_mode = #tpu.pipeline_mode<synchronous>, transform_indices = @transform_4, window_bounds = array<i64: 3, 3, 128>}, {pipeline_mode = #tpu.pipeline_mode<synchronous>, transform_indices = @transform_5, window_bounds = array<i64: 128, 128>}, {pipeline_mode = #tpu.pipeline_mode<synchronous>, transform_indices = @transform_6, window_bounds = array<i64: 1, 128>}, {transform_indices = @transform_7, window_bounds = array<i64: 1, 16, 16, 128>}]} {
    %cst = arith.constant 0.000000e+00 : f32
    %0 = vector.broadcast %cst : f32 to vector<18x32x128xf32>
    %c0 = arith.constant 0 : index
    %c0_0 = arith.constant 0 : index
    %c0_1 = arith.constant 0 : index
    %1 = vector.load %arg9[%c0, %c0_0, %c0_1] : memref<18x32x128xf32, #tpu.memory_space<vmem>>, vector<18x32x128xf32>
    tpu.vector_store %arg9[%c0, %c0_0, %c0_1], %0 {strides = array<i32>} : memref<18x32x128xf32, #tpu.memory_space<vmem>>, vector<18x32x128xf32>,
    %cst_2 = arith.constant 0.000000e+00 : f32
    %2 = vector.broadcast %cst_2 : f32 to vector<18x32x128xf32>
    %c0_3 = arith.constant 0 : index
    %c0_4 = arith.constant 0 : index
    %c0_5 = arith.constant 0 : index
    %3 = vector.load %arg10[%c0_3, %c0_4, %c0_5] : memref<18x32x128xf32, #tpu.memory_space<vmem>>, vector<18x32x128xf32>
    tpu.vector_store %arg10[%c0_3, %c0_4, %c0_5], %2 {strides = array<i32>} : memref<18x32x128xf32, #tpu.memory_space<vmem>>, vector<18x32x128xf32>,
    %c0_6 = arith.constant 0 : index
    %c0_7 = arith.constant 0 : index
    %c0_8 = arith.constant 0 : index
    %c0_9 = arith.constant 0 : index
    %4 = vector.load %arg1[%c0_6, %c0_7, %c0_8, %c0_9] : memref<1x16x16x128xf32, #tpu.memory_space<vmem>>, vector<1x16x16x128xf32>
    %5 = vector.shape_cast %4 : vector<1x16x16x128xf32> to vector<16x16x128xf32>
    %c1 = arith.constant 1 : index
    %c8 = arith.constant 8 : index
    %c0_10 = arith.constant 0 : index
    %6 = vector.load %arg9[%c1, %c8, %c0_10] : memref<18x32x128xf32, #tpu.memory_space<vmem>>, vector<16x16x128xf32>
    tpu.vector_store %arg9[%c1, %c8, %c0_10], %5 {strides = array<i32>} : memref<18x32x128xf32, #tpu.memory_space<vmem>>, vector<16x16x128xf32>,
    %c0_11 = arith.constant 0 : index
    %c0_12 = arith.constant 0 : index
    %c0_13 = arith.constant 0 : index
    %c0_14 = arith.constant 0 : index
    %7 = vector.load %arg2[%c0_11, %c0_12, %c0_13, %c0_14] : memref<2x3x3x128xf32, #tpu.memory_space<vmem>>, vector<1x3x3x128xf32>
    %8 = vector.shape_cast %7 : vector<1x3x3x128xf32> to vector<3x3x128xf32>
    %c0_15 = arith.constant 0 : index
    %c0_16 = arith.constant 0 : index
    %c0_17 = arith.constant 0 : index
    %9 = vector.load %arg3[%c0_15, %c0_16, %c0_17] : memref<2x128x128xbf16, #tpu.memory_space<vmem>>, vector<1x128x128xbf16>
    %10 = vector.shape_cast %9 : vector<1x128x128xbf16> to vector<128x128xbf16>
    %c0_18 = arith.constant 0 : index
    %c0_19 = arith.constant 0 : index
    %c0_20 = arith.constant 0 : index
    %11 = vector.load %arg4[%c0_18, %c0_19, %c0_20] : memref<2x1x128xf32, #tpu.memory_space<vmem>>, vector<1x1x128xf32>
    %12 = vector.shape_cast %11 : vector<1x1x128xf32> to vector<1x128xf32>
    %c0_21 = arith.constant 0 : index
    %c7 = arith.constant 7 : index
    %c0_22 = arith.constant 0 : index
    %13 = vector.load %arg9[%c0_21, %c7, %c0_22] : memref<18x32x128xf32, #tpu.memory_space<vmem>>, vector<18x16x128xf32>
    %c0_23 = arith.constant 0 : index
    %c8_24 = arith.constant 8 : index
    %c0_25 = arith.constant 0 : index
    %14 = vector.load %arg9[%c0_23, %c8_24, %c0_25] : memref<18x32x128xf32, #tpu.memory_space<vmem>>, vector<18x16x128xf32>
    %c0_26 = arith.constant 0 : index
    %c9 = arith.constant 9 : index
    %c0_27 = arith.constant 0 : index
    %15 = vector.load %arg9[%c0_26, %c9, %c0_27] : memref<18x32x128xf32, #tpu.memory_space<vmem>>, vector<18x16x128xf32>
    %cst_28 = arith.constant 0.000000e+00 : f32
    %16 = vector.broadcast %cst_28 : f32 to vector<16x16x128xf32>
    %17 = vector.extract_strided_slice %13 {offsets = [0, 0, 0], sizes = [16, 16, 128], strides = [1, 1, 1]} : vector<18x16x128xf32> to vector<16x16x128xf32>
    %18 = vector.extract_strided_slice %8 {offsets = [0, 0, 0], sizes = [1, 1, 128], strides = [1, 1, 1]} : vector<3x3x128xf32> to vector<1x1x128xf32>
    %19 = vector.shape_cast %18 : vector<1x1x128xf32> to vector<128xf32>
    %20 = vector.shape_cast %19 : vector<128xf32> to vector<1x1x128xf32>
    %21 = vector.broadcast %20 : vector<1x1x128xf32> to vector<16x16x128xf32>
    %22 = arith.mulf %17, %21 : vector<16x16x128xf32>
    %23 = arith.addf %16, %22 : vector<16x16x128xf32>
    %24 = vector.extract_strided_slice %14 {offsets = [0, 0, 0], sizes = [16, 16, 128], strides = [1, 1, 1]} : vector<18x16x128xf32> to vector<16x16x128xf32>
    %25 = vector.extract_strided_slice %8 {offsets = [0, 1, 0], sizes = [1, 1, 128], strides = [1, 1, 1]} : vector<3x3x128xf32> to vector<1x1x128xf32>
    %26 = vector.shape_cast %25 : vector<1x1x128xf32> to vector<128xf32>
    %27 = vector.shape_cast %26 : vector<128xf32> to vector<1x1x128xf32>
    %28 = vector.broadcast %27 : vector<1x1x128xf32> to vector<16x16x128xf32>
    %29 = arith.mulf %24, %28 : vector<16x16x128xf32>
    %30 = arith.addf %23, %29 : vector<16x16x128xf32>
    %31 = vector.extract_strided_slice %15 {offsets = [0, 0, 0], sizes = [16, 16, 128], strides = [1, 1, 1]} : vector<18x16x128xf32> to vector<16x16x128xf32>
    %32 = vector.extract_strided_slice %8 {offsets = [0, 2, 0], sizes = [1, 1, 128], strides = [1, 1, 1]} : vector<3x3x128xf32> to vector<1x1x128xf32>
    %33 = vector.shape_cast %32 : vector<1x1x128xf32> to vector<128xf32>
    %34 = vector.shape_cast %33 : vector<128xf32> to vector<1x1x128xf32>
    %35 = vector.broadcast %34 : vector<1x1x128xf32> to vector<16x16x128xf32>
    %36 = arith.mulf %31, %35 : vector<16x16x128xf32>
    %37 = arith.addf %30, %36 : vector<16x16x128xf32>
    %38 = vector.extract_strided_slice %13 {offsets = [1, 0, 0], sizes = [16, 16, 128], strides = [1, 1, 1]} : vector<18x16x128xf32> to vector<16x16x128xf32>
    %39 = vector.extract_strided_slice %8 {offsets = [1, 0, 0], sizes = [1, 1, 128], strides = [1, 1, 1]} : vector<3x3x128xf32> to vector<1x1x128xf32>
    %40 = vector.shape_cast %39 : vector<1x1x128xf32> to vector<128xf32>
    %41 = vector.shape_cast %40 : vector<128xf32> to vector<1x1x128xf32>
    %42 = vector.broadcast %41 : vector<1x1x128xf32> to vector<16x16x128xf32>
    %43 = arith.mulf %38, %42 : vector<16x16x128xf32>
    %44 = arith.addf %37, %43 : vector<16x16x128xf32>
    %45 = vector.extract_strided_slice %14 {offsets = [1, 0, 0], sizes = [16, 16, 128], strides = [1, 1, 1]} : vector<18x16x128xf32> to vector<16x16x128xf32>
    %46 = vector.extract_strided_slice %8 {offsets = [1, 1, 0], sizes = [1, 1, 128], strides = [1, 1, 1]} : vector<3x3x128xf32> to vector<1x1x128xf32>
    %47 = vector.shape_cast %46 : vector<1x1x128xf32> to vector<128xf32>
    %48 = vector.shape_cast %47 : vector<128xf32> to vector<1x1x128xf32>
    %49 = vector.broadcast %48 : vector<1x1x128xf32> to vector<16x16x128xf32>
    %50 = arith.mulf %45, %49 : vector<16x16x128xf32>
    %51 = arith.addf %44, %50 : vector<16x16x128xf32>
    %52 = vector.extract_strided_slice %15 {offsets = [1, 0, 0], sizes = [16, 16, 128], strides = [1, 1, 1]} : vector<18x16x128xf32> to vector<16x16x128xf32>
    %53 = vector.extract_strided_slice %8 {offsets = [1, 2, 0], sizes = [1, 1, 128], strides = [1, 1, 1]} : vector<3x3x128xf32> to vector<1x1x128xf32>
    %54 = vector.shape_cast %53 : vector<1x1x128xf32> to vector<128xf32>
    %55 = vector.shape_cast %54 : vector<128xf32> to vector<1x1x128xf32>
    %56 = vector.broadcast %55 : vector<1x1x128xf32> to vector<16x16x128xf32>
    %57 = arith.mulf %52, %56 : vector<16x16x128xf32>
    %58 = arith.addf %51, %57 : vector<16x16x128xf32>
    %59 = vector.extract_strided_slice %13 {offsets = [2, 0, 0], sizes = [16, 16, 128], strides = [1, 1, 1]} : vector<18x16x128xf32> to vector<16x16x128xf32>
    %60 = vector.extract_strided_slice %8 {offsets = [2, 0, 0], sizes = [1, 1, 128], strides = [1, 1, 1]} : vector<3x3x128xf32> to vector<1x1x128xf32>
    %61 = vector.shape_cast %60 : vector<1x1x128xf32> to vector<128xf32>
    %62 = vector.shape_cast %61 : vector<128xf32> to vector<1x1x128xf32>
    %63 = vector.broadcast %62 : vector<1x1x128xf32> to vector<16x16x128xf32>
    %64 = arith.mulf %59, %63 : vector<16x16x128xf32>
    %65 = arith.addf %58, %64 : vector<16x16x128xf32>
    %66 = vector.extract_strided_slice %14 {offsets = [2, 0, 0], sizes = [16, 16, 128], strides = [1, 1, 1]} : vector<18x16x128xf32> to vector<16x16x128xf32>
    %67 = vector.extract_strided_slice %8 {offsets = [2, 1, 0], sizes = [1, 1, 128], strides = [1, 1, 1]} : vector<3x3x128xf32> to vector<1x1x128xf32>
    %68 = vector.shape_cast %67 : vector<1x1x128xf32> to vector<128xf32>
    %69 = vector.shape_cast %68 : vector<128xf32> to vector<1x1x128xf32>
    %70 = vector.broadcast %69 : vector<1x1x128xf32> to vector<16x16x128xf32>
    %71 = arith.mulf %66, %70 : vector<16x16x128xf32>
    %72 = arith.addf %65, %71 : vector<16x16x128xf32>
    %73 = vector.extract_strided_slice %15 {offsets = [2, 0, 0], sizes = [16, 16, 128], strides = [1, 1, 1]} : vector<18x16x128xf32> to vector<16x16x128xf32>
    %74 = vector.extract_strided_slice %8 {offsets = [2, 2, 0], sizes = [1, 1, 128], strides = [1, 1, 1]} : vector<3x3x128xf32> to vector<1x1x128xf32>
    %75 = vector.shape_cast %74 : vector<1x1x128xf32> to vector<128xf32>
    %76 = vector.shape_cast %75 : vector<128xf32> to vector<1x1x128xf32>
    %77 = vector.broadcast %76 : vector<1x1x128xf32> to vector<16x16x128xf32>
    %78 = arith.mulf %73, %77 : vector<16x16x128xf32>
    %79 = arith.addf %72, %78 : vector<16x16x128xf32>
    %80 = vector.shape_cast %79 : vector<16x16x128xf32> to vector<256x128xf32>
    %81 = arith.truncf %80 : vector<256x128xf32> to vector<256x128xbf16>
    %cst_29 = arith.constant dense<0.000000e+00> : vector<256x128xf32>
    %82 = tpu.matmul %81, %10, %cst_29 {dimension_numbers = #tpu.dot_dimension_numbers<[1], [0], [0], [1], [0, 0, 1, 1], [], []>} : vector<256x128xbf16>, vector<128x128xbf16>, vector<256x128xf32> -> vector<256x128xf32>
    %83 = vector.broadcast %12 : vector<1x128xf32> to vector<256x128xf32>
    %84 = arith.addf %82, %83 : vector<256x128xf32>
    %85 = arith.negf %84 : vector<256x128xf32>
    %86 = math.exp %85 : vector<256x128xf32>
    %cst_30 = arith.constant 1.000000e+00 : f32
    %87 = vector.broadcast %cst_30 : f32 to vector<256x128xf32>
    %88 = arith.addf %87, %86 : vector<256x128xf32>
    %89 = arith.divf %87, %88 : vector<256x128xf32>
    %90 = arith.mulf %84, %89 : vector<256x128xf32>
    %91 = vector.shape_cast %90 : vector<256x128xf32> to vector<16x16x128xf32>
    %c1_31 = arith.constant 1 : index
    %c8_32 = arith.constant 8 : index
    %c0_33 = arith.constant 0 : index
    %92 = vector.load %arg10[%c1_31, %c8_32, %c0_33] : memref<18x32x128xf32, #tpu.memory_space<vmem>>, vector<16x16x128xf32>
    tpu.vector_store %arg10[%c1_31, %c8_32, %c0_33], %91 {strides = array<i32>} : memref<18x32x128xf32, #tpu.memory_space<vmem>>, vector<16x16x128xf32>,
    %c1_34 = arith.constant 1 : index
    %c0_35 = arith.constant 0 : index
    %c0_36 = arith.constant 0 : index
    %c0_37 = arith.constant 0 : index
    %93 = vector.load %arg2[%c1_34, %c0_35, %c0_36, %c0_37] : memref<2x3x3x128xf32, #tpu.memory_space<vmem>>, vector<1x3x3x128xf32>
    %94 = vector.shape_cast %93 : vector<1x3x3x128xf32> to vector<3x3x128xf32>
    %c1_38 = arith.constant 1 : index
    %c0_39 = arith.constant 0 : index
    %c0_40 = arith.constant 0 : index
    %95 = vector.load %arg3[%c1_38, %c0_39, %c0_40] : memref<2x128x128xbf16, #tpu.memory_space<vmem>>, vector<1x128x128xbf16>
    %96 = vector.shape_cast %95 : vector<1x128x128xbf16> to vector<128x128xbf16>
    %c1_41 = arith.constant 1 : index
    %c0_42 = arith.constant 0 : index
    %c0_43 = arith.constant 0 : index
    %97 = vector.load %arg4[%c1_41, %c0_42, %c0_43] : memref<2x1x128xf32, #tpu.memory_space<vmem>>, vector<1x1x128xf32>
    %98 = vector.shape_cast %97 : vector<1x1x128xf32> to vector<1x128xf32>
    %c0_44 = arith.constant 0 : index
    %c7_45 = arith.constant 7 : index
    %c0_46 = arith.constant 0 : index
    %99 = vector.load %arg10[%c0_44, %c7_45, %c0_46] : memref<18x32x128xf32, #tpu.memory_space<vmem>>, vector<18x16x128xf32>
    %c0_47 = arith.constant 0 : index
    %c8_48 = arith.constant 8 : index
    %c0_49 = arith.constant 0 : index
    %100 = vector.load %arg10[%c0_47, %c8_48, %c0_49] : memref<18x32x128xf32, #tpu.memory_space<vmem>>, vector<18x16x128xf32>
    %c0_50 = arith.constant 0 : index
    %c9_51 = arith.constant 9 : index
    %c0_52 = arith.constant 0 : index
    %101 = vector.load %arg10[%c0_50, %c9_51, %c0_52] : memref<18x32x128xf32, #tpu.memory_space<vmem>>, vector<18x16x128xf32>
    %cst_53 = arith.constant 0.000000e+00 : f32
    %102 = vector.broadcast %cst_53 : f32 to vector<16x16x128xf32>
    %103 = vector.extract_strided_slice %99 {offsets = [0, 0, 0], sizes = [16, 16, 128], strides = [1, 1, 1]} : vector<18x16x128xf32> to vector<16x16x128xf32>
    %104 = vector.extract_strided_slice %94 {offsets = [0, 0, 0], sizes = [1, 1, 128], strides = [1, 1, 1]} : vector<3x3x128xf32> to vector<1x1x128xf32>
    %105 = vector.shape_cast %104 : vector<1x1x128xf32> to vector<128xf32>
    %106 = vector.shape_cast %105 : vector<128xf32> to vector<1x1x128xf32>
    %107 = vector.broadcast %106 : vector<1x1x128xf32> to vector<16x16x128xf32>
    %108 = arith.mulf %103, %107 : vector<16x16x128xf32>
    %109 = arith.addf %102, %108 : vector<16x16x128xf32>
    %110 = vector.extract_strided_slice %100 {offsets = [0, 0, 0], sizes = [16, 16, 128], strides = [1, 1, 1]} : vector<18x16x128xf32> to vector<16x16x128xf32>
    %111 = vector.extract_strided_slice %94 {offsets = [0, 1, 0], sizes = [1, 1, 128], strides = [1, 1, 1]} : vector<3x3x128xf32> to vector<1x1x128xf32>
    %112 = vector.shape_cast %111 : vector<1x1x128xf32> to vector<128xf32>
    %113 = vector.shape_cast %112 : vector<128xf32> to vector<1x1x128xf32>
    %114 = vector.broadcast %113 : vector<1x1x128xf32> to vector<16x16x128xf32>
    %115 = arith.mulf %110, %114 : vector<16x16x128xf32>
    %116 = arith.addf %109, %115 : vector<16x16x128xf32>
    %117 = vector.extract_strided_slice %101 {offsets = [0, 0, 0], sizes = [16, 16, 128], strides = [1, 1, 1]} : vector<18x16x128xf32> to vector<16x16x128xf32>
    %118 = vector.extract_strided_slice %94 {offsets = [0, 2, 0], sizes = [1, 1, 128], strides = [1, 1, 1]} : vector<3x3x128xf32> to vector<1x1x128xf32>
    %119 = vector.shape_cast %118 : vector<1x1x128xf32> to vector<128xf32>
    %120 = vector.shape_cast %119 : vector<128xf32> to vector<1x1x128xf32>
    %121 = vector.broadcast %120 : vector<1x1x128xf32> to vector<16x16x128xf32>
    %122 = arith.mulf %117, %121 : vector<16x16x128xf32>
    %123 = arith.addf %116, %122 : vector<16x16x128xf32>
    %124 = vector.extract_strided_slice %99 {offsets = [1, 0, 0], sizes = [16, 16, 128], strides = [1, 1, 1]} : vector<18x16x128xf32> to vector<16x16x128xf32>
    %125 = vector.extract_strided_slice %94 {offsets = [1, 0, 0], sizes = [1, 1, 128], strides = [1, 1, 1]} : vector<3x3x128xf32> to vector<1x1x128xf32>
    %126 = vector.shape_cast %125 : vector<1x1x128xf32> to vector<128xf32>
    %127 = vector.shape_cast %126 : vector<128xf32> to vector<1x1x128xf32>
    %128 = vector.broadcast %127 : vector<1x1x128xf32> to vector<16x16x128xf32>
    %129 = arith.mulf %124, %128 : vector<16x16x128xf32>
    %130 = arith.addf %123, %129 : vector<16x16x128xf32>
    %131 = vector.extract_strided_slice %100 {offsets = [1, 0, 0], sizes = [16, 16, 128], strides = [1, 1, 1]} : vector<18x16x128xf32> to vector<16x16x128xf32>
    %132 = vector.extract_strided_slice %94 {offsets = [1, 1, 0], sizes = [1, 1, 128], strides = [1, 1, 1]} : vector<3x3x128xf32> to vector<1x1x128xf32>
    %133 = vector.shape_cast %132 : vector<1x1x128xf32> to vector<128xf32>
    %134 = vector.shape_cast %133 : vector<128xf32> to vector<1x1x128xf32>
    %135 = vector.broadcast %134 : vector<1x1x128xf32> to vector<16x16x128xf32>
    %136 = arith.mulf %131, %135 : vector<16x16x128xf32>
    %137 = arith.addf %130, %136 : vector<16x16x128xf32>
    %138 = vector.extract_strided_slice %101 {offsets = [1, 0, 0], sizes = [16, 16, 128], strides = [1, 1, 1]} : vector<18x16x128xf32> to vector<16x16x128xf32>
    %139 = vector.extract_strided_slice %94 {offsets = [1, 2, 0], sizes = [1, 1, 128], strides = [1, 1, 1]} : vector<3x3x128xf32> to vector<1x1x128xf32>
    %140 = vector.shape_cast %139 : vector<1x1x128xf32> to vector<128xf32>
    %141 = vector.shape_cast %140 : vector<128xf32> to vector<1x1x128xf32>
    %142 = vector.broadcast %141 : vector<1x1x128xf32> to vector<16x16x128xf32>
    %143 = arith.mulf %138, %142 : vector<16x16x128xf32>
    %144 = arith.addf %137, %143 : vector<16x16x128xf32>
    %145 = vector.extract_strided_slice %99 {offsets = [2, 0, 0], sizes = [16, 16, 128], strides = [1, 1, 1]} : vector<18x16x128xf32> to vector<16x16x128xf32>
    %146 = vector.extract_strided_slice %94 {offsets = [2, 0, 0], sizes = [1, 1, 128], strides = [1, 1, 1]} : vector<3x3x128xf32> to vector<1x1x128xf32>
    %147 = vector.shape_cast %146 : vector<1x1x128xf32> to vector<128xf32>
    %148 = vector.shape_cast %147 : vector<128xf32> to vector<1x1x128xf32>
    %149 = vector.broadcast %148 : vector<1x1x128xf32> to vector<16x16x128xf32>
    %150 = arith.mulf %145, %149 : vector<16x16x128xf32>
    %151 = arith.addf %144, %150 : vector<16x16x128xf32>
    %152 = vector.extract_strided_slice %100 {offsets = [2, 0, 0], sizes = [16, 16, 128], strides = [1, 1, 1]} : vector<18x16x128xf32> to vector<16x16x128xf32>
    %153 = vector.extract_strided_slice %94 {offsets = [2, 1, 0], sizes = [1, 1, 128], strides = [1, 1, 1]} : vector<3x3x128xf32> to vector<1x1x128xf32>
    %154 = vector.shape_cast %153 : vector<1x1x128xf32> to vector<128xf32>
    %155 = vector.shape_cast %154 : vector<128xf32> to vector<1x1x128xf32>
    %156 = vector.broadcast %155 : vector<1x1x128xf32> to vector<16x16x128xf32>
    %157 = arith.mulf %152, %156 : vector<16x16x128xf32>
    %158 = arith.addf %151, %157 : vector<16x16x128xf32>
    %159 = vector.extract_strided_slice %101 {offsets = [2, 0, 0], sizes = [16, 16, 128], strides = [1, 1, 1]} : vector<18x16x128xf32> to vector<16x16x128xf32>
    %160 = vector.extract_strided_slice %94 {offsets = [2, 2, 0], sizes = [1, 1, 128], strides = [1, 1, 1]} : vector<3x3x128xf32> to vector<1x1x128xf32>
    %161 = vector.shape_cast %160 : vector<1x1x128xf32> to vector<128xf32>
    %162 = vector.shape_cast %161 : vector<128xf32> to vector<1x1x128xf32>
    %163 = vector.broadcast %162 : vector<1x1x128xf32> to vector<16x16x128xf32>
    %164 = arith.mulf %159, %163 : vector<16x16x128xf32>
    %165 = arith.addf %158, %164 : vector<16x16x128xf32>
    %166 = vector.shape_cast %165 : vector<16x16x128xf32> to vector<256x128xf32>
    %167 = arith.truncf %166 : vector<256x128xf32> to vector<256x128xbf16>
    %cst_54 = arith.constant dense<0.000000e+00> : vector<256x128xf32>
    %168 = tpu.matmul %167, %96, %cst_54 {dimension_numbers = #tpu.dot_dimension_numbers<[1], [0], [0], [1], [0, 0, 1, 1], [], []>} : vector<256x128xbf16>, vector<128x128xbf16>, vector<256x128xf32> -> vector<256x128xf32>
    %169 = vector.broadcast %98 : vector<1x128xf32> to vector<256x128xf32>
    %170 = arith.addf %168, %169 : vector<256x128xf32>
    %171 = arith.negf %170 : vector<256x128xf32>
    %172 = math.exp %171 : vector<256x128xf32>
    %cst_55 = arith.constant 1.000000e+00 : f32
    %173 = vector.broadcast %cst_55 : f32 to vector<256x128xf32>
    %174 = arith.addf %173, %172 : vector<256x128xf32>
    %175 = arith.divf %173, %174 : vector<256x128xf32>
    %176 = arith.mulf %170, %175 : vector<256x128xf32>
    %177 = vector.shape_cast %176 : vector<256x128xf32> to vector<16x16x128xf32>
    %c1_56 = arith.constant 1 : index
    %c8_57 = arith.constant 8 : index
    %c0_58 = arith.constant 0 : index
    %178 = vector.load %arg9[%c1_56, %c8_57, %c0_58] : memref<18x32x128xf32, #tpu.memory_space<vmem>>, vector<16x16x128xf32>
    tpu.vector_store %arg9[%c1_56, %c8_57, %c0_58], %177 {strides = array<i32>} : memref<18x32x128xf32, #tpu.memory_space<vmem>>, vector<16x16x128xf32>,
    %c0_59 = arith.constant 0 : index
    %c0_60 = arith.constant 0 : index
    %c0_61 = arith.constant 0 : index
    %179 = vector.load %arg5[%c0_59, %c0_60, %c0_61] : memref<3x3x128xf32, #tpu.memory_space<vmem>>, vector<3x3x128xf32>
    %c0_62 = arith.constant 0 : index
    %c0_63 = arith.constant 0 : index
    %180 = vector.load %arg6[%c0_62, %c0_63] : memref<128x128xbf16, #tpu.memory_space<vmem>>, vector<128x128xbf16>
    %c0_64 = arith.constant 0 : index
    %c0_65 = arith.constant 0 : index
    %181 = vector.load %arg7[%c0_64, %c0_65] : memref<1x128xf32, #tpu.memory_space<vmem>>, vector<1x128xf32>
    %c0_66 = arith.constant 0 : index
    %c7_67 = arith.constant 7 : index
    %c0_68 = arith.constant 0 : index
    %182 = vector.load %arg9[%c0_66, %c7_67, %c0_68] : memref<18x32x128xf32, #tpu.memory_space<vmem>>, vector<18x16x128xf32>
    %c0_69 = arith.constant 0 : index
    %c8_70 = arith.constant 8 : index
    %c0_71 = arith.constant 0 : index
    %183 = vector.load %arg9[%c0_69, %c8_70, %c0_71] : memref<18x32x128xf32, #tpu.memory_space<vmem>>, vector<18x16x128xf32>
    %c0_72 = arith.constant 0 : index
    %c9_73 = arith.constant 9 : index
    %c0_74 = arith.constant 0 : index
    %184 = vector.load %arg9[%c0_72, %c9_73, %c0_74] : memref<18x32x128xf32, #tpu.memory_space<vmem>>, vector<18x16x128xf32>
    %cst_75 = arith.constant 0.000000e+00 : f32
    %185 = vector.broadcast %cst_75 : f32 to vector<16x16x128xf32>
    %186 = vector.extract_strided_slice %182 {offsets = [0, 0, 0], sizes = [16, 16, 128], strides = [1, 1, 1]} : vector<18x16x128xf32> to vector<16x16x128xf32>
    %187 = vector.extract_strided_slice %179 {offsets = [0, 0, 0], sizes = [1, 1, 128], strides = [1, 1, 1]} : vector<3x3x128xf32> to vector<1x1x128xf32>
    %188 = vector.shape_cast %187 : vector<1x1x128xf32> to vector<128xf32>
    %189 = vector.shape_cast %188 : vector<128xf32> to vector<1x1x128xf32>
    %190 = vector.broadcast %189 : vector<1x1x128xf32> to vector<16x16x128xf32>
    %191 = arith.mulf %186, %190 : vector<16x16x128xf32>
    %192 = arith.addf %185, %191 : vector<16x16x128xf32>
    %193 = vector.extract_strided_slice %183 {offsets = [0, 0, 0], sizes = [16, 16, 128], strides = [1, 1, 1]} : vector<18x16x128xf32> to vector<16x16x128xf32>
    %194 = vector.extract_strided_slice %179 {offsets = [0, 1, 0], sizes = [1, 1, 128], strides = [1, 1, 1]} : vector<3x3x128xf32> to vector<1x1x128xf32>
    %195 = vector.shape_cast %194 : vector<1x1x128xf32> to vector<128xf32>
    %196 = vector.shape_cast %195 : vector<128xf32> to vector<1x1x128xf32>
    %197 = vector.broadcast %196 : vector<1x1x128xf32> to vector<16x16x128xf32>
    %198 = arith.mulf %193, %197 : vector<16x16x128xf32>
    %199 = arith.addf %192, %198 : vector<16x16x128xf32>
    %200 = vector.extract_strided_slice %184 {offsets = [0, 0, 0], sizes = [16, 16, 128], strides = [1, 1, 1]} : vector<18x16x128xf32> to vector<16x16x128xf32>
    %201 = vector.extract_strided_slice %179 {offsets = [0, 2, 0], sizes = [1, 1, 128], strides = [1, 1, 1]} : vector<3x3x128xf32> to vector<1x1x128xf32>
    %202 = vector.shape_cast %201 : vector<1x1x128xf32> to vector<128xf32>
    %203 = vector.shape_cast %202 : vector<128xf32> to vector<1x1x128xf32>
    %204 = vector.broadcast %203 : vector<1x1x128xf32> to vector<16x16x128xf32>
    %205 = arith.mulf %200, %204 : vector<16x16x128xf32>
    %206 = arith.addf %199, %205 : vector<16x16x128xf32>
    %207 = vector.extract_strided_slice %182 {offsets = [1, 0, 0], sizes = [16, 16, 128], strides = [1, 1, 1]} : vector<18x16x128xf32> to vector<16x16x128xf32>
    %208 = vector.extract_strided_slice %179 {offsets = [1, 0, 0], sizes = [1, 1, 128], strides = [1, 1, 1]} : vector<3x3x128xf32> to vector<1x1x128xf32>
    %209 = vector.shape_cast %208 : vector<1x1x128xf32> to vector<128xf32>
    %210 = vector.shape_cast %209 : vector<128xf32> to vector<1x1x128xf32>
    %211 = vector.broadcast %210 : vector<1x1x128xf32> to vector<16x16x128xf32>
    %212 = arith.mulf %207, %211 : vector<16x16x128xf32>
    %213 = arith.addf %206, %212 : vector<16x16x128xf32>
    %214 = vector.extract_strided_slice %183 {offsets = [1, 0, 0], sizes = [16, 16, 128], strides = [1, 1, 1]} : vector<18x16x128xf32> to vector<16x16x128xf32>
    %215 = vector.extract_strided_slice %179 {offsets = [1, 1, 0], sizes = [1, 1, 128], strides = [1, 1, 1]} : vector<3x3x128xf32> to vector<1x1x128xf32>
    %216 = vector.shape_cast %215 : vector<1x1x128xf32> to vector<128xf32>
    %217 = vector.shape_cast %216 : vector<128xf32> to vector<1x1x128xf32>
    %218 = vector.broadcast %217 : vector<1x1x128xf32> to vector<16x16x128xf32>
    %219 = arith.mulf %214, %218 : vector<16x16x128xf32>
    %220 = arith.addf %213, %219 : vector<16x16x128xf32>
    %221 = vector.extract_strided_slice %184 {offsets = [1, 0, 0], sizes = [16, 16, 128], strides = [1, 1, 1]} : vector<18x16x128xf32> to vector<16x16x128xf32>
    %222 = vector.extract_strided_slice %179 {offsets = [1, 2, 0], sizes = [1, 1, 128], strides = [1, 1, 1]} : vector<3x3x128xf32> to vector<1x1x128xf32>
    %223 = vector.shape_cast %222 : vector<1x1x128xf32> to vector<128xf32>
    %224 = vector.shape_cast %223 : vector<128xf32> to vector<1x1x128xf32>
    %225 = vector.broadcast %224 : vector<1x1x128xf32> to vector<16x16x128xf32>
    %226 = arith.mulf %221, %225 : vector<16x16x128xf32>
    %227 = arith.addf %220, %226 : vector<16x16x128xf32>
    %228 = vector.extract_strided_slice %182 {offsets = [2, 0, 0], sizes = [16, 16, 128], strides = [1, 1, 1]} : vector<18x16x128xf32> to vector<16x16x128xf32>
    %229 = vector.extract_strided_slice %179 {offsets = [2, 0, 0], sizes = [1, 1, 128], strides = [1, 1, 1]} : vector<3x3x128xf32> to vector<1x1x128xf32>
    %230 = vector.shape_cast %229 : vector<1x1x128xf32> to vector<128xf32>
    %231 = vector.shape_cast %230 : vector<128xf32> to vector<1x1x128xf32>
    %232 = vector.broadcast %231 : vector<1x1x128xf32> to vector<16x16x128xf32>
    %233 = arith.mulf %228, %232 : vector<16x16x128xf32>
    %234 = arith.addf %227, %233 : vector<16x16x128xf32>
    %235 = vector.extract_strided_slice %183 {offsets = [2, 0, 0], sizes = [16, 16, 128], strides = [1, 1, 1]} : vector<18x16x128xf32> to vector<16x16x128xf32>
    %236 = vector.extract_strided_slice %179 {offsets = [2, 1, 0], sizes = [1, 1, 128], strides = [1, 1, 1]} : vector<3x3x128xf32> to vector<1x1x128xf32>
    %237 = vector.shape_cast %236 : vector<1x1x128xf32> to vector<128xf32>
    %238 = vector.shape_cast %237 : vector<128xf32> to vector<1x1x128xf32>
    %239 = vector.broadcast %238 : vector<1x1x128xf32> to vector<16x16x128xf32>
    %240 = arith.mulf %235, %239 : vector<16x16x128xf32>
    %241 = arith.addf %234, %240 : vector<16x16x128xf32>
    %242 = vector.extract_strided_slice %184 {offsets = [2, 0, 0], sizes = [16, 16, 128], strides = [1, 1, 1]} : vector<18x16x128xf32> to vector<16x16x128xf32>
    %243 = vector.extract_strided_slice %179 {offsets = [2, 2, 0], sizes = [1, 1, 128], strides = [1, 1, 1]} : vector<3x3x128xf32> to vector<1x1x128xf32>
    %244 = vector.shape_cast %243 : vector<1x1x128xf32> to vector<128xf32>
    %245 = vector.shape_cast %244 : vector<128xf32> to vector<1x1x128xf32>
    %246 = vector.broadcast %245 : vector<1x1x128xf32> to vector<16x16x128xf32>
    %247 = arith.mulf %242, %246 : vector<16x16x128xf32>
    %248 = arith.addf %241, %247 : vector<16x16x128xf32>
    %249 = vector.shape_cast %248 : vector<16x16x128xf32> to vector<256x128xf32>
    %250 = arith.truncf %249 : vector<256x128xf32> to vector<256x128xbf16>
    %cst_76 = arith.constant dense<0.000000e+00> : vector<256x128xf32>
    %251 = tpu.matmul %250, %180, %cst_76 {dimension_numbers = #tpu.dot_dimension_numbers<[1], [0], [0], [1], [0, 0, 1, 1], [], []>} : vector<256x128xbf16>, vector<128x128xbf16>, vector<256x128xf32> -> vector<256x128xf32>
    %252 = vector.broadcast %181 : vector<1x128xf32> to vector<256x128xf32>
    %253 = arith.addf %251, %252 : vector<256x128xf32>
    %254 = vector.shape_cast %253 : vector<256x128xf32> to vector<16x16x128xf32>
    %255 = vector.shape_cast %254 : vector<16x16x128xf32> to vector<1x16x16x128xf32>
    %c0_77 = arith.constant 0 : index
    %c0_78 = arith.constant 0 : index
    %c0_79 = arith.constant 0 : index
    %c0_80 = arith.constant 0 : index
    %256 = vector.load %arg8[%c0_77, %c0_78, %c0_79, %c0_80] : memref<1x16x16x128xf32, #tpu.memory_space<vmem>>, vector<1x16x16x128xf32>
    tpu.vector_store %arg8[%c0_77, %c0_78, %c0_79, %c0_80], %255 {strides = array<i32>} : memref<1x16x16x128xf32, #tpu.memory_space<vmem>>, vector<1x16x16x128xf32>,
    return
  }
  func.func @transform_0(%arg0: i32) -> (i32, i32, i32, i32) {
    %c0_i32 = arith.constant 0 : i32
    %c0_i32_0 = arith.constant 0 : i32
    %c0_i32_1 = arith.constant 0 : i32
    %c0_i32_2 = arith.constant 0 : i32
    return %arg0, %c0_i32, %c0_i32_0, %c0_i32_1 : i32, i32, i32, i32
  }
  func.func @transform_1(%arg0: i32) -> (i32, i32, i32, i32) {
    %c0_i32 = arith.constant 0 : i32
    %c0_i32_0 = arith.constant 0 : i32
    %c0_i32_1 = arith.constant 0 : i32
    %c0_i32_2 = arith.constant 0 : i32
    %c0_i32_3 = arith.constant 0 : i32
    return %c0_i32, %c0_i32_0, %c0_i32_1, %c0_i32_2 : i32, i32, i32, i32
  }
  func.func @transform_2(%arg0: i32) -> (i32, i32, i32) {
    %c0_i32 = arith.constant 0 : i32
    %c0_i32_0 = arith.constant 0 : i32
    %c0_i32_1 = arith.constant 0 : i32
    %c0_i32_2 = arith.constant 0 : i32
    return %c0_i32, %c0_i32_0, %c0_i32_1 : i32, i32, i32
  }
  func.func @transform_3(%arg0: i32) -> (i32, i32, i32) {
    %c0_i32 = arith.constant 0 : i32
    %c0_i32_0 = arith.constant 0 : i32
    %c0_i32_1 = arith.constant 0 : i32
    %c0_i32_2 = arith.constant 0 : i32
    return %c0_i32, %c0_i32_0, %c0_i32_1 : i32, i32, i32
  }
  func.func @transform_4(%arg0: i32) -> (i32, i32, i32) {
    %c0_i32 = arith.constant 0 : i32
    %c0_i32_0 = arith.constant 0 : i32
    %c0_i32_1 = arith.constant 0 : i32
    %c0_i32_2 = arith.constant 0 : i32
    return %c0_i32, %c0_i32_0, %c0_i32_1 : i32, i32, i32
  }
  func.func @transform_5(%arg0: i32) -> (i32, i32) {
    %c0_i32 = arith.constant 0 : i32
    %c0_i32_0 = arith.constant 0 : i32
    %c0_i32_1 = arith.constant 0 : i32
    return %c0_i32, %c0_i32_0 : i32, i32
  }
  func.func @transform_6(%arg0: i32) -> (i32, i32) {
    %c0_i32 = arith.constant 0 : i32
    %c0_i32_0 = arith.constant 0 : i32
    %c0_i32_1 = arith.constant 0 : i32
    return %c0_i32, %c0_i32_0 : i32, i32
  }
  func.func @transform_7(%arg0: i32) -> (i32, i32, i32, i32) {
    %c0_i32 = arith.constant 0 : i32
    %c0_i32_0 = arith.constant 0 : i32
    %c0_i32_1 = arith.constant 0 : i32
    %c0_i32_2 = arith.constant 0 : i32
    return %arg0, %c0_i32, %c0_i32_0, %c0_i32_1 : i32, i32, i32, i32
  }
}

</mosaic_0001>

<llo_original>
// kernel: tpu_custom_call.1
$region0: #{tpu_custom_call.1}
  #allocation0 [shape = 'u32[]', space=smem, size = 0x4, offset = 0x4, fixed_abs, tag = 'smem constant byte address 0x4 - core index']
  #allocation1 [shape = 'u32[144,128]{1,0:T(1,128)}', space=vmem, size = 0x12000, scoped, tag = 'internal scratch']
  #allocation2 [shape = 'f32[18,32,128]{2,1,0:T(8,128)}', space=vmem, size = 0x48000, scoped, tag = 'scratch operand']
  #allocation3 [shape = 'f32[18,32,128]{2,1,0:T(8,128)}', space=vmem, size = 0x48000, scoped, tag = 'scratch operand']
  %s0 = inlined_call_operand.hbm [shape: f32[2,16,16,128], index: 0, kind: input, shape index: {}]
  %s1 = inlined_call_operand.vmem [shape: f32[2,3,3,128], index: 1, kind: input, shape index: {}]
  %s2 = inlined_call_operand.hbm [shape: bf16[2,128,128], index: 2, kind: input, shape index: {}]
  %s3 = inlined_call_operand.vmem [shape: f32[2,1,128], index: 3, kind: input, shape index: {}]
  %s4 = inlined_call_operand.vmem [shape: f32[3,3,128], index: 4, kind: input, shape index: {}]
  %s5 = inlined_call_operand.hbm [shape: bf16[128,128], index: 5, kind: input, shape index: {}]
  %s6 = inlined_call_operand.vmem [shape: f32[1,128], index: 6, kind: input, shape index: {}]
  %s7 = inlined_call_operand.hbm [shape: f32[2,16,16,128], index: 7, kind: output, shape index: {}]
  %s8 = sld [smem:[#allocation0]]
  $region73: #{tpu_custom_call.1} parent=0
    _
  %s10 = ssub.s32 1, %s8
  %s11 = scalar_select 0, %s10, %s8
  $region1: #{tpu_custom_call.1} parent=0
    #allocation4 [shape = 'u8[262144]{0}', space=vmem, size = 0x40000, scoped, tag = 'input window, operand 0']
    #allocation5 [shape = 's32[2]{0}', space=sflag, size = 0x8, scoped, tag = 'scoped memory for tpu_custom_call.1']
    #allocation6 [shape = 's32[2]{0}', space=sflag, size = 0x8, scoped, tag = 'scoped memory for tpu_custom_call.1']
    #allocation7 [shape = 'u8[65536]{0}', space=vmem, size = 0x10000, scoped, tag = 'input window, operand 2, single buffered']
    #allocation8 [shape = 's32[1]{0}', space=sflag, size = 0x4, scoped, tag = 'scoped memory for tpu_custom_call.1']
    #allocation9 [shape = 'u8[32768]{0}', space=vmem, size = 0x8000, scoped, tag = 'input window, operand 5, single buffered']
    #allocation10 [shape = 'u8[262144]{0}', space=vmem, size = 0x40000, scoped, tag = 'output window, operand 0']
    %12 = vsyncpa [#allocation5], 0
    %s13 = scalar_lea.sflag [#allocation5], 1
    %14 = vsyncpa %s13, 0
    %15 = vsyncpa [#allocation8], 0
    %16 = vsyncpa [#allocation6], 0
    %s17 = scalar_lea.sflag [#allocation6], 1
    %18 = vsyncpa %s17, 0
    loop: start=0, step=1, limit=4
    $region2: #{tpu_custom_call.1} parent=1 // loop_pre_header
      _
    $region3: #{tpu_custom_call.1} parent=1 // loop_header
      %s20 = sphi 0, %s24
      %p21 = scmp.ge.s32.totalorder %s20, 4
      %s30 = sphi 0, %s32
      %s33 = sphi 0, %s30
      %s34 = sphi 0, %s33
      %s50 = sphi 0, %s34
      %s54 = sphi 0, %s54
      %s56 = sphi 0, %s54
      %s57 = sphi 0, %s56
      %s71 = sphi 0, %s57
      %s75 = sphi 0, %s75
      %s77 = sphi 0, %s75
      %s78 = sphi 0, %s77
      %s92 = sphi 0, %s78
      %s96 = sphi 0, %s96
      %s98 = sphi 0, %s96
      %s99 = sphi 0, %s98
      %s113 = sphi 0, %s99
      %s117 = sphi 0, %s117
      %s119 = sphi 0, %s117
      %s120 = sphi 0, %s119
      %s134 = sphi 0, %s120
      %s138 = sphi 0, %s138
      %s140 = sphi 0, %s138
      %s141 = sphi 0, %s140
      %s155 = sphi 0, %s141
      %s159 = sphi 0, %s159
      %s161 = sphi 0, %s159
      %s162 = sphi 0, %s161
      %s176 = sphi 0, %s162
      %s182 = sphi 0, %s184
      %s185 = sphi 0, %s182
      %s186 = sphi 0, %s185
      %s202 = sphi 0, %s186
    $region4: #{tpu_custom_call.1} parent=1 // loop_header_branch
      %23 = sbr.rel (%p21) target = $region8
    $region5: #{tpu_custom_call.1} parent=1 // loop_body
      %s25 = ssub.s32 %s20, 1
      %s26 = ssub.s32 %s20, 2
      %s27 = sadd.s32 %s20, 1
      %s28 = ssub.s32 %s20, %s27
      %p29 = scmp.eq.s32.totalorder %s28, 0
      %s31 = sadd.s32 %s30, 1
      %s32 = scalar_select %p29, %s30, %s31
      %p35 = pneg %p29
      %p36 = scmp.eq.s32.totalorder %s20, 1
      %p37 = por %p35, %p36
      %p38 = scmp.ne.s32.totalorder %s30, %s33
      %p39 = scmp.eq.s32.totalorder %s20, 0
      %p40 = por %p38, %p39
      %p41 = scmp.ne.s32.totalorder %s30, %s33
      %p42 = scmp.eq.s32.totalorder %s25, 1
      %p43 = por %p41, %p42
      %p44 = scmp.ne.s32.totalorder %s33, %s34
      %p45 = scmp.eq.s32.totalorder %s25, 0
      %p46 = por %p44, %p45
      %p47 = scmp.ne.s32.totalorder %s33, %s34
      %p48 = scmp.eq.s32.totalorder %s26, 1
      %p49 = por %p47, %p48
      %p51 = scmp.ne.s32.totalorder %s34, %s50
      %p52 = scmp.eq.s32.totalorder %s26, 0
      %p53 = por %p51, %p52
      %s55 = sadd.s32 %s54, 1
      %p58 = scmp.eq.s32.totalorder %s20, 1
      %p59 = scmp.ne.s32.totalorder %s54, %s56
      %p60 = scmp.eq.s32.totalorder %s20, 0
      %p61 = por %p59, %p60
      %p62 = scmp.ne.s32.totalorder %s54, %s56
      %p63 = scmp.eq.s32.totalorder %s25, 1
      %p64 = por %p62, %p63
      %p65 = scmp.ne.s32.totalorder %s56, %s57
      %p66 = scmp.eq.s32.totalorder %s25, 0
      %p67 = por %p65, %p66
      %p68 = scmp.ne.s32.totalorder %s56, %s57
      %p69 = scmp.eq.s32.totalorder %s26, 1
      %p70 = por %p68, %p69
      %p72 = scmp.ne.s32.totalorder %s57, %s71
      %p73 = scmp.eq.s32.totalorder %s26, 0
      %p74 = por %p72, %p73
      %s76 = sadd.s32 %s75, 1
      %p79 = scmp.eq.s32.totalorder %s20, 1
      %p80 = scmp.ne.s32.totalorder %s75, %s77
      %p81 = scmp.eq.s32.totalorder %s20, 0
      %p82 = por %p80, %p81
      %p83 = scmp.ne.s32.totalorder %s75, %s77
      %p84 = scmp.eq.s32.totalorder %s25, 1
      %p85 = por %p83, %p84
      %p86 = scmp.ne.s32.totalorder %s77, %s78
      %p87 = scmp.eq.s32.totalorder %s25, 0
      %p88 = por %p86, %p87
      %p89 = scmp.ne.s32.totalorder %s77, %s78
      %p90 = scmp.eq.s32.totalorder %s26, 1
      %p91 = por %p89, %p90
      %p93 = scmp.ne.s32.totalorder %s78, %s92
      %p94 = scmp.eq.s32.totalorder %s26, 0
      %p95 = por %p93, %p94
      %s97 = sadd.s32 %s96, 1
      %p100 = scmp.eq.s32.totalorder %s20, 1
      %p101 = scmp.ne.s32.totalorder %s96, %s98
      %p102 = scmp.eq.s32.totalorder %s20, 0
      %p103 = por %p101, %p102
      %p104 = scmp.ne.s32.totalorder %s96, %s98
      %p105 = scmp.eq.s32.totalorder %s25, 1
      %p106 = por %p104, %p105
      %p107 = scmp.ne.s32.totalorder %s98, %s99
      %p108 = scmp.eq.s32.totalorder %s25, 0
      %p109 = por %p107, %p108
      %p110 = scmp.ne.s32.totalorder %s98, %s99
      %p111 = scmp.eq.s32.totalorder %s26, 1
      %p112 = por %p110, %p111
      %p114 = scmp.ne.s32.totalorder %s99, %s113
      %p115 = scmp.eq.s32.totalorder %s26, 0
      %p116 = por %p114, %p115
      %s118 = sadd.s32 %s117, 1
      %p121 = scmp.eq.s32.totalorder %s20, 1
      %p122 = scmp.ne.s32.totalorder %s117, %s119
      %p123 = scmp.eq.s32.totalorder %s20, 0
      %p124 = por %p122, %p123
      %p125 = scmp.ne.s32.totalorder %s117, %s119
      %p126 = scmp.eq.s32.totalorder %s25, 1
      %p127 = por %p125, %p126
      %p128 = scmp.ne.s32.totalorder %s119, %s120
      %p129 = scmp.eq.s32.totalorder %s25, 0
      %p130 = por %p128, %p129
      %p131 = scmp.ne.s32.totalorder %s119, %s120
      %p132 = scmp.eq.s32.totalorder %s26, 1
      %p133 = por %p131, %p132
      %p135 = scmp.ne.s32.totalorder %s120, %s134
      %p136 = scmp.eq.s32.totalorder %s26, 0
      %p137 = por %p135, %p136
      %s139 = sadd.s32 %s138, 1
      %p142 = scmp.eq.s32.totalorder %s20, 1
      %p143 = scmp.ne.s32.totalorder %s138, %s140
      %p144 = scmp.eq.s32.totalorder %s20, 0
      %p145 = por %p143, %p144
      %p146 = scmp.ne.s32.totalorder %s138, %s140
      %p147 = scmp.eq.s32.totalorder %s25, 1
      %p148 = por %p146, %p147
      %p149 = scmp.ne.s32.totalorder %s140, %s141
      %p150 = scmp.eq.s32.totalorder %s25, 0
      %p151 = por %p149, %p150
      %p152 = scmp.ne.s32.totalorder %s140, %s141
      %p153 = scmp.eq.s32.totalorder %s26, 1
      %p154 = por %p152, %p153
      %p156 = scmp.ne.s32.totalorder %s141, %s155
      %p157 = scmp.eq.s32.totalorder %s26, 0
      %p158 = por %p156, %p157
      %s160 = sadd.s32 %s159, 1
      %p163 = scmp.eq.s32.totalorder %s20, 1
      %p164 = scmp.ne.s32.totalorder %s159, %s161
      %p165 = scmp.eq.s32.totalorder %s20, 0
      %p166 = por %p164, %p165
      %p167 = scmp.ne.s32.totalorder %s159, %s161
      %p168 = scmp.eq.s32.totalorder %s25, 1
      %p169 = por %p167, %p168
      %p170 = scmp.ne.s32.totalorder %s161, %s162
      %p171 = scmp.eq.s32.totalorder %s25, 0
      %p172 = por %p170, %p171
      %p173 = scmp.ne.s32.totalorder %s161, %s162
      %p174 = scmp.eq.s32.totalorder %s26, 1
      %p175 = por %p173, %p174
      %p177 = scmp.ne.s32.totalorder %s162, %s176
      %p178 = scmp.eq.s32.totalorder %s26, 0
      %p179 = por %p177, %p178
      %s180 = ssub.s32 %s20, %s27
      %p181 = scmp.eq.s32.totalorder %s180, 0
      %s183 = sadd.s32 %s182, 1
      %s184 = scalar_select %p181, %s182, %s183
      %p187 = pneg %p181
      %p188 = scmp.eq.s32.totalorder %s20, 1
      %p189 = por %p187, %p188
      %p190 = scmp.ne.s32.totalorder %s182, %s185
      %p191 = scmp.eq.s32.totalorder %s20, 0
      %p192 = por %p190, %p191
      %p193 = scmp.ne.s32.totalorder %s182, %s185
      %p194 = scmp.eq.s32.totalorder %s25, 1
      %p195 = por %p193, %p194
      %p196 = scmp.ne.s32.totalorder %s185, %s186
      %p197 = scmp.eq.s32.totalorder %s25, 0
      %p198 = por %p196, %p197
      %p199 = scmp.ne.s32.totalorder %s185, %s186
      %p200 = scmp.eq.s32.totalorder %s26, 1
      %p201 = por %p199, %p200
      %p203 = scmp.ne.s32.totalorder %s186, %s202
      %p204 = scmp.eq.s32.totalorder %s26, 0
      %p205 = por %p203, %p204
      %p206 = scmp.le.s32.totalorder 1, %s20
      %p207 = scmp.lt.s32.totalorder %s20, 3
      %p208 = pnand %p206, %p207
      %p209 = pneg %p208
      // Predicated region
      $region9: #{tpu_custom_call.1} parent=5 // pred_check
        _
      $region10: #{tpu_custom_call.1} parent=5 // pred_check_branch
        %211 = sbr.rel (%p208) target = $region12
      $region11: #{tpu_custom_call.1} parent=5 // pred_region
        %s212 = ssub.s32 %s20, 1
        // Predicated region
        $region13: #{tpu_custom_call.1} parent=11 // pred_check
          %p213 = pneg %p67
        $region14: #{tpu_custom_call.1} parent=11 // pred_check_branch
          %215 = sbr.rel (%p213) target = $region16
        $region15: #{tpu_custom_call.1} parent=11 // pred_region
          _
        $region16: #{tpu_custom_call.1} parent=11 // pred_fallthru
          _
        // Predicated region
        $region17: #{tpu_custom_call.1} parent=11 // pred_check
          %p216 = pneg %p88
        $region18: #{tpu_custom_call.1} parent=11 // pred_check_branch
          %218 = sbr.rel (%p216) target = $region20
        $region19: #{tpu_custom_call.1} parent=11 // pred_region
          %s220 = ssub.s32 2048, 2048
          %221 = vsyncadd [#allocation8], %s220
          %s222 = sshll.u32 [#allocation7], 4
          %s223 = int_to_ptr.vmem [resolvable:$true] %s222
          %228 = dma.hbm_to_vmem [thread:$0]  %s2, 2048, %s223, [#allocation8], 64, 64, 4
        $region20: #{tpu_custom_call.1} parent=11 // pred_fallthru
          _
        // Predicated region
        $region21: #{tpu_custom_call.1} parent=11 // pred_check
          %p229 = pneg %p109
        $region22: #{tpu_custom_call.1} parent=11 // pred_check_branch
          %231 = sbr.rel (%p229) target = $region24
        $region23: #{tpu_custom_call.1} parent=11 // pred_region
          _
        $region24: #{tpu_custom_call.1} parent=11 // pred_fallthru
          _
        // Predicated region
        $region25: #{tpu_custom_call.1} parent=11 // pred_check
          %p232 = pneg %p130
        $region26: #{tpu_custom_call.1} parent=11 // pred_check_branch
          %234 = sbr.rel (%p232) target = $region28
        $region27: #{tpu_custom_call.1} parent=11 // pred_region
          _
        $region28: #{tpu_custom_call.1} parent=11 // pred_fallthru
          _
        // Predicated region
        $region29: #{tpu_custom_call.1} parent=11 // pred_check
          %p235 = pneg %p151
        $region30: #{tpu_custom_call.1} parent=11 // pred_check_branch
          %237 = sbr.rel (%p235) target = $region32
        $region31: #{tpu_custom_call.1} parent=11 // pred_region
          %s239 = ssub.s32 1024, 1024
          %240 = vsyncadd [#allocation8], %s239
          %s241 = sshll.u32 [#allocation9], 4
          %s242 = int_to_ptr.vmem [resolvable:$true] %s241
          %247 = dma.hbm_to_vmem [thread:$0]  %s5, 1024, %s242, [#allocation8], 64, 64, 4
        $region32: #{tpu_custom_call.1} parent=11 // pred_fallthru
          _
        // Predicated region
        $region33: #{tpu_custom_call.1} parent=11 // pred_check
          %p248 = pneg %p172
        $region34: #{tpu_custom_call.1} parent=11 // pred_check_branch
          %250 = sbr.rel (%p248) target = $region36
        $region35: #{tpu_custom_call.1} parent=11 // pred_region
          _
        $region36: #{tpu_custom_call.1} parent=11 // pred_fallthru
          _
      $region12: #{tpu_custom_call.1} parent=5 // pred_fallthru
        _
      %p251 = scmp.lt.s32.totalorder %s20, 2
      // Predicated region
      $region37: #{tpu_custom_call.1} parent=5 // pred_check
        %p252 = pneg %p251
      $region38: #{tpu_custom_call.1} parent=5 // pred_check_branch
        %254 = sbr.rel (%p252) target = $region40
      $region39: #{tpu_custom_call.1} parent=5 // pred_region
        // Predicated region
        $region41: #{tpu_custom_call.1} parent=39 // pred_check
          %p255 = pneg %p40
        $region42: #{tpu_custom_call.1} parent=39 // pred_check_branch
          %257 = sbr.rel (%p255) target = $region44
        $region43: #{tpu_custom_call.1} parent=39 // pred_region
          %s258 = sand.u32 %s30, 1
          %s259 = scalar_lea.sflag [#allocation5], %s258
          %s260 = sand.u32 %s30, 1
          %s261 = smul.addr %s260, 256
          %s262 = scalar_lea.vmem [#allocation4], %s261
          %s264 = ssub.s32 4096, 4096
          %265 = vsyncadd %s259, %s264
          %s266 = smul.addr %s20, 32
          %s267 = smul.addr %s266, 128
          %s268 = scalar_lea.hbm %s0, %s267
          %s269 = sshll.u32 %s262, 4
          %s270 = int_to_ptr.vmem [resolvable:$true] %s269
          %275 = dma.hbm_to_vmem [thread:$0]  %s268, 4096, %s270, %s259, 128, 128, 8
        $region44: #{tpu_custom_call.1} parent=39 // pred_fallthru
          _
      $region40: #{tpu_custom_call.1} parent=5 // pred_fallthru
        _
      %p276 = scmp.le.s32.totalorder 1, %s20
      %p277 = scmp.lt.s32.totalorder %s20, 3
      %p278 = pnand %p276, %p277
      %p279 = pneg %p278
      // Predicated region
      $region45: #{tpu_custom_call.1} parent=5 // pred_check
        _
      $region46: #{tpu_custom_call.1} parent=5 // pred_check_branch
        %281 = sbr.rel (%p278) target = $region48
      $region47: #{tpu_custom_call.1} parent=5 // pred_region
        %s282 = ssub.s32 %s20, 1
        %s283 = sand.u32 %s33, 1
        %s284 = scalar_lea.sflag [#allocation5], %s283
        %s285 = sand.u32 %s33, 1
        %s286 = smul.addr %s285, 256
        %s287 = scalar_lea.vmem [#allocation4], %s286
        // Predicated region
        $region49: #{tpu_custom_call.1} parent=47 // pred_check
          %p288 = pneg %p46
        $region50: #{tpu_custom_call.1} parent=47 // pred_check_branch
          %290 = sbr.rel (%p288) target = $region52
        $region51: #{tpu_custom_call.1} parent=47 // pred_region
          %291 = dma.done %s284, 4096
        $region52: #{tpu_custom_call.1} parent=47 // pred_fallthru
          _
        // Predicated region
        $region53: #{tpu_custom_call.1} parent=47 // pred_check
          %p292 = pneg %p88
        $region54: #{tpu_custom_call.1} parent=47 // pred_check_branch
          %294 = sbr.rel (%p292) target = $region56
        $region55: #{tpu_custom_call.1} parent=47 // pred_region
          %295 = dma.done [#allocation8], 2048
        $region56: #{tpu_custom_call.1} parent=47 // pred_fallthru
          _
        // Predicated region
        $region57: #{tpu_custom_call.1} parent=47 // pred_check
          %p296 = pneg %p151
        $region58: #{tpu_custom_call.1} parent=47 // pred_check_branch
          %298 = sbr.rel (%p296) target = $region60
        $region59: #{tpu_custom_call.1} parent=47 // pred_region
          %299 = dma.done [#allocation8], 1024
        $region60: #{tpu_custom_call.1} parent=47 // pred_fallthru
          _
        %s300 = sand.u32 %s33, 1
        %s301 = scalar_lea.sflag [#allocation5], %s300
        %s302 = sand.u32 %s33, 1
        %s303 = smul.addr %s302, 256
        %s304 = scalar_lea.vmem [#allocation4], %s303
        %p305 = pneg %p46
        %p306 = pneg %p43
        %p307 = pneg %p67
        %p308 = pneg %p64
        %p309 = pneg %p88
        %p310 = pneg %p85
        %p311 = pneg %p109
        %p312 = pneg %p106
        %p313 = pneg %p130
        %p314 = pneg %p127
        %p315 = pneg %p151
        %p316 = pneg %p148
        %p317 = pneg %p172
        %p318 = pneg %p169
        %p319 = pneg %p198
        %p320 = pneg %p195
        %s321 = sand.u32 %s185, 1
        %s322 = scalar_lea.sflag [#allocation6], %s321
        %s323 = sand.u32 %s185, 1
        %s324 = smul.addr %s323, 256
        %s325 = scalar_lea.vmem [#allocation10], %s324
        %327 = vst [vmem:[#allocation2] sm:$0xff] 0.0
        %328 = vst [vmem:[#allocation2 + $0x8] sm:$0xff] 0.0
        %329 = vst [vmem:[#allocation2 + $0x10] sm:$0xff] 0.0
        %330 = vst [vmem:[#allocation2 + $0x18] sm:$0xff] 0.0
        %331 = vst [vmem:[#allocation2 + $0x20] sm:$0xff] 0.0
        %332 = vst [vmem:[#allocation2 + $0x28] sm:$0xff] 0.0
        %333 = vst [vmem:[#allocation2 + $0x30] sm:$0xff] 0.0
        %334 = vst [vmem:[#allocation2 + $0x38] sm:$0xff] 0.0
        %335 = vst [vmem:[#allocation2 + $0x40] sm:$0xff] 0.0
        %336 = vst [vmem:[#allocation2 + $0x48] sm:$0xff] 0.0
        %337 = vst [vmem:[#allocation2 + $0x50] sm:$0xff] 0.0
        %338 = vst [vmem:[#allocation2 + $0x58] sm:$0xff] 0.0
        %339 = vst [vmem:[#allocation2 + $0x60] sm:$0xff] 0.0
        %340 = vst [vmem:[#allocation2 + $0x68] sm:$0xff] 0.0
        %341 = vst [vmem:[#allocation2 + $0x70] sm:$0xff] 0.0
        %342 = vst [vmem:[#allocation2 + $0x78] sm:$0xff] 0.0
        %343 = vst [vmem:[#allocation2 + $0x80] sm:$0xff] 0.0
        %344 = vst [vmem:[#allocation2 + $0x88] sm:$0xff] 0.0
        %345 = vst [vmem:[#allocation2 + $0x90] sm:$0xff] 0.0
        %346 = vst [vmem:[#allocation2 + $0x98] sm:$0xff] 0.0
        %347 = vst [vmem:[#allocation2 + $0xa0] sm:$0xff] 0.0
        %348 = vst [vmem:[#allocation2 + $0xa8] sm:$0xff] 0.0
        %349 = vst [vmem:[#allocation2 + $0xb0] sm:$0xff] 0.0
        %350 = vst [vmem:[#allocation2 + $0xb8] sm:$0xff] 0.0
        %351 = vst [vmem:[#allocation2 + $0xc0] sm:$0xff] 0.0
        %352 = vst [vmem:[#allocation2 + $0xc8] sm:$0xff] 0.0
        %353 = vst [vmem:[#allocation2 + $0xd0] sm:$0xff] 0.0
        %354 = vst [vmem:[#allocation2 + $0xd8] sm:$0xff] 0.0
        %355 = vst [vmem:[#allocation2 + $0xe0] sm:$0xff] 0.0
        %356 = vst [vmem:[#allocation2 + $0xe8] sm:$0xff] 0.0
        %357 = vst [vmem:[#allocation2 + $0xf0] sm:$0xff] 0.0
        %358 = vst [vmem:[#allocation2 + $0xf8] sm:$0xff] 0.0
        %359 = vst [vmem:[#allocation2 + $0x100] sm:$0xff] 0.0
        %360 = vst [vmem:[#allocation2 + $0x108] sm:$0xff] 0.0
        %361 = vst [vmem:[#allocation2 + $0x110] sm:$0xff] 0.0
        %362 = vst [vmem:[#allocation2 + $0x118] sm:$0xff] 0.0
        %363 = vst [vmem:[#allocation2 + $0x120] sm:$0xff] 0.0
        %364 = vst [vmem:[#allocation2 + $0x128] sm:$0xff] 0.0
        %365 = vst [vmem:[#allocation2 + $0x130] sm:$0xff] 0.0
        %366 = vst [vmem:[#allocation2 + $0x138] sm:$0xff] 0.0
        %367 = vst [vmem:[#allocation2 + $0x140] sm:$0xff] 0.0
        %368 = vst [vmem:[#allocation2 + $0x148] sm:$0xff] 0.0
        %369 = vst [vmem:[#allocation2 + $0x150] sm:$0xff] 0.0
        %370 = vst [vmem:[#allocation2 + $0x158] sm:$0xff] 0.0
        %371 = vst [vmem:[#allocation2 + $0x160] sm:$0xff] 0.0
        %372 = vst [vmem:[#allocation2 + $0x168] sm:$0xff] 0.0
        %373 = vst [vmem:[#allocation2 + $0x170] sm:$0xff] 0.0
        %374 = vst [vmem:[#allocation2 + $0x178] sm:$0xff] 0.0
        %375 = vst [vmem:[#allocation2 + $0x180] sm:$0xff] 0.0
        %376 = vst [vmem:[#allocation2 + $0x188] sm:$0xff] 0.0
        %377 = vst [vmem:[#allocation2 + $0x190] sm:$0xff] 0.0
        %378 = vst [vmem:[#allocation2 + $0x198] sm:$0xff] 0.0
        %379 = vst [vmem:[#allocation2 + $0x1a0] sm:$0xff] 0.0
        %380 = vst [vmem:[#allocation2 + $0x1a8] sm:$0xff] 0.0
        %381 = vst [vmem:[#allocation2 + $0x1b0] sm:$0xff] 0.0
        %382 = vst [vmem:[#allocation2 + $0x1b8] sm:$0xff] 0.0
        %383 = vst [vmem:[#allocation2 + $0x1c0] sm:$0xff] 0.0
        %384 = vst [vmem:[#allocation2 + $0x1c8] sm:$0xff] 0.0
        %385 = vst [vmem:[#allocation2 + $0x1d0] sm:$0xff] 0.0
        %386 = vst [vmem:[#allocation2 + $0x1d8] sm:$0xff] 0.0
        %387 = vst [vmem:[#allocation2 + $0x1e0] sm:$0xff] 0.0
        %388 = vst [vmem:[#allocation2 + $0x1e8] sm:$0xff] 0.0
        %389 = vst [vmem:[#allocation2 + $0x1f0] sm:$0xff] 0.0
        %390 = vst [vmem:[#allocation2 + $0x1f8] sm:$0xff] 0.0
        %391 = vst [vmem:[#allocation2 + $0x200] sm:$0xff] 0.0
        %392 = vst [vmem:[#allocation2 + $0x208] sm:$0xff] 0.0
        %393 = vst [vmem:[#allocation2 + $0x210] sm:$0xff] 0.0
        %394 = vst [vmem:[#allocation2 + $0x218] sm:$0xff] 0.0
        %395 = vst [vmem:[#allocation2 + $0x220] sm:$0xff] 0.0
        %396 = vst [vmem:[#allocation2 + $0x228] sm:$0xff] 0.0
        %397 = vst [vmem:[#allocation2 + $0x230] sm:$0xff] 0.0
        %398 = vst [vmem:[#allocation2 + $0x238] sm:$0xff] 0.0
        %399 = vst [vmem:[#allocation3] sm:$0xff] 0.0
        %400 = vst [vmem:[#allocation3 + $0x8] sm:$0xff] 0.0
        %401 = vst [vmem:[#allocation3 + $0x10] sm:$0xff] 0.0
        %402 = vst [vmem:[#allocation3 + $0x18] sm:$0xff] 0.0
        %403 = vst [vmem:[#allocation3 + $0x20] sm:$0xff] 0.0
        %404 = vst [vmem:[#allocation3 + $0x28] sm:$0xff] 0.0
        %405 = vst [vmem:[#allocation3 + $0x30] sm:$0xff] 0.0
        %406 = vst [vmem:[#allocation3 + $0x38] sm:$0xff] 0.0
        %407 = vst [vmem:[#allocation3 + $0x40] sm:$0xff] 0.0
        %408 = vst [vmem:[#allocation3 + $0x48] sm:$0xff] 0.0
        %409 = vst [vmem:[#allocation3 + $0x50] sm:$0xff] 0.0
        %410 = vst [vmem:[#allocation3 + $0x58] sm:$0xff] 0.0
        %411 = vst [vmem:[#allocation3 + $0x60] sm:$0xff] 0.0
        %412 = vst [vmem:[#allocation3 + $0x68] sm:$0xff] 0.0
        %413 = vst [vmem:[#allocation3 + $0x70] sm:$0xff] 0.0
        %414 = vst [vmem:[#allocation3 + $0x78] sm:$0xff] 0.0
        %415 = vst [vmem:[#allocation3 + $0x80] sm:$0xff] 0.0
        %416 = vst [vmem:[#allocation3 + $0x88] sm:$0xff] 0.0
        %417 = vst [vmem:[#allocation3 + $0x90] sm:$0xff] 0.0
        %418 = vst [vmem:[#allocation3 + $0x98] sm:$0xff] 0.0
        %419 = vst [vmem:[#allocation3 + $0xa0] sm:$0xff] 0.0
        %420 = vst [vmem:[#allocation3 + $0xa8] sm:$0xff] 0.0
        %421 = vst [vmem:[#allocation3 + $0xb0] sm:$0xff] 0.0
        %422 = vst [vmem:[#allocation3 + $0xb8] sm:$0xff] 0.0
        %423 = vst [vmem:[#allocation3 + $0xc0] sm:$0xff] 0.0
        %424 = vst [vmem:[#allocation3 + $0xc8] sm:$0xff] 0.0
        %425 = vst [vmem:[#allocation3 + $0xd0] sm:$0xff] 0.0
        %426 = vst [vmem:[#allocation3 + $0xd8] sm:$0xff] 0.0
        %427 = vst [vmem:[#allocation3 + $0xe0] sm:$0xff] 0.0
        %428 = vst [vmem:[#allocation3 + $0xe8] sm:$0xff] 0.0
        %429 = vst [vmem:[#allocation3 + $0xf0] sm:$0xff] 0.0
        %430 = vst [vmem:[#allocation3 + $0xf8] sm:$0xff] 0.0
        %431 = vst [vmem:[#allocation3 + $0x100] sm:$0xff] 0.0
        %432 = vst [vmem:[#allocation3 + $0x108] sm:$0xff] 0.0
        %433 = vst [vmem:[#allocation3 + $0x110] sm:$0xff] 0.0
        %434 = vst [vmem:[#allocation3 + $0x118] sm:$0xff] 0.0
        %435 = vst [vmem:[#allocation3 + $0x120] sm:$0xff] 0.0
        %436 = vst [vmem:[#allocation3 + $0x128] sm:$0xff] 0.0
        %437 = vst [vmem:[#allocation3 + $0x130] sm:$0xff] 0.0
        %438 = vst [vmem:[#allocation3 + $0x138] sm:$0xff] 0.0
        %439 = vst [vmem:[#allocation3 + $0x140] sm:$0xff] 0.0
        %440 = vst [vmem:[#allocation3 + $0x148] sm:$0xff] 0.0
        %441 = vst [vmem:[#allocation3 + $0x150] sm:$0xff] 0.0
        %442 = vst [vmem:[#allocation3 + $0x158] sm:$0xff] 0.0
        %443 = vst [vmem:[#allocation3 + $0x160] sm:$0xff] 0.0
        %444 = vst [vmem:[#allocation3 + $0x168] sm:$0xff] 0.0
        %445 = vst [vmem:[#allocation3 + $0x170] sm:$0xff] 0.0
        %446 = vst [vmem:[#allocation3 + $0x178] sm:$0xff] 0.0
        %447 = vst [vmem:[#allocation3 + $0x180] sm:$0xff] 0.0
        %448 = vst [vmem:[#allocation3 + $0x188] sm:$0xff] 0.0
        %449 = vst [vmem:[#allocation3 + $0x190] sm:$0xff] 0.0
        %450 = vst [vmem:[#allocation3 + $0x198] sm:$0xff] 0.0
        %451 = vst [vmem:[#allocation3 + $0x1a0] sm:$0xff] 0.0
        %452 = vst [vmem:[#allocation3 + $0x1a8] sm:$0xff] 0.0
        %453 = vst [vmem:[#allocation3 + $0x1b0] sm:$0xff] 0.0
        %454 = vst [vmem:[#allocation3 + $0x1b8] sm:$0xff] 0.0
        %455 = vst [vmem:[#allocation3 + $0x1c0] sm:$0xff] 0.0
        %456 = vst [vmem:[#allocation3 + $0x1c8] sm:$0xff] 0.0
        %457 = vst [vmem:[#allocation3 + $0x1d0] sm:$0xff] 0.0
        %458 = vst [vmem:[#allocation3 + $0x1d8] sm:$0xff] 0.0
        %459 = vst [vmem:[#allocation3 + $0x1e0] sm:$0xff] 0.0
        %460 = vst [vmem:[#allocation3 + $0x1e8] sm:$0xff] 0.0
        %461 = vst [vmem:[#allocation3 + $0x1f0] sm:$0xff] 0.0
        %462 = vst [vmem:[#allocation3 + $0x1f8] sm:$0xff] 0.0
        %463 = vst [vmem:[#allocation3 + $0x200] sm:$0xff] 0.0
        %464 = vst [vmem:[#allocation3 + $0x208] sm:$0xff] 0.0
        %465 = vst [vmem:[#allocation3 + $0x210] sm:$0xff] 0.0
        %466 = vst [vmem:[#allocation3 + $0x218] sm:$0xff] 0.0
        %467 = vst [vmem:[#allocation3 + $0x220] sm:$0xff] 0.0
        %468 = vst [vmem:[#allocation3 + $0x228] sm:$0xff] 0.0
        %469 = vst [vmem:[#allocation3 + $0x230] sm:$0xff] 0.0
        %470 = vst [vmem:[#allocation3 + $0x238] sm:$0xff] 0.0
        %v471 = vld [vmem:[%s287] sm:$0xff]
        %v472 = vld [vmem:[%s287 + $0x8] sm:$0xff]
        %v473 = vld [vmem:[%s287 + $0x10] sm:$0xff]
        %v474 = vld [vmem:[%s287 + $0x18] sm:$0xff]
        %v475 = vld [vmem:[%s287 + $0x20] sm:$0xff]
        %v476 = vld [vmem:[%s287 + $0x28] sm:$0xff]
        %v477 = vld [vmem:[%s287 + $0x30] sm:$0xff]
        %v478 = vld [vmem:[%s287 + $0x38] sm:$0xff]
        %v479 = vld [vmem:[%s287 + $0x40] sm:$0xff]
        %v480 = vld [vmem:[%s287 + $0x48] sm:$0xff]
        %v481 = vld [vmem:[%s287 + $0x50] sm:$0xff]
        %v482 = vld [vmem:[%s287 + $0x58] sm:$0xff]
        %v483 = vld [vmem:[%s287 + $0x60] sm:$0xff]
        %v484 = vld [vmem:[%s287 + $0x68] sm:$0xff]
        %v485 = vld [vmem:[%s287 + $0x70] sm:$0xff]
        %v486 = vld [vmem:[%s287 + $0x78] sm:$0xff]
        %v487 = vld [vmem:[%s287 + $0x80] sm:$0xff]
        %v488 = vld [vmem:[%s287 + $0x88] sm:$0xff]
        %v489 = vld [vmem:[%s287 + $0x90] sm:$0xff]
        %v490 = vld [vmem:[%s287 + $0x98] sm:$0xff]
        %v491 = vld [vmem:[%s287 + $0xa0] sm:$0xff]
        %v492 = vld [vmem:[%s287 + $0xa8] sm:$0xff]
        %v493 = vld [vmem:[%s287 + $0xb0] sm:$0xff]
        %v494 = vld [vmem:[%s287 + $0xb8] sm:$0xff]
        %v495 = vld [vmem:[%s287 + $0xc0] sm:$0xff]
        %v496 = vld [vmem:[%s287 + $0xc8] sm:$0xff]
        %v497 = vld [vmem:[%s287 + $0xd0] sm:$0xff]
        %v498 = vld [vmem:[%s287 + $0xd8] sm:$0xff]
        %v499 = vld [vmem:[%s287 + $0xe0] sm:$0xff]
        %v500 = vld [vmem:[%s287 + $0xe8] sm:$0xff]
        %v501 = vld [vmem:[%s287 + $0xf0] sm:$0xff]
        %v502 = vld [vmem:[%s287 + $0xf8] sm:$0xff]
        %s503 = scalar_lea.vmem [#allocation2], 32
        %504 = vst [vmem:[%s503 + $0x8] sm:$0xff] %v471
        %505 = vst [vmem:[%s503 + $0x10] sm:$0xff] %v472
        %506 = vst [vmem:[%s503 + $0x28] sm:$0xff] %v473
        %507 = vst [vmem:[%s503 + $0x30] sm:$0xff] %v474
        %508 = vst [vmem:[%s503 + $0x48] sm:$0xff] %v475
        %509 = vst [vmem:[%s503 + $0x50] sm:$0xff] %v476
        %510 = vst [vmem:[%s503 + $0x68] sm:$0xff] %v477
        %511 = vst [vmem:[%s503 + $0x70] sm:$0xff] %v478
        %512 = vst [vmem:[%s503 + $0x88] sm:$0xff] %v479
        %513 = vst [vmem:[%s503 + $0x90] sm:$0xff] %v480
        %514 = vst [vmem:[%s503 + $0xa8] sm:$0xff] %v481
        %515 = vst [vmem:[%s503 + $0xb0] sm:$0xff] %v482
        %516 = vst [vmem:[%s503 + $0xc8] sm:$0xff] %v483
        %517 = vst [vmem:[%s503 + $0xd0] sm:$0xff] %v484
        %518 = vst [vmem:[%s503 + $0xe8] sm:$0xff] %v485
        %519 = vst [vmem:[%s503 + $0xf0] sm:$0xff] %v486
        %520 = vst [vmem:[%s503 + $0x108] sm:$0xff] %v487
        %521 = vst [vmem:[%s503 + $0x110] sm:$0xff] %v488
        %522 = vst [vmem:[%s503 + $0x128] sm:$0xff] %v489
        %523 = vst [vmem:[%s503 + $0x130] sm:$0xff] %v490
        %524 = vst [vmem:[%s503 + $0x148] sm:$0xff] %v491
        %525 = vst [vmem:[%s503 + $0x150] sm:$0xff] %v492
        %526 = vst [vmem:[%s503 + $0x168] sm:$0xff] %v493
        %527 = vst [vmem:[%s503 + $0x170] sm:$0xff] %v494
        %528 = vst [vmem:[%s503 + $0x188] sm:$0xff] %v495
        %529 = vst [vmem:[%s503 + $0x190] sm:$0xff] %v496
        %530 = vst [vmem:[%s503 + $0x1a8] sm:$0xff] %v497
        %531 = vst [vmem:[%s503 + $0x1b0] sm:$0xff] %v498
        %532 = vst [vmem:[%s503 + $0x1c8] sm:$0xff] %v499
        %533 = vst [vmem:[%s503 + $0x1d0] sm:$0xff] %v500
        %534 = vst [vmem:[%s503 + $0x1e8] sm:$0xff] %v501
        %535 = vst [vmem:[%s503 + $0x1f0] sm:$0xff] %v502
        %v536 = vld [vmem:[%s1] sm:$0x7]
        %v537 = vld [vmem:[%s1 + $0x4] sm:$0x7]
        %v538 = vld [vmem:[%s1 + $0x8] sm:$0x7]
        %v539 = vld [vmem:[#allocation7] sm:$0xf]
        %v540 = vld [vmem:[#allocation7 + $0x4] sm:$0xf]
        %v541 = vld [vmem:[#allocation7 + $0x8] sm:$0xf]
        %v542 = vld [vmem:[#allocation7 + $0xc] sm:$0xf]
        %v543 = vld [vmem:[#allocation7 + $0x10] sm:$0xf]
        %v544 = vld [vmem:[#allocation7 + $0x14] sm:$0xf]
        %v545 = vld [vmem:[#allocation7 + $0x18] sm:$0xf]
        %v546 = vld [vmem:[#allocation7 + $0x1c] sm:$0xf]
        %v547 = vld [vmem:[#allocation7 + $0x20] sm:$0xf]
        %v548 = vld [vmem:[#allocation7 + $0x24] sm:$0xf]
        %v549 = vld [vmem:[#allocation7 + $0x28] sm:$0xf]
        %v550 = vld [vmem:[#allocation7 + $0x2c] sm:$0xf]
        %v551 = vld [vmem:[#allocation7 + $0x30] sm:$0xf]
        %v552 = vld [vmem:[#allocation7 + $0x34] sm:$0xf]
        %v553 = vld [vmem:[#allocation7 + $0x38] sm:$0xf]
        %v554 = vld [vmem:[#allocation7 + $0x3c] sm:$0xf]
        %v555 = vld [vmem:[%s3] sm:$0x1]
        %v556 = vld [vmem:[#allocation2 + $0x7] sm:$0xff]
        %v557 = vld [vmem:[#allocation2 + $0xf] sm:$0xff]
        %v558 = vld [vmem:[#allocation2 + $0x27] sm:$0xff]
        %v559 = vld [vmem:[#allocation2 + $0x2f] sm:$0xff]
        %v560 = vld [vmem:[#allocation2 + $0x47] sm:$0xff]
        %v561 = vld [vmem:[#allocation2 + $0x4f] sm:$0xff]
        %v562 = vld [vmem:[#allocation2 + $0x67] sm:$0xff]
        %v563 = vld [vmem:[#allocation2 + $0x6f] sm:$0xff]
        %v564 = vld [vmem:[#allocation2 + $0x87] sm:$0xff]
        %v565 = vld [vmem:[#allocation2 + $0x8f] sm:$0xff]
        %v566 = vld [vmem:[#allocation2 + $0xa7] sm:$0xff]
        %v567 = vld [vmem:[#allocation2 + $0xaf] sm:$0xff]
        %v568 = vld [vmem:[#allocation2 + $0xc7] sm:$0xff]
        %v569 = vld [vmem:[#allocation2 + $0xcf] sm:$0xff]
        %v570 = vld [vmem:[#allocation2 + $0xe7] sm:$0xff]
        %v571 = vld [vmem:[#allocation2 + $0xef] sm:$0xff]
        %v572 = vld [vmem:[#allocation2 + $0x107] sm:$0xff]
        %v573 = vld [vmem:[#allocation2 + $0x10f] sm:$0xff]
        %v574 = vld [vmem:[#allocation2 + $0x127] sm:$0xff]
        %v575 = vld [vmem:[#allocation2 + $0x12f] sm:$0xff]
        %v576 = vld [vmem:[#allocation2 + $0x147] sm:$0xff]
        %v577 = vld [vmem:[#allocation2 + $0x14f] sm:$0xff]
        %v578 = vld [vmem:[#allocation2 + $0x167] sm:$0xff]
        %v579 = vld [vmem:[#allocation2 + $0x16f] sm:$0xff]
        %v580 = vld [vmem:[#allocation2 + $0x187] sm:$0xff]
        %v581 = vld [vmem:[#allocation2 + $0x18f] sm:$0xff]
        %v582 = vld [vmem:[#allocation2 + $0x1a7] sm:$0xff]
        %v583 = vld [vmem:[#allocation2 + $0x1af] sm:$0xff]
        %v584 = vld [vmem:[#allocation2 + $0x1c7] sm:$0xff]
        %v585 = vld [vmem:[#allocation2 + $0x1cf] sm:$0xff]
        %v586 = vld [vmem:[#allocation2 + $0x1e7] sm:$0xff]
        %v587 = vld [vmem:[#allocation2 + $0x1ef] sm:$0xff]
        %v588 = vld [vmem:[#allocation2 + $0x207] sm:$0xff]
        %v589 = vld [vmem:[#allocation2 + $0x20f] sm:$0xff]
        %v590 = vld [vmem:[#allocation2 + $0x227] sm:$0xff]
        %v591 = vld [vmem:[#allocation2 + $0x22f] sm:$0xff]
        %v592 = vld [vmem:[#allocation2 + $0x8] sm:$0xff]
        %v593 = vld [vmem:[#allocation2 + $0x10] sm:$0xff]
        %v594 = vld [vmem:[#allocation2 + $0x28] sm:$0xff]
        %v595 = vld [vmem:[#allocation2 + $0x30] sm:$0xff]
        %v596 = vld [vmem:[#allocation2 + $0x48] sm:$0xff]
        %v597 = vld [vmem:[#allocation2 + $0x50] sm:$0xff]
        %v598 = vld [vmem:[#allocation2 + $0x68] sm:$0xff]
        %v599 = vld [vmem:[#allocation2 + $0x70] sm:$0xff]
        %v600 = vld [vmem:[#allocation2 + $0x88] sm:$0xff]
        %v601 = vld [vmem:[#allocation2 + $0x90] sm:$0xff]
        %v602 = vld [vmem:[#allocation2 + $0xa8] sm:$0xff]
        %v603 = vld [vmem:[#allocation2 + $0xb0] sm:$0xff]
        %v604 = vld [vmem:[#allocation2 + $0xc8] sm:$0xff]
        %v605 = vld [vmem:[#allocation2 + $0xd0] sm:$0xff]
        %v606 = vld [vmem:[#allocation2 + $0xe8] sm:$0xff]
        %v607 = vld [vmem:[#allocation2 + $0xf0] sm:$0xff]
        %v608 = vld [vmem:[#allocation2 + $0x108] sm:$0xff]
        %v609 = vld [vmem:[#allocation2 + $0x110] sm:$0xff]
        %v610 = vld [vmem:[#allocation2 + $0x128] sm:$0xff]
        %v611 = vld [vmem:[#allocation2 + $0x130] sm:$0xff]
        %v612 = vld [vmem:[#allocation2 + $0x148] sm:$0xff]
        %v613 = vld [vmem:[#allocation2 + $0x150] sm:$0xff]
        %v614 = vld [vmem:[#allocation2 + $0x168] sm:$0xff]
        %v615 = vld [vmem:[#allocation2 + $0x170] sm:$0xff]
        %v616 = vld [vmem:[#allocation2 + $0x188] sm:$0xff]
        %v617 = vld [vmem:[#allocation2 + $0x190] sm:$0xff]
        %v618 = vld [vmem:[#allocation2 + $0x1a8] sm:$0xff]
        %v619 = vld [vmem:[#allocation2 + $0x1b0] sm:$0xff]
        %v620 = vld [vmem:[#allocation2 + $0x1c8] sm:$0xff]
        %v621 = vld [vmem:[#allocation2 + $0x1d0] sm:$0xff]
        %v622 = vld [vmem:[#allocation2 + $0x1e8] sm:$0xff]
        %v623 = vld [vmem:[#allocation2 + $0x1f0] sm:$0xff]
        %v624 = vld [vmem:[#allocation2 + $0x208] sm:$0xff]
        %v625 = vld [vmem:[#allocation2 + $0x210] sm:$0xff]
        %v626 = vld [vmem:[#allocation2 + $0x228] sm:$0xff]
        %v627 = vld [vmem:[#allocation2 + $0x230] sm:$0xff]
        %v628 = vld [vmem:[#allocation2 + $0x9] sm:$0xff]
        %v629 = vld [vmem:[#allocation2 + $0x11] sm:$0xff]
        %v630 = vld [vmem:[#allocation2 + $0x29] sm:$0xff]
        %v631 = vld [vmem:[#allocation2 + $0x31] sm:$0xff]
        %v632 = vld [vmem:[#allocation2 + $0x49] sm:$0xff]
        %v633 = vld [vmem:[#allocation2 + $0x51] sm:$0xff]
        %v634 = vld [vmem:[#allocation2 + $0x69] sm:$0xff]
        %v635 = vld [vmem:[#allocation2 + $0x71] sm:$0xff]
        %v636 = vld [vmem:[#allocation2 + $0x89] sm:$0xff]
        %v637 = vld [vmem:[#allocation2 + $0x91] sm:$0xff]
        %v638 = vld [vmem:[#allocation2 + $0xa9] sm:$0xff]
        %v639 = vld [vmem:[#allocation2 + $0xb1] sm:$0xff]
        %v640 = vld [vmem:[#allocation2 + $0xc9] sm:$0xff]
        %v641 = vld [vmem:[#allocation2 + $0xd1] sm:$0xff]
        %v642 = vld [vmem:[#allocation2 + $0xe9] sm:$0xff]
        %v643 = vld [vmem:[#allocation2 + $0xf1] sm:$0xff]
        %v644 = vld [vmem:[#allocation2 + $0x109] sm:$0xff]
        %v645 = vld [vmem:[#allocation2 + $0x111] sm:$0xff]
        %v646 = vld [vmem:[#allocation2 + $0x129] sm:$0xff]
        %v647 = vld [vmem:[#allocation2 + $0x131] sm:$0xff]
        %v648 = vld [vmem:[#allocation2 + $0x149] sm:$0xff]
        %v649 = vld [vmem:[#allocation2 + $0x151] sm:$0xff]
        %v650 = vld [vmem:[#allocation2 + $0x169] sm:$0xff]
        %v651 = vld [vmem:[#allocation2 + $0x171] sm:$0xff]
        %v652 = vld [vmem:[#allocation2 + $0x189] sm:$0xff]
        %v653 = vld [vmem:[#allocation2 + $0x191] sm:$0xff]
        %v654 = vld [vmem:[#allocation2 + $0x1a9] sm:$0xff]
        %v655 = vld [vmem:[#allocation2 + $0x1b1] sm:$0xff]
        %v656 = vld [vmem:[#allocation2 + $0x1c9] sm:$0xff]
        %v657 = vld [vmem:[#allocation2 + $0x1d1] sm:$0xff]
        %v658 = vld [vmem:[#allocation2 + $0x1e9] sm:$0xff]
        %v659 = vld [vmem:[#allocation2 + $0x1f1] sm:$0xff]
        %v660 = vld [vmem:[#allocation2 + $0x209] sm:$0xff]
        %v661 = vld [vmem:[#allocation2 + $0x211] sm:$0xff]
        %v662 = vld [vmem:[#allocation2 + $0x229] sm:$0xff]
        %v663 = vld [vmem:[#allocation2 + $0x231] sm:$0xff]
        %v664 = vlaneseq
        %v665 = vshrl.u32 %v664, 7
        %v666 = vsub.s32 0, %v665
        %v667 = vrot.slane %v536, %v666
        %v668 = vmul.f32 %v556, %v667
        %v669 = vmul.f32 %v557, %v667
        %v670 = vmul.f32 %v558, %v667
        %v671 = vmul.f32 %v559, %v667
        %v672 = vmul.f32 %v560, %v667
        %v673 = vmul.f32 %v561, %v667
        %v674 = vmul.f32 %v562, %v667
        %v675 = vmul.f32 %v563, %v667
        %v676 = vmul.f32 %v564, %v667
        %v677 = vmul.f32 %v565, %v667
        %v678 = vmul.f32 %v566, %v667
        %v679 = vmul.f32 %v567, %v667
        %v680 = vmul.f32 %v568, %v667
        %v681 = vmul.f32 %v569, %v667
        %v682 = vmul.f32 %v570, %v667
        %v683 = vmul.f32 %v571, %v667
        %v684 = vmul.f32 %v572, %v667
        %v685 = vmul.f32 %v573, %v667
        %v686 = vmul.f32 %v574, %v667
        %v687 = vmul.f32 %v575, %v667
        %v688 = vmul.f32 %v576, %v667
        %v689 = vmul.f32 %v577, %v667
        %v690 = vmul.f32 %v578, %v667
        %v691 = vmul.f32 %v579, %v667
        %v692 = vmul.f32 %v580, %v667
        %v693 = vmul.f32 %v581, %v667
        %v694 = vmul.f32 %v582, %v667
        %v695 = vmul.f32 %v583, %v667
        %v696 = vmul.f32 %v584, %v667
        %v697 = vmul.f32 %v585, %v667
        %v698 = vmul.f32 %v586, %v667
        %v699 = vmul.f32 %v587, %v667
        %v700 = vadd.f32 %v668, 0.0
        %v701 = vadd.f32 %v669, 0.0
        %v702 = vadd.f32 %v670, 0.0
        %v703 = vadd.f32 %v671, 0.0
        %v704 = vadd.f32 %v672, 0.0
        %v705 = vadd.f32 %v673, 0.0
        %v706 = vadd.f32 %v674, 0.0
        %v707 = vadd.f32 %v675, 0.0
        %v708 = vadd.f32 %v676, 0.0
        %v709 = vadd.f32 %v677, 0.0
        %v710 = vadd.f32 %v678, 0.0
        %v711 = vadd.f32 %v679, 0.0
        %v712 = vadd.f32 %v680, 0.0
        %v713 = vadd.f32 %v681, 0.0
        %v714 = vadd.f32 %v682, 0.0
        %v715 = vadd.f32 %v683, 0.0
        %v716 = vadd.f32 %v684, 0.0
        %v717 = vadd.f32 %v685, 0.0
        %v718 = vadd.f32 %v686, 0.0
        %v719 = vadd.f32 %v687, 0.0
        %v720 = vadd.f32 %v688, 0.0
        %v721 = vadd.f32 %v689, 0.0
        %v722 = vadd.f32 %v690, 0.0
        %v723 = vadd.f32 %v691, 0.0
        %v724 = vadd.f32 %v692, 0.0
        %v725 = vadd.f32 %v693, 0.0
        %v726 = vadd.f32 %v694, 0.0
        %v727 = vadd.f32 %v695, 0.0
        %v728 = vadd.f32 %v696, 0.0
        %v729 = vadd.f32 %v697, 0.0
        %v730 = vadd.f32 %v698, 0.0
        %v731 = vadd.f32 %v699, 0.0
        %v732 = vlaneseq
        %v733 = vshrl.u32 %v732, 7
        %v734 = vsub.s32 1, %v733
        %v735 = vrot.slane %v536, %v734
        %v736 = vmul.f32 %v592, %v735
        %v737 = vmul.f32 %v593, %v735
        %v738 = vmul.f32 %v594, %v735
        %v739 = vmul.f32 %v595, %v735
        %v740 = vmul.f32 %v596, %v735
        %v741 = vmul.f32 %v597, %v735
        %v742 = vmul.f32 %v598, %v735
        %v743 = vmul.f32 %v599, %v735
        %v744 = vmul.f32 %v600, %v735
        %v745 = vmul.f32 %v601, %v735
        %v746 = vmul.f32 %v602, %v735
        %v747 = vmul.f32 %v603, %v735
        %v748 = vmul.f32 %v604, %v735
        %v749 = vmul.f32 %v605, %v735
        %v750 = vmul.f32 %v606, %v735
        %v751 = vmul.f32 %v607, %v735
        %v752 = vmul.f32 %v608, %v735
        %v753 = vmul.f32 %v609, %v735
        %v754 = vmul.f32 %v610, %v735
        %v755 = vmul.f32 %v611, %v735
        %v756 = vmul.f32 %v612, %v735
        %v757 = vmul.f32 %v613, %v735
        %v758 = vmul.f32 %v614, %v735
        %v759 = vmul.f32 %v615, %v735
        %v760 = vmul.f32 %v616, %v735
        %v761 = vmul.f32 %v617, %v735
        %v762 = vmul.f32 %v618, %v735
        %v763 = vmul.f32 %v619, %v735
        %v764 = vmul.f32 %v620, %v735
        %v765 = vmul.f32 %v621, %v735
        %v766 = vmul.f32 %v622, %v735
        %v767 = vmul.f32 %v623, %v735
        %v768 = vadd.f32 %v700, %v736
        %v769 = vadd.f32 %v701, %v737
        %v770 = vadd.f32 %v702, %v738
        %v771 = vadd.f32 %v703, %v739
        %v772 = vadd.f32 %v704, %v740
        %v773 = vadd.f32 %v705, %v741
        %v774 = vadd.f32 %v706, %v742
        %v775 = vadd.f32 %v707, %v743
        %v776 = vadd.f32 %v708, %v744
        %v777 = vadd.f32 %v709, %v745
        %v778 = vadd.f32 %v710, %v746
        %v779 = vadd.f32 %v711, %v747
        %v780 = vadd.f32 %v712, %v748
        %v781 = vadd.f32 %v713, %v749
        %v782 = vadd.f32 %v714, %v750
        %v783 = vadd.f32 %v715, %v751
        %v784 = vadd.f32 %v716, %v752
        %v785 = vadd.f32 %v717, %v753
        %v786 = vadd.f32 %v718, %v754
        %v787 = vadd.f32 %v719, %v755
        %v788 = vadd.f32 %v720, %v756
        %v789 = vadd.f32 %v721, %v757
        %v790 = vadd.f32 %v722, %v758
        %v791 = vadd.f32 %v723, %v759
        %v792 = vadd.f32 %v724, %v760
        %v793 = vadd.f32 %v725, %v761
        %v794 = vadd.f32 %v726, %v762
        %v795 = vadd.f32 %v727, %v763
        %v796 = vadd.f32 %v728, %v764
        %v797 = vadd.f32 %v729, %v765
        %v798 = vadd.f32 %v730, %v766
        %v799 = vadd.f32 %v731, %v767
        %v800 = vlaneseq
        %v801 = vshrl.u32 %v800, 7
        %v802 = vsub.s32 2, %v801
        %v803 = vrot.slane %v536, %v802
        %v804 = vmul.f32 %v628, %v803
        %v805 = vmul.f32 %v629, %v803
        %v806 = vmul.f32 %v630, %v803
        %v807 = vmul.f32 %v631, %v803
        %v808 = vmul.f32 %v632, %v803
        %v809 = vmul.f32 %v633, %v803
        %v810 = vmul.f32 %v634, %v803
        %v811 = vmul.f32 %v635, %v803
        %v812 = vmul.f32 %v636, %v803
        %v813 = vmul.f32 %v637, %v803
        %v814 = vmul.f32 %v638, %v803
        %v815 = vmul.f32 %v639, %v803
        %v816 = vmul.f32 %v640, %v803
        %v817 = vmul.f32 %v641, %v803
        %v818 = vmul.f32 %v642, %v803
        %v819 = vmul.f32 %v643, %v803
        %v820 = vmul.f32 %v644, %v803
        %v821 = vmul.f32 %v645, %v803
        %v822 = vmul.f32 %v646, %v803
        %v823 = vmul.f32 %v647, %v803
        %v824 = vmul.f32 %v648, %v803
        %v825 = vmul.f32 %v649, %v803
        %v826 = vmul.f32 %v650, %v803
        %v827 = vmul.f32 %v651, %v803
        %v828 = vmul.f32 %v652, %v803
        %v829 = vmul.f32 %v653, %v803
        %v830 = vmul.f32 %v654, %v803
        %v831 = vmul.f32 %v655, %v803
        %v832 = vmul.f32 %v656, %v803
        %v833 = vmul.f32 %v657, %v803
        %v834 = vmul.f32 %v658, %v803
        %v835 = vmul.f32 %v659, %v803
        %v836 = vadd.f32 %v768, %v804
        %v837 = vadd.f32 %v769, %v805
        %v838 = vadd.f32 %v770, %v806
        %v839 = vadd.f32 %v771, %v807
        %v840 = vadd.f32 %v772, %v808
        %v841 = vadd.f32 %v773, %v809
        %v842 = vadd.f32 %v774, %v810
        %v843 = vadd.f32 %v775, %v811
        %v844 = vadd.f32 %v776, %v812
        %v845 = vadd.f32 %v777, %v813
        %v846 = vadd.f32 %v778, %v814
        %v847 = vadd.f32 %v779, %v815
        %v848 = vadd.f32 %v780, %v816
        %v849 = vadd.f32 %v781, %v817
        %v850 = vadd.f32 %v782, %v818
        %v851 = vadd.f32 %v783, %v819
        %v852 = vadd.f32 %v784, %v820
        %v853 = vadd.f32 %v785, %v821
        %v854 = vadd.f32 %v786, %v822
        %v855 = vadd.f32 %v787, %v823
        %v856 = vadd.f32 %v788, %v824
        %v857 = vadd.f32 %v789, %v825
        %v858 = vadd.f32 %v790, %v826
        %v859 = vadd.f32 %v791, %v827
        %v860 = vadd.f32 %v792, %v828
        %v861 = vadd.f32 %v793, %v829
        %v862 = vadd.f32 %v794, %v830
        %v863 = vadd.f32 %v795, %v831
        %v864 = vadd.f32 %v796, %v832
        %v865 = vadd.f32 %v797, %v833
        %v866 = vadd.f32 %v798, %v834
        %v867 = vadd.f32 %v799, %v835
        %v868 = vlaneseq
        %v869 = vshrl.u32 %v868, 7
        %v870 = vsub.s32 0, %v869
        %v871 = vrot.slane %v537, %v870
        %v872 = vmul.f32 %v558, %v871
        %v873 = vmul.f32 %v559, %v871
        %v874 = vmul.f32 %v560, %v871
        %v875 = vmul.f32 %v561, %v871
        %v876 = vmul.f32 %v562, %v871
        %v877 = vmul.f32 %v563, %v871
        %v878 = vmul.f32 %v564, %v871
        %v879 = vmul.f32 %v565, %v871
        %v880 = vmul.f32 %v566, %v871
        %v881 = vmul.f32 %v567, %v871
        %v882 = vmul.f32 %v568, %v871
        %v883 = vmul.f32 %v569, %v871
        %v884 = vmul.f32 %v570, %v871
        %v885 = vmul.f32 %v571, %v871
        %v886 = vmul.f32 %v572, %v871
        %v887 = vmul.f32 %v573, %v871
        %v888 = vmul.f32 %v574, %v871
        %v889 = vmul.f32 %v575, %v871
        %v890 = vmul.f32 %v576, %v871
        %v891 = vmul.f32 %v577, %v871
        %v892 = vmul.f32 %v578, %v871
        %v893 = vmul.f32 %v579, %v871
        %v894 = vmul.f32 %v580, %v871
        %v895 = vmul.f32 %v581, %v871
        %v896 = vmul.f32 %v582, %v871
        %v897 = vmul.f32 %v583, %v871
        %v898 = vmul.f32 %v584, %v871
        %v899 = vmul.f32 %v585, %v871
        %v900 = vmul.f32 %v586, %v871
        %v901 = vmul.f32 %v587, %v871
        %v902 = vmul.f32 %v588, %v871
        %v903 = vmul.f32 %v589, %v871
        %v904 = vadd.f32 %v836, %v872
        %v905 = vadd.f32 %v837, %v873
        %v906 = vadd.f32 %v838, %v874
        %v907 = vadd.f32 %v839, %v875
        %v908 = vadd.f32 %v840, %v876
        %v909 = vadd.f32 %v841, %v877
        %v910 = vadd.f32 %v842, %v878
        %v911 = vadd.f32 %v843, %v879
        %v912 = vadd.f32 %v844, %v880
        %v913 = vadd.f32 %v845, %v881
        %v914 = vadd.f32 %v846, %v882
        %v915 = vadd.f32 %v847, %v883
        %v916 = vadd.f32 %v848, %v884
        %v917 = vadd.f32 %v849, %v885
        %v918 = vadd.f32 %v850, %v886
        %v919 = vadd.f32 %v851, %v887
        %v920 = vadd.f32 %v852, %v888
        %v921 = vadd.f32 %v853, %v889
        %v922 = vadd.f32 %v854, %v890
        %v923 = vadd.f32 %v855, %v891
        %v924 = vadd.f32 %v856, %v892
        %v925 = vadd.f32 %v857, %v893
        %v926 = vadd.f32 %v858, %v894
        %v927 = vadd.f32 %v859, %v895
        %v928 = vadd.f32 %v860, %v896
        %v929 = vadd.f32 %v861, %v897
        %v930 = vadd.f32 %v862, %v898
        %v931 = vadd.f32 %v863, %v899
        %v932 = vadd.f32 %v864, %v900
        %v933 = vadd.f32 %v865, %v901
        %v934 = vadd.f32 %v866, %v902
        %v935 = vadd.f32 %v867, %v903
        %v936 = vlaneseq
        %v937 = vshrl.u32 %v936, 7
        %v938 = vsub.s32 1, %v937
        %v939 = vrot.slane %v537, %v938
        %v940 = vmul.f32 %v594, %v939
        %v941 = vmul.f32 %v595, %v939
        %v942 = vmul.f32 %v596, %v939
        %v943 = vmul.f32 %v597, %v939
        %v944 = vmul.f32 %v598, %v939
        %v945 = vmul.f32 %v599, %v939
        %v946 = vmul.f32 %v600, %v939
        %v947 = vmul.f32 %v601, %v939
        %v948 = vmul.f32 %v602, %v939
        %v949 = vmul.f32 %v603, %v939
        %v950 = vmul.f32 %v604, %v939
        %v951 = vmul.f32 %v605, %v939
        %v952 = vmul.f32 %v606, %v939
        %v953 = vmul.f32 %v607, %v939
        %v954 = vmul.f32 %v608, %v939
        %v955 = vmul.f32 %v609, %v939
        %v956 = vmul.f32 %v610, %v939
        %v957 = vmul.f32 %v611, %v939
        %v958 = vmul.f32 %v612, %v939
        %v959 = vmul.f32 %v613, %v939
        %v960 = vmul.f32 %v614, %v939
        %v961 = vmul.f32 %v615, %v939
        %v962 = vmul.f32 %v616, %v939
        %v963 = vmul.f32 %v617, %v939
        %v964 = vmul.f32 %v618, %v939
        %v965 = vmul.f32 %v619, %v939
        %v966 = vmul.f32 %v620, %v939
        %v967 = vmul.f32 %v621, %v939
        %v968 = vmul.f32 %v622, %v939
        %v969 = vmul.f32 %v623, %v939
        %v970 = vmul.f32 %v624, %v939
        %v971 = vmul.f32 %v625, %v939
        %v972 = vadd.f32 %v904, %v940
        %v973 = vadd.f32 %v905, %v941
        %v974 = vadd.f32 %v906, %v942
        %v975 = vadd.f32 %v907, %v943
        %v976 = vadd.f32 %v908, %v944
        %v977 = vadd.f32 %v909, %v945
        %v978 = vadd.f32 %v910, %v946
        %v979 = vadd.f32 %v911, %v947
        %v980 = vadd.f32 %v912, %v948
        %v981 = vadd.f32 %v913, %v949
        %v982 = vadd.f32 %v914, %v950
        %v983 = vadd.f32 %v915, %v951
        %v984 = vadd.f32 %v916, %v952
        %v985 = vadd.f32 %v917, %v953
        %v986 = vadd.f32 %v918, %v954
        %v987 = vadd.f32 %v919, %v955
        %v988 = vadd.f32 %v920, %v956
        %v989 = vadd.f32 %v921, %v957
        %v990 = vadd.f32 %v922, %v958
        %v991 = vadd.f32 %v923, %v959
        %v992 = vadd.f32 %v924, %v960
        %v993 = vadd.f32 %v925, %v961
        %v994 = vadd.f32 %v926, %v962
        %v995 = vadd.f32 %v927, %v963
        %v996 = vadd.f32 %v928, %v964
        %v997 = vadd.f32 %v929, %v965
        %v998 = vadd.f32 %v930, %v966
        %v999 = vadd.f32 %v931, %v967
        %v1000 = vadd.f32 %v932, %v968
        %v1001 = vadd.f32 %v933, %v969
        %v1002 = vadd.f32 %v934, %v970
        %v1003 = vadd.f32 %v935, %v971
        %v1004 = vlaneseq
        %v1005 = vshrl.u32 %v1004, 7
        %v1006 = vsub.s32 2, %v1005
        %v1007 = vrot.slane %v537, %v1006
        %v1008 = vmul.f32 %v630, %v1007
        %v1009 = vmul.f32 %v631, %v1007
        %v1010 = vmul.f32 %v632, %v1007
        %v1011 = vmul.f32 %v633, %v1007
        %v1012 = vmul.f32 %v634, %v1007
        %v1013 = vmul.f32 %v635, %v1007
        %v1014 = vmul.f32 %v636, %v1007
        %v1015 = vmul.f32 %v637, %v1007
        %v1016 = vmul.f32 %v638, %v1007
        %v1017 = vmul.f32 %v639, %v1007
        %v1018 = vmul.f32 %v640, %v1007
        %v1019 = vmul.f32 %v641, %v1007
        %v1020 = vmul.f32 %v642, %v1007
        %v1021 = vmul.f32 %v643, %v1007
        %v1022 = vmul.f32 %v644, %v1007
        %v1023 = vmul.f32 %v645, %v1007
        %v1024 = vmul.f32 %v646, %v1007
        %v1025 = vmul.f32 %v647, %v1007
        %v1026 = vmul.f32 %v648, %v1007
        %v1027 = vmul.f32 %v649, %v1007
        %v1028 = vmul.f32 %v650, %v1007
        %v1029 = vmul.f32 %v651, %v1007
        %v1030 = vmul.f32 %v652, %v1007
        %v1031 = vmul.f32 %v653, %v1007
        %v1032 = vmul.f32 %v654, %v1007
        %v1033 = vmul.f32 %v655, %v1007
        %v1034 = vmul.f32 %v656, %v1007
        %v1035 = vmul.f32 %v657, %v1007
        %v1036 = vmul.f32 %v658, %v1007
        %v1037 = vmul.f32 %v659, %v1007
        %v1038 = vmul.f32 %v660, %v1007
        %v1039 = vmul.f32 %v661, %v1007
        %v1040 = vadd.f32 %v972, %v1008
        %v1041 = vadd.f32 %v973, %v1009
        %v1042 = vadd.f32 %v974, %v1010
        %v1043 = vadd.f32 %v975, %v1011
        %v1044 = vadd.f32 %v976, %v1012
        %v1045 = vadd.f32 %v977, %v1013
        %v1046 = vadd.f32 %v978, %v1014
        %v1047 = vadd.f32 %v979, %v1015
        %v1048 = vadd.f32 %v980, %v1016
        %v1049 = vadd.f32 %v981, %v1017
        %v1050 = vadd.f32 %v982, %v1018
        %v1051 = vadd.f32 %v983, %v1019
        %v1052 = vadd.f32 %v984, %v1020
        %v1053 = vadd.f32 %v985, %v1021
        %v1054 = vadd.f32 %v986, %v1022
        %v1055 = vadd.f32 %v987, %v1023
        %v1056 = vadd.f32 %v988, %v1024
        %v1057 = vadd.f32 %v989, %v1025
        %v1058 = vadd.f32 %v990, %v1026
        %v1059 = vadd.f32 %v991, %v1027
        %v1060 = vadd.f32 %v992, %v1028
        %v1061 = vadd.f32 %v993, %v1029
        %v1062 = vadd.f32 %v994, %v1030
        %v1063 = vadd.f32 %v995, %v1031
        %v1064 = vadd.f32 %v996, %v1032
        %v1065 = vadd.f32 %v997, %v1033
        %v1066 = vadd.f32 %v998, %v1034
        %v1067 = vadd.f32 %v999, %v1035
        %v1068 = vadd.f32 %v1000, %v1036
        %v1069 = vadd.f32 %v1001, %v1037
        %v1070 = vadd.f32 %v1002, %v1038
        %v1071 = vadd.f32 %v1003, %v1039
        %v1072 = vlaneseq
        %v1073 = vshrl.u32 %v1072, 7
        %v1074 = vsub.s32 0, %v1073
        %v1075 = vrot.slane %v538, %v1074
        %v1076 = vmul.f32 %v560, %v1075
        %v1077 = vmul.f32 %v561, %v1075
        %v1078 = vmul.f32 %v562, %v1075
        %v1079 = vmul.f32 %v563, %v1075
        %v1080 = vmul.f32 %v564, %v1075
        %v1081 = vmul.f32 %v565, %v1075
        %v1082 = vmul.f32 %v566, %v1075
        %v1083 = vmul.f32 %v567, %v1075
        %v1084 = vmul.f32 %v568, %v1075
        %v1085 = vmul.f32 %v569, %v1075
        %v1086 = vmul.f32 %v570, %v1075
        %v1087 = vmul.f32 %v571, %v1075
        %v1088 = vmul.f32 %v572, %v1075
        %v1089 = vmul.f32 %v573, %v1075
        %v1090 = vmul.f32 %v574, %v1075
        %v1091 = vmul.f32 %v575, %v1075
        %v1092 = vmul.f32 %v576, %v1075
        %v1093 = vmul.f32 %v577, %v1075
        %v1094 = vmul.f32 %v578, %v1075
        %v1095 = vmul.f32 %v579, %v1075
        %v1096 = vmul.f32 %v580, %v1075
        %v1097 = vmul.f32 %v581, %v1075
        %v1098 = vmul.f32 %v582, %v1075
        %v1099 = vmul.f32 %v583, %v1075
        %v1100 = vmul.f32 %v584, %v1075
        %v1101 = vmul.f32 %v585, %v1075
        %v1102 = vmul.f32 %v586, %v1075
        %v1103 = vmul.f32 %v587, %v1075
        %v1104 = vmul.f32 %v588, %v1075
        %v1105 = vmul.f32 %v589, %v1075
        %v1106 = vmul.f32 %v590, %v1075
        %v1107 = vmul.f32 %v591, %v1075
        %v1108 = vadd.f32 %v1040, %v1076
        %v1109 = vadd.f32 %v1041, %v1077
        %v1110 = vadd.f32 %v1042, %v1078
        %v1111 = vadd.f32 %v1043, %v1079
        %v1112 = vadd.f32 %v1044, %v1080
        %v1113 = vadd.f32 %v1045, %v1081
        %v1114 = vadd.f32 %v1046, %v1082
        %v1115 = vadd.f32 %v1047, %v1083
        %v1116 = vadd.f32 %v1048, %v1084
        %v1117 = vadd.f32 %v1049, %v1085
        %v1118 = vadd.f32 %v1050, %v1086
        %v1119 = vadd.f32 %v1051, %v1087
        %v1120 = vadd.f32 %v1052, %v1088
        %v1121 = vadd.f32 %v1053, %v1089
        %v1122 = vadd.f32 %v1054, %v1090
        %v1123 = vadd.f32 %v1055, %v1091
        %v1124 = vadd.f32 %v1056, %v1092
        %v1125 = vadd.f32 %v1057, %v1093
        %v1126 = vadd.f32 %v1058, %v1094
        %v1127 = vadd.f32 %v1059, %v1095
        %v1128 = vadd.f32 %v1060, %v1096
        %v1129 = vadd.f32 %v1061, %v1097
        %v1130 = vadd.f32 %v1062, %v1098
        %v1131 = vadd.f32 %v1063, %v1099
        %v1132 = vadd.f32 %v1064, %v1100
        %v1133 = vadd.f32 %v1065, %v1101
        %v1134 = vadd.f32 %v1066, %v1102
        %v1135 = vadd.f32 %v1067, %v1103
        %v1136 = vadd.f32 %v1068, %v1104
        %v1137 = vadd.f32 %v1069, %v1105
        %v1138 = vadd.f32 %v1070, %v1106
        %v1139 = vadd.f32 %v1071, %v1107
        %v1140 = vlaneseq
        %v1141 = vshrl.u32 %v1140, 7
        %v1142 = vsub.s32 1, %v1141
        %v1143 = vrot.slane %v538, %v1142
        %v1144 = vmul.f32 %v596, %v1143
        %v1145 = vmul.f32 %v597, %v1143
        %v1146 = vmul.f32 %v598, %v1143
        %v1147 = vmul.f32 %v599, %v1143
        %v1148 = vmul.f32 %v600, %v1143
        %v1149 = vmul.f32 %v601, %v1143
        %v1150 = vmul.f32 %v602, %v1143
        %v1151 = vmul.f32 %v603, %v1143
        %v1152 = vmul.f32 %v604, %v1143
        %v1153 = vmul.f32 %v605, %v1143
        %v1154 = vmul.f32 %v606, %v1143
        %v1155 = vmul.f32 %v607, %v1143
        %v1156 = vmul.f32 %v608, %v1143
        %v1157 = vmul.f32 %v609, %v1143
        %v1158 = vmul.f32 %v610, %v1143
        %v1159 = vmul.f32 %v611, %v1143
        %v1160 = vmul.f32 %v612, %v1143
        %v1161 = vmul.f32 %v613, %v1143
        %v1162 = vmul.f32 %v614, %v1143
        %v1163 = vmul.f32 %v615, %v1143
        %v1164 = vmul.f32 %v616, %v1143
        %v1165 = vmul.f32 %v617, %v1143
        %v1166 = vmul.f32 %v618, %v1143
        %v1167 = vmul.f32 %v619, %v1143
        %v1168 = vmul.f32 %v620, %v1143
        %v1169 = vmul.f32 %v621, %v1143
        %v1170 = vmul.f32 %v622, %v1143
        %v1171 = vmul.f32 %v623, %v1143
        %v1172 = vmul.f32 %v624, %v1143
        %v1173 = vmul.f32 %v625, %v1143
        %v1174 = vmul.f32 %v626, %v1143
        %v1175 = vmul.f32 %v627, %v1143
        %v1176 = vadd.f32 %v1108, %v1144
        %v1177 = vadd.f32 %v1109, %v1145
        %v1178 = vadd.f32 %v1110, %v1146
        %v1179 = vadd.f32 %v1111, %v1147
        %v1180 = vadd.f32 %v1112, %v1148
        %v1181 = vadd.f32 %v1113, %v1149
        %v1182 = vadd.f32 %v1114, %v1150
        %v1183 = vadd.f32 %v1115, %v1151
        %v1184 = vadd.f32 %v1116, %v1152
        %v1185 = vadd.f32 %v1117, %v1153
        %v1186 = vadd.f32 %v1118, %v1154
        %v1187 = vadd.f32 %v1119, %v1155
        %v1188 = vadd.f32 %v1120, %v1156
        %v1189 = vadd.f32 %v1121, %v1157
        %v1190 = vadd.f32 %v1122, %v1158
        %v1191 = vadd.f32 %v1123, %v1159
        %v1192 = vadd.f32 %v1124, %v1160
        %v1193 = vadd.f32 %v1125, %v1161
        %v1194 = vadd.f32 %v1126, %v1162
        %v1195 = vadd.f32 %v1127, %v1163
        %v1196 = vadd.f32 %v1128, %v1164
        %v1197 = vadd.f32 %v1129, %v1165
        %v1198 = vadd.f32 %v1130, %v1166
        %v1199 = vadd.f32 %v1131, %v1167
        %v1200 = vadd.f32 %v1132, %v1168
        %v1201 = vadd.f32 %v1133, %v1169
        %v1202 = vadd.f32 %v1134, %v1170
        %v1203 = vadd.f32 %v1135, %v1171
        %v1204 = vadd.f32 %v1136, %v1172
        %v1205 = vadd.f32 %v1137, %v1173
        %v1206 = vadd.f32 %v1138, %v1174
        %v1207 = vadd.f32 %v1139, %v1175
        %v1208 = vlaneseq
        %v1209 = vshrl.u32 %v1208, 7
        %v1210 = vsub.s32 2, %v1209
        %v1211 = vrot.slane %v538, %v1210
        %v1212 = vmul.f32 %v632, %v1211
        %v1213 = vmul.f32 %v633, %v1211
        %v1214 = vmul.f32 %v634, %v1211
        %v1215 = vmul.f32 %v635, %v1211
        %v1216 = vmul.f32 %v636, %v1211
        %v1217 = vmul.f32 %v637, %v1211
        %v1218 = vmul.f32 %v638, %v1211
        %v1219 = vmul.f32 %v639, %v1211
        %v1220 = vmul.f32 %v640, %v1211
        %v1221 = vmul.f32 %v641, %v1211
        %v1222 = vmul.f32 %v642, %v1211
        %v1223 = vmul.f32 %v643, %v1211
        %v1224 = vmul.f32 %v644, %v1211
        %v1225 = vmul.f32 %v645, %v1211
        %v1226 = vmul.f32 %v646, %v1211
        %v1227 = vmul.f32 %v647, %v1211
        %v1228 = vmul.f32 %v648, %v1211
        %v1229 = vmul.f32 %v649, %v1211
        %v1230 = vmul.f32 %v650, %v1211
        %v1231 = vmul.f32 %v651, %v1211
        %v1232 = vmul.f32 %v652, %v1211
        %v1233 = vmul.f32 %v653, %v1211
        %v1234 = vmul.f32 %v654, %v1211
        %v1235 = vmul.f32 %v655, %v1211
        %v1236 = vmul.f32 %v656, %v1211
        %v1237 = vmul.f32 %v657, %v1211
        %v1238 = vmul.f32 %v658, %v1211
        %v1239 = vmul.f32 %v659, %v1211
        %v1240 = vmul.f32 %v660, %v1211
        %v1241 = vmul.f32 %v661, %v1211
        %v1242 = vmul.f32 %v662, %v1211
        %v1243 = vmul.f32 %v663, %v1211
        %v1244 = vadd.f32 %v1176, %v1212
        %v1245 = vadd.f32 %v1177, %v1213
        %v1246 = vadd.f32 %v1178, %v1214
        %v1247 = vadd.f32 %v1179, %v1215
        %v1248 = vadd.f32 %v1180, %v1216
        %v1249 = vadd.f32 %v1181, %v1217
        %v1250 = vadd.f32 %v1182, %v1218
        %v1251 = vadd.f32 %v1183, %v1219
        %v1252 = vadd.f32 %v1184, %v1220
        %v1253 = vadd.f32 %v1185, %v1221
        %v1254 = vadd.f32 %v1186, %v1222
        %v1255 = vadd.f32 %v1187, %v1223
        %v1256 = vadd.f32 %v1188, %v1224
        %v1257 = vadd.f32 %v1189, %v1225
        %v1258 = vadd.f32 %v1190, %v1226
        %v1259 = vadd.f32 %v1191, %v1227
        %v1260 = vadd.f32 %v1192, %v1228
        %v1261 = vadd.f32 %v1193, %v1229
        %v1262 = vadd.f32 %v1194, %v1230
        %v1263 = vadd.f32 %v1195, %v1231
        %v1264 = vadd.f32 %v1196, %v1232
        %v1265 = vadd.f32 %v1197, %v1233
        %v1266 = vadd.f32 %v1198, %v1234
        %v1267 = vadd.f32 %v1199, %v1235
        %v1268 = vadd.f32 %v1200, %v1236
        %v1269 = vadd.f32 %v1201, %v1237
        %v1270 = vadd.f32 %v1202, %v1238
        %v1271 = vadd.f32 %v1203, %v1239
        %v1272 = vadd.f32 %v1204, %v1240
        %v1273 = vadd.f32 %v1205, %v1241
        %v1274 = vadd.f32 %v1206, %v1242
        %v1275 = vadd.f32 %v1207, %v1243
        %v1276 = vpack.c.bf16 %v1245, %v1244
        %v1277 = vpack.c.bf16 %v1247, %v1246
        %v1278 = vpack.c.bf16 %v1249, %v1248
        %v1279 = vpack.c.bf16 %v1251, %v1250
        %v1280 = vpack.c.bf16 %v1253, %v1252
        %v1281 = vpack.c.bf16 %v1255, %v1254
        %v1282 = vpack.c.bf16 %v1257, %v1256
        %v1283 = vpack.c.bf16 %v1259, %v1258
        %v1284 = vpack.c.bf16 %v1261, %v1260
        %v1285 = vpack.c.bf16 %v1263, %v1262
        %v1286 = vpack.c.bf16 %v1265, %v1264
        %v1287 = vpack.c.bf16 %v1267, %v1266
        %v1288 = vpack.c.bf16 %v1269, %v1268
        %v1289 = vpack.c.bf16 %v1271, %v1270
        %v1290 = vpack.c.bf16 %v1273, %v1272
        %v1291 = vpack.c.bf16 %v1275, %v1274
        %v1293 = vlaneseq
        %v1294 = vshrl.u32 %v1293, 7
        %v1295 = vsub.s32 0, %v1294
        %v1296 = vrot.slane %v555, %v1295
        %v1314 = vunpack.c.l.b16 %v539
        %v1315 = vunpack.c.l.b16 %v540
        %v1316 = vunpack.c.l.b16 %v541
        %v1317 = vunpack.c.l.b16 %v542
        %v1318 = vunpack.c.l.b16 %v543
        %v1319 = vunpack.c.l.b16 %v544
        %v1320 = vunpack.c.l.b16 %v545
        %v1321 = vunpack.c.l.b16 %v546
        %v1322 = vunpack.c.l.b16 %v547
        %v1323 = vunpack.c.l.b16 %v548
        %v1324 = vunpack.c.l.b16 %v549
        %v1325 = vunpack.c.l.b16 %v550
        %v1326 = vunpack.c.l.b16 %v551
        %v1327 = vunpack.c.l.b16 %v552
        %v1328 = vunpack.c.l.b16 %v553
        %v1329 = vunpack.c.l.b16 %v554
        %v1330 = vpack.c.b16 %v1315, %v1314
        %v1331 = vpack.c.b16 %v1317, %v1316
        %v1332 = vpack.c.b16 %v1319, %v1318
        %v1333 = vpack.c.b16 %v1321, %v1320
        %v1334 = vpack.c.b16 %v1323, %v1322
        %v1335 = vpack.c.b16 %v1325, %v1324
        %v1336 = vpack.c.b16 %v1327, %v1326
        %v1337 = vpack.c.b16 %v1329, %v1328
        %1346 = vmatprep.subr.bf16.mxu0 0
        %1347 = vmatpush1.bf16.msra.mxu0 %v1330
        %1348 = vmatprep.subr.bf16.mxu0 0
        %1349 = vmatpush1.bf16.msra.mxu0 %v1331
        %1350 = vmatprep.subr.bf16.mxu0 0
        %1351 = vmatpush1.bf16.msra.mxu0 %v1332
        %1352 = vmatprep.subr.bf16.mxu0 0
        %1353 = vmatpush1.bf16.msra.mxu0 %v1333
        %1354 = vmatprep.subr.bf16.mxu0 0
        %1355 = vmatpush1.bf16.msra.mxu0 %v1334
        %1356 = vmatprep.subr.bf16.mxu0 0
        %1357 = vmatpush1.bf16.msra.mxu0 %v1335
        %1358 = vmatprep.subr.bf16.mxu0 0
        %1359 = vmatpush1.bf16.msra.mxu0 %v1336
        %1360 = vmatprep.subr.bf16.mxu0 0
        %1361 = vmatpush1.bf16.msra.mxu0 %v1337
        %1362 = vmatprep.subr.bf16.mxu0 0
        %1363 = vmatpush1.bf16.msra.mxu0 0
        %1364 = vmatprep.subr.bf16.mxu0 0
        %1365 = vmatpush1.bf16.msra.mxu0 0
        %1366 = vmatprep.subr.bf16.mxu0 0
        %1367 = vmatpush1.bf16.msra.mxu0 0
        %1368 = vmatprep.subr.bf16.mxu0 0
        %1369 = vmatpush1.bf16.msra.mxu0 0
        %1370 = vmatprep.subr.bf16.mxu0 0
        %1371 = vmatpush1.bf16.msra.mxu0 0
        %1372 = vmatprep.subr.bf16.mxu0 0
        %1373 = vmatpush1.bf16.msra.mxu0 0
        %1374 = vmatprep.subr.bf16.mxu0 0
        %1375 = vmatpush1.bf16.msra.mxu0 0
        %1376 = vmatprep.subr.bf16.mxu0 0
        %1377 = vmatpush1.bf16.msra.mxu0 0
        %1378 = vmatprep.mubr.bf16.mxu0 0
        %1379 = vmatmul.mubr.bf16.gmra.mrb[0].mxu0 %v1276
        %v1380 = vpop.f32.mrb[0].mxu0
        %v1381 = vadd.f32 %v1296, %v1380
        %v1382 = vpop.f32.mrb[0].mxu0
        %v1383 = vpop.f32.mrb[0].mxu0
        %v1384 = vadd.f32 %v1296, %v1383
        %v1385 = vpop.f32.mrb[0].mxu0
        %1386 = vmatprep.mubr.bf16.mxu0 0
        %1387 = vmatmul.mubr.bf16.gmra.mrb[0].mxu0 %v1277
        %v1388 = vpop.f32.mrb[0].mxu0
        %v1389 = vadd.f32 %v1296, %v1388
        %v1390 = vpop.f32.mrb[0].mxu0
        %v1391 = vpop.f32.mrb[0].mxu0
        %v1392 = vadd.f32 %v1296, %v1391
        %v1393 = vpop.f32.mrb[0].mxu0
        %1394 = vmatprep.mubr.bf16.mxu0 0
        %1395 = vmatmul.mubr.bf16.gmra.mrb[0].mxu0 %v1278
        %v1396 = vpop.f32.mrb[0].mxu0
        %v1397 = vadd.f32 %v1296, %v1396
        %v1398 = vpop.f32.mrb[0].mxu0
        %v1399 = vpop.f32.mrb[0].mxu0
        %v1400 = vadd.f32 %v1296, %v1399
        %v1401 = vpop.f32.mrb[0].mxu0
        %1402 = vmatprep.mubr.bf16.mxu0 0
        %1403 = vmatmul.mubr.bf16.gmra.mrb[0].mxu0 %v1279
        %v1404 = vpop.f32.mrb[0].mxu0
        %v1405 = vadd.f32 %v1296, %v1404
        %v1406 = vpop.f32.mrb[0].mxu0
        %v1407 = vpop.f32.mrb[0].mxu0
        %v1408 = vadd.f32 %v1296, %v1407
        %v1409 = vpop.f32.mrb[0].mxu0
        %1410 = vmatprep.mubr.bf16.mxu0 0
        %1411 = vmatmul.mubr.bf16.gmra.mrb[0].mxu0 %v1280
        %v1412 = vpop.f32.mrb[0].mxu0
        %v1413 = vadd.f32 %v1296, %v1412
        %v1414 = vpop.f32.mrb[0].mxu0
        %v1415 = vpop.f32.mrb[0].mxu0
        %v1416 = vadd.f32 %v1296, %v1415
        %v1417 = vpop.f32.mrb[0].mxu0
        %1418 = vmatprep.mubr.bf16.mxu0 0
        %1419 = vmatmul.mubr.bf16.gmra.mrb[0].mxu0 %v1281
        %v1420 = vpop.f32.mrb[0].mxu0
        %v1421 = vadd.f32 %v1296, %v1420
        %v1422 = vpop.f32.mrb[0].mxu0
        %v1423 = vpop.f32.mrb[0].mxu0
        %v1424 = vadd.f32 %v1296, %v1423
        %v1425 = vpop.f32.mrb[0].mxu0
        %1426 = vmatprep.mubr.bf16.mxu0 0
        %1427 = vmatmul.mubr.bf16.gmra.mrb[0].mxu0 %v1282
        %v1428 = vpop.f32.mrb[0].mxu0
        %v1429 = vadd.f32 %v1296, %v1428
        %v1430 = vpop.f32.mrb[0].mxu0
        %v1431 = vpop.f32.mrb[0].mxu0
        %v1432 = vadd.f32 %v1296, %v1431
        %v1433 = vpop.f32.mrb[0].mxu0
        %1434 = vmatprep.mubr.bf16.mxu0 0
        %1435 = vmatmul.mubr.bf16.gmra.mrb[0].mxu0 %v1283
        %v1436 = vpop.f32.mrb[0].mxu0
        %v1437 = vadd.f32 %v1296, %v1436
        %v1438 = vpop.f32.mrb[0].mxu0
        %v1439 = vpop.f32.mrb[0].mxu0
        %v1440 = vadd.f32 %v1296, %v1439
        %v1441 = vpop.f32.mrb[0].mxu0
        %1442 = vmatprep.mubr.bf16.mxu0 0
        %1443 = vmatmul.mubr.bf16.gmra.mrb[0].mxu0 %v1284
        %v1444 = vpop.f32.mrb[0].mxu0
        %v1445 = vadd.f32 %v1296, %v1444
        %v1446 = vpop.f32.mrb[0].mxu0
        %v1447 = vpop.f32.mrb[0].mxu0
        %v1448 = vadd.f32 %v1296, %v1447
        %v1449 = vpop.f32.mrb[0].mxu0
        %1450 = vmatprep.mubr.bf16.mxu0 0
        %1451 = vmatmul.mubr.bf16.gmra.mrb[0].mxu0 %v1285
        %v1452 = vpop.f32.mrb[0].mxu0
        %v1453 = vadd.f32 %v1296, %v1452
        %v1454 = vpop.f32.mrb[0].mxu0
        %v1455 = vpop.f32.mrb[0].mxu0
        %v1456 = vadd.f32 %v1296, %v1455
        %v1457 = vpop.f32.mrb[0].mxu0
        %1458 = vmatprep.mubr.bf16.mxu0 0
        %1459 = vmatmul.mubr.bf16.gmra.mrb[0].mxu0 %v1286
        %v1460 = vpop.f32.mrb[0].mxu0
        %v1461 = vadd.f32 %v1296, %v1460
        %v1462 = vpop.f32.mrb[0].mxu0
        %v1463 = vpop.f32.mrb[0].mxu0
        %v1464 = vadd.f32 %v1296, %v1463
        %v1465 = vpop.f32.mrb[0].mxu0
        %1466 = vmatprep.mubr.bf16.mxu0 0
        %1467 = vmatmul.mubr.bf16.gmra.mrb[0].mxu0 %v1287
        %v1468 = vpop.f32.mrb[0].mxu0
        %v1469 = vadd.f32 %v1296, %v1468
        %v1470 = vpop.f32.mrb[0].mxu0
        %v1471 = vpop.f32.mrb[0].mxu0
        %v1472 = vadd.f32 %v1296, %v1471
        %v1473 = vpop.f32.mrb[0].mxu0
        %1474 = vmatprep.mubr.bf16.mxu0 0
        %1475 = vmatmul.mubr.bf16.gmra.mrb[0].mxu0 %v1288
        %v1476 = vpop.f32.mrb[0].mxu0
        %v1477 = vadd.f32 %v1296, %v1476
        %v1478 = vpop.f32.mrb[0].mxu0
        %v1479 = vpop.f32.mrb[0].mxu0
        %v1480 = vadd.f32 %v1296, %v1479
        %v1481 = vpop.f32.mrb[0].mxu0
        %1482 = vmatprep.mubr.bf16.mxu0 0
        %1483 = vmatmul.mubr.bf16.gmra.mrb[0].mxu0 %v1289
        %v1484 = vpop.f32.mrb[0].mxu0
        %v1485 = vadd.f32 %v1296, %v1484
        %v1486 = vpop.f32.mrb[0].mxu0
        %v1487 = vpop.f32.mrb[0].mxu0
        %v1488 = vadd.f32 %v1296, %v1487
        %v1489 = vpop.f32.mrb[0].mxu0
        %1490 = vmatprep.mubr.bf16.mxu0 0
        %1491 = vmatmul.mubr.bf16.gmra.mrb[0].mxu0 %v1290
        %v1492 = vpop.f32.mrb[0].mxu0
        %v1493 = vadd.f32 %v1296, %v1492
        %v1494 = vpop.f32.mrb[0].mxu0
        %v1495 = vpop.f32.mrb[0].mxu0
        %v1496 = vadd.f32 %v1296, %v1495
        %v1497 = vpop.f32.mrb[0].mxu0
        %1498 = vmatprep.mubr.bf16.mxu0 0
        %1499 = vmatmul.mubr.bf16.gmra.mrb[0].mxu0 %v1291
        %v1500 = vpop.f32.mrb[0].mxu0
        %v1501 = vadd.f32 %v1296, %v1500
        %v1502 = vpop.f32.mrb[0].mxu0
        %v1503 = vpop.f32.mrb[0].mxu0
        %v1504 = vadd.f32 %v1296, %v1503
        %v1505 = vpop.f32.mrb[0].mxu0
        %1506 = vdwg.mxu0
        %v1507 = vxor.u32 %v1381, 2147483648
        %v1508 = vxor.u32 %v1384, 2147483648
        %v1509 = vxor.u32 %v1389, 2147483648
        %v1510 = vxor.u32 %v1392, 2147483648
        %v1511 = vxor.u32 %v1397, 2147483648
        %v1512 = vxor.u32 %v1400, 2147483648
        %v1513 = vxor.u32 %v1405, 2147483648
        %v1514 = vxor.u32 %v1408, 2147483648
        %v1515 = vxor.u32 %v1413, 2147483648
        %v1516 = vxor.u32 %v1416, 2147483648
        %v1517 = vxor.u32 %v1421, 2147483648
        %v1518 = vxor.u32 %v1424, 2147483648
        %v1519 = vxor.u32 %v1429, 2147483648
        %v1520 = vxor.u32 %v1432, 2147483648
        %v1521 = vxor.u32 %v1437, 2147483648
        %v1522 = vxor.u32 %v1440, 2147483648
        %v1523 = vxor.u32 %v1445, 2147483648
        %v1524 = vxor.u32 %v1448, 2147483648
        %v1525 = vxor.u32 %v1453, 2147483648
        %v1526 = vxor.u32 %v1456, 2147483648
        %v1527 = vxor.u32 %v1461, 2147483648
        %v1528 = vxor.u32 %v1464, 2147483648
        %v1529 = vxor.u32 %v1469, 2147483648
        %v1530 = vxor.u32 %v1472, 2147483648
        %v1531 = vxor.u32 %v1477, 2147483648
        %v1532 = vxor.u32 %v1480, 2147483648
        %v1533 = vxor.u32 %v1485, 2147483648
        %v1534 = vxor.u32 %v1488, 2147483648
        %v1535 = vxor.u32 %v1493, 2147483648
        %v1536 = vxor.u32 %v1496, 2147483648
        %v1537 = vxor.u32 %v1501, 2147483648
        %v1538 = vxor.u32 %v1504, 2147483648
        %v1539 = vmul.f32 %v1507, 1.442695
        %v1540 = vpow.pop %v1539
        %v1541 = vmul.f32 %v1508, 1.442695
        %v1542 = vpow.pop %v1541
        %v1543 = vmul.f32 %v1509, 1.442695
        %v1544 = vpow.pop %v1543
        %v1545 = vmul.f32 %v1510, 1.442695
        %v1546 = vpow.pop %v1545
        %v1547 = vmul.f32 %v1511, 1.442695
        %v1548 = vpow.pop %v1547
        %v1549 = vmul.f32 %v1512, 1.442695
        %v1550 = vpow.pop %v1549
        %v1551 = vmul.f32 %v1513, 1.442695
        %v1552 = vpow.pop %v1551
        %v1553 = vmul.f32 %v1514, 1.442695
        %v1554 = vpow.pop %v1553
        %v1555 = vmul.f32 %v1515, 1.442695
        %v1556 = vpow.pop %v1555
        %v1557 = vmul.f32 %v1516, 1.442695
        %v1558 = vpow.pop %v1557
        %v1559 = vmul.f32 %v1517, 1.442695
        %v1560 = vpow.pop %v1559
        %v1561 = vmul.f32 %v1518, 1.442695
        %v1562 = vpow.pop %v1561
        %v1563 = vmul.f32 %v1519, 1.442695
        %v1564 = vpow.pop %v1563
        %v1565 = vmul.f32 %v1520, 1.442695
        %v1566 = vpow.pop %v1565
        %v1567 = vmul.f32 %v1521, 1.442695
        %v1568 = vpow.pop %v1567
        %v1569 = vmul.f32 %v1522, 1.442695
        %v1570 = vpow.pop %v1569
        %v1571 = vmul.f32 %v1523, 1.442695
        %v1572 = vpow.pop %v1571
        %v1573 = vmul.f32 %v1524, 1.442695
        %v1574 = vpow.pop %v1573
        %v1575 = vmul.f32 %v1525, 1.442695
        %v1576 = vpow.pop %v1575
        %v1577 = vmul.f32 %v1526, 1.442695
        %v1578 = vpow.pop %v1577
        %v1579 = vmul.f32 %v1527, 1.442695
        %v1580 = vpow.pop %v1579
        %v1581 = vmul.f32 %v1528, 1.442695
        %v1582 = vpow.pop %v1581
        %v1583 = vmul.f32 %v1529, 1.442695
        %v1584 = vpow.pop %v1583
        %v1585 = vmul.f32 %v1530, 1.442695
        %v1586 = vpow.pop %v1585
        %v1587 = vmul.f32 %v1531, 1.442695
        %v1588 = vpow.pop %v1587
        %v1589 = vmul.f32 %v1532, 1.442695
        %v1590 = vpow.pop %v1589
        %v1591 = vmul.f32 %v1533, 1.442695
        %v1592 = vpow.pop %v1591
        %v1593 = vmul.f32 %v1534, 1.442695
        %v1594 = vpow.pop %v1593
        %v1595 = vmul.f32 %v1535, 1.442695
        %v1596 = vpow.pop %v1595
        %v1597 = vmul.f32 %v1536, 1.442695
        %v1598 = vpow.pop %v1597
        %v1599 = vmul.f32 %v1537, 1.442695
        %v1600 = vpow.pop %v1599
        %v1601 = vmul.f32 %v1538, 1.442695
        %v1602 = vpow.pop %v1601
        %v1603 = vadd.f32 %v1540, 1.0
        %v1604 = vadd.f32 %v1542, 1.0
        %v1605 = vadd.f32 %v1544, 1.0
        %v1606 = vadd.f32 %v1546, 1.0
        %v1607 = vadd.f32 %v1548, 1.0
        %v1608 = vadd.f32 %v1550, 1.0
        %v1609 = vadd.f32 %v1552, 1.0
        %v1610 = vadd.f32 %v1554, 1.0
        %v1611 = vadd.f32 %v1556, 1.0
        %v1612 = vadd.f32 %v1558, 1.0
        %v1613 = vadd.f32 %v1560, 1.0
        %v1614 = vadd.f32 %v1562, 1.0
        %v1615 = vadd.f32 %v1564, 1.0
        %v1616 = vadd.f32 %v1566, 1.0
        %v1617 = vadd.f32 %v1568, 1.0
        %v1618 = vadd.f32 %v1570, 1.0
        %v1619 = vadd.f32 %v1572, 1.0
        %v1620 = vadd.f32 %v1574, 1.0
        %v1621 = vadd.f32 %v1576, 1.0
        %v1622 = vadd.f32 %v1578, 1.0
        %v1623 = vadd.f32 %v1580, 1.0
        %v1624 = vadd.f32 %v1582, 1.0
        %v1625 = vadd.f32 %v1584, 1.0
        %v1626 = vadd.f32 %v1586, 1.0
        %v1627 = vadd.f32 %v1588, 1.0
        %v1628 = vadd.f32 %v1590, 1.0
        %v1629 = vadd.f32 %v1592, 1.0
        %v1630 = vadd.f32 %v1594, 1.0
        %v1631 = vadd.f32 %v1596, 1.0
        %v1632 = vadd.f32 %v1598, 1.0
        %v1633 = vadd.f32 %v1600, 1.0
        %v1634 = vadd.f32 %v1602, 1.0
        %v1635 = vrcp.pop %v1603
        %v1636 = vmul.f32 1.0, %v1635
        %v1637 = vrcp.pop %v1604
        %v1638 = vmul.f32 1.0, %v1637
        %v1639 = vrcp.pop %v1605
        %v1640 = vmul.f32 1.0, %v1639
        %v1641 = vrcp.pop %v1606
        %v1642 = vmul.f32 1.0, %v1641
        %v1643 = vrcp.pop %v1607
        %v1644 = vmul.f32 1.0, %v1643
        %v1645 = vrcp.pop %v1608
        %v1646 = vmul.f32 1.0, %v1645
        %v1647 = vrcp.pop %v1609
        %v1648 = vmul.f32 1.0, %v1647
        %v1649 = vrcp.pop %v1610
        %v1650 = vmul.f32 1.0, %v1649
        %v1651 = vrcp.pop %v1611
        %v1652 = vmul.f32 1.0, %v1651
        %v1653 = vrcp.pop %v1612
        %v1654 = vmul.f32 1.0, %v1653
        %v1655 = vrcp.pop %v1613
        %v1656 = vmul.f32 1.0, %v1655
        %v1657 = vrcp.pop %v1614
        %v1658 = vmul.f32 1.0, %v1657
        %v1659 = vrcp.pop %v1615
        %v1660 = vmul.f32 1.0, %v1659
        %v1661 = vrcp.pop %v1616
        %v1662 = vmul.f32 1.0, %v1661
        %v1663 = vrcp.pop %v1617
        %v1664 = vmul.f32 1.0, %v1663
        %v1665 = vrcp.pop %v1618
        %v1666 = vmul.f32 1.0, %v1665
        %v1667 = vrcp.pop %v1619
        %v1668 = vmul.f32 1.0, %v1667
        %v1669 = vrcp.pop %v1620
        %v1670 = vmul.f32 1.0, %v1669
        %v1671 = vrcp.pop %v1621
        %v1672 = vmul.f32 1.0, %v1671
        %v1673 = vrcp.pop %v1622
        %v1674 = vmul.f32 1.0, %v1673
        %v1675 = vrcp.pop %v1623
        %v1676 = vmul.f32 1.0, %v1675
        %v1677 = vrcp.pop %v1624
        %v1678 = vmul.f32 1.0, %v1677
        %v1679 = vrcp.pop %v1625
        %v1680 = vmul.f32 1.0, %v1679
        %v1681 = vrcp.pop %v1626
        %v1682 = vmul.f32 1.0, %v1681
        %v1683 = vrcp.pop %v1627
        %v1684 = vmul.f32 1.0, %v1683
        %v1685 = vrcp.pop %v1628
        %v1686 = vmul.f32 1.0, %v1685
        %v1687 = vrcp.pop %v1629
        %v1688 = vmul.f32 1.0, %v1687
        %v1689 = vrcp.pop %v1630
        %v1690 = vmul.f32 1.0, %v1689
        %v1691 = vrcp.pop %v1631
        %v1692 = vmul.f32 1.0, %v1691
        %v1693 = vrcp.pop %v1632
        %v1694 = vmul.f32 1.0, %v1693
        %v1695 = vrcp.pop %v1633
        %v1696 = vmul.f32 1.0, %v1695
        %v1697 = vrcp.pop %v1634
        %v1698 = vmul.f32 1.0, %v1697
        %v1699 = vmul.f32 %v1381, %v1636
        %v1700 = vmul.f32 %v1384, %v1638
        %v1701 = vmul.f32 %v1389, %v1640
        %v1702 = vmul.f32 %v1392, %v1642
        %v1703 = vmul.f32 %v1397, %v1644
        %v1704 = vmul.f32 %v1400, %v1646
        %v1705 = vmul.f32 %v1405, %v1648
        %v1706 = vmul.f32 %v1408, %v1650
        %v1707 = vmul.f32 %v1413, %v1652
        %v1708 = vmul.f32 %v1416, %v1654
        %v1709 = vmul.f32 %v1421, %v1656
        %v1710 = vmul.f32 %v1424, %v1658
        %v1711 = vmul.f32 %v1429, %v1660
        %v1712 = vmul.f32 %v1432, %v1662
        %v1713 = vmul.f32 %v1437, %v1664
        %v1714 = vmul.f32 %v1440, %v1666
        %v1715 = vmul.f32 %v1445, %v1668
        %v1716 = vmul.f32 %v1448, %v1670
        %v1717 = vmul.f32 %v1453, %v1672
        %v1718 = vmul.f32 %v1456, %v1674
        %v1719 = vmul.f32 %v1461, %v1676
        %v1720 = vmul.f32 %v1464, %v1678
        %v1721 = vmul.f32 %v1469, %v1680
        %v1722 = vmul.f32 %v1472, %v1682
        %v1723 = vmul.f32 %v1477, %v1684
        %v1724 = vmul.f32 %v1480, %v1686
        %v1725 = vmul.f32 %v1485, %v1688
        %v1726 = vmul.f32 %v1488, %v1690
        %v1727 = vmul.f32 %v1493, %v1692
        %v1728 = vmul.f32 %v1496, %v1694
        %v1729 = vmul.f32 %v1501, %v1696
        %v1730 = vmul.f32 %v1504, %v1698
        %s1731 = scalar_lea.vmem [#allocation3], 32
        %1732 = vst [vmem:[%s1731 + $0x8] sm:$0xff] %v1699
        %1733 = vst [vmem:[%s1731 + $0x10] sm:$0xff] %v1700
        %1734 = vst [vmem:[%s1731 + $0x28] sm:$0xff] %v1701
        %1735 = vst [vmem:[%s1731 + $0x30] sm:$0xff] %v1702
        %1736 = vst [vmem:[%s1731 + $0x48] sm:$0xff] %v1703
        %1737 = vst [vmem:[%s1731 + $0x50] sm:$0xff] %v1704
        %1738 = vst [vmem:[%s1731 + $0x68] sm:$0xff] %v1705
        %1739 = vst [vmem:[%s1731 + $0x70] sm:$0xff] %v1706
        %1740 = vst [vmem:[%s1731 + $0x88] sm:$0xff] %v1707
        %1741 = vst [vmem:[%s1731 + $0x90] sm:$0xff] %v1708
        %1742 = vst [vmem:[%s1731 + $0xa8] sm:$0xff] %v1709
        %1743 = vst [vmem:[%s1731 + $0xb0] sm:$0xff] %v1710
        %1744 = vst [vmem:[%s1731 + $0xc8] sm:$0xff] %v1711
        %1745 = vst [vmem:[%s1731 + $0xd0] sm:$0xff] %v1712
        %1746 = vst [vmem:[%s1731 + $0xe8] sm:$0xff] %v1713
        %1747 = vst [vmem:[%s1731 + $0xf0] sm:$0xff] %v1714
        %1748 = vst [vmem:[%s1731 + $0x108] sm:$0xff] %v1715
        %1749 = vst [vmem:[%s1731 + $0x110] sm:$0xff] %v1716
        %1750 = vst [vmem:[%s1731 + $0x128] sm:$0xff] %v1717
        %1751 = vst [vmem:[%s1731 + $0x130] sm:$0xff] %v1718
        %1752 = vst [vmem:[%s1731 + $0x148] sm:$0xff] %v1719
        %1753 = vst [vmem:[%s1731 + $0x150] sm:$0xff] %v1720
        %1754 = vst [vmem:[%s1731 + $0x168] sm:$0xff] %v1721
        %1755 = vst [vmem:[%s1731 + $0x170] sm:$0xff] %v1722
        %1756 = vst [vmem:[%s1731 + $0x188] sm:$0xff] %v1723
        %1757 = vst [vmem:[%s1731 + $0x190] sm:$0xff] %v1724
        %1758 = vst [vmem:[%s1731 + $0x1a8] sm:$0xff] %v1725
        %1759 = vst [vmem:[%s1731 + $0x1b0] sm:$0xff] %v1726
        %1760 = vst [vmem:[%s1731 + $0x1c8] sm:$0xff] %v1727
        %1761 = vst [vmem:[%s1731 + $0x1d0] sm:$0xff] %v1728
        %1762 = vst [vmem:[%s1731 + $0x1e8] sm:$0xff] %v1729
        %1763 = vst [vmem:[%s1731 + $0x1f0] sm:$0xff] %v1730
        %s1764 = scalar_lea.vmem %s1, 12
        %v1765 = vld [vmem:[%s1764] sm:$0x7]
        %v1766 = vld [vmem:[%s1764 + $0x4] sm:$0x7]
        %v1767 = vld [vmem:[%s1764 + $0x8] sm:$0x7]
        %s1768 = scalar_lea.vmem [#allocation7], 64
        %v1769 = vld [vmem:[%s1768] sm:$0xf]
        %v1770 = vld [vmem:[%s1768 + $0x4] sm:$0xf]
        %v1771 = vld [vmem:[%s1768 + $0x8] sm:$0xf]
        %v1772 = vld [vmem:[%s1768 + $0xc] sm:$0xf]
        %v1773 = vld [vmem:[%s1768 + $0x10] sm:$0xf]
        %v1774 = vld [vmem:[%s1768 + $0x14] sm:$0xf]
        %v1775 = vld [vmem:[%s1768 + $0x18] sm:$0xf]
        %v1776 = vld [vmem:[%s1768 + $0x1c] sm:$0xf]
        %v1777 = vld [vmem:[%s1768 + $0x20] sm:$0xf]
        %v1778 = vld [vmem:[%s1768 + $0x24] sm:$0xf]
        %v1779 = vld [vmem:[%s1768 + $0x28] sm:$0xf]
        %v1780 = vld [vmem:[%s1768 + $0x2c] sm:$0xf]
        %v1781 = vld [vmem:[%s1768 + $0x30] sm:$0xf]
        %v1782 = vld [vmem:[%s1768 + $0x34] sm:$0xf]
        %v1783 = vld [vmem:[%s1768 + $0x38] sm:$0xf]
        %v1784 = vld [vmem:[%s1768 + $0x3c] sm:$0xf]
        %s1785 = scalar_lea.vmem %s3, 1
        %v1786 = vld [vmem:[%s1785] sm:$0x1]
        %v1787 = vld [vmem:[#allocation3 + $0x7] sm:$0xff]
        %v1788 = vld [vmem:[#allocation3 + $0xf] sm:$0xff]
        %v1789 = vld [vmem:[#allocation3 + $0x27] sm:$0xff]
        %v1790 = vld [vmem:[#allocation3 + $0x2f] sm:$0xff]
        %v1791 = vld [vmem:[#allocation3 + $0x47] sm:$0xff]
        %v1792 = vld [vmem:[#allocation3 + $0x4f] sm:$0xff]
        %v1793 = vld [vmem:[#allocation3 + $0x67] sm:$0xff]
        %v1794 = vld [vmem:[#allocation3 + $0x6f] sm:$0xff]
        %v1795 = vld [vmem:[#allocation3 + $0x87] sm:$0xff]
        %v1796 = vld [vmem:[#allocation3 + $0x8f] sm:$0xff]
        %v1797 = vld [vmem:[#allocation3 + $0xa7] sm:$0xff]
        %v1798 = vld [vmem:[#allocation3 + $0xaf] sm:$0xff]
        %v1799 = vld [vmem:[#allocation3 + $0xc7] sm:$0xff]
        %v1800 = vld [vmem:[#allocation3 + $0xcf] sm:$0xff]
        %v1801 = vld [vmem:[#allocation3 + $0xe7] sm:$0xff]
        %v1802 = vld [vmem:[#allocation3 + $0xef] sm:$0xff]
        %v1803 = vld [vmem:[#allocation3 + $0x107] sm:$0xff]
        %v1804 = vld [vmem:[#allocation3 + $0x10f] sm:$0xff]
        %v1805 = vld [vmem:[#allocation3 + $0x127] sm:$0xff]
        %v1806 = vld [vmem:[#allocation3 + $0x12f] sm:$0xff]
        %v1807 = vld [vmem:[#allocation3 + $0x147] sm:$0xff]
        %v1808 = vld [vmem:[#allocation3 + $0x14f] sm:$0xff]
        %v1809 = vld [vmem:[#allocation3 + $0x167] sm:$0xff]
        %v1810 = vld [vmem:[#allocation3 + $0x16f] sm:$0xff]
        %v1811 = vld [vmem:[#allocation3 + $0x187] sm:$0xff]
        %v1812 = vld [vmem:[#allocation3 + $0x18f] sm:$0xff]
        %v1813 = vld [vmem:[#allocation3 + $0x1a7] sm:$0xff]
        %v1814 = vld [vmem:[#allocation3 + $0x1af] sm:$0xff]
        %v1815 = vld [vmem:[#allocation3 + $0x1c7] sm:$0xff]
        %v1816 = vld [vmem:[#allocation3 + $0x1cf] sm:$0xff]
        %v1817 = vld [vmem:[#allocation3 + $0x1e7] sm:$0xff]
        %v1818 = vld [vmem:[#allocation3 + $0x1ef] sm:$0xff]
        %v1819 = vld [vmem:[#allocation3 + $0x207] sm:$0xff]
        %v1820 = vld [vmem:[#allocation3 + $0x20f] sm:$0xff]
        %v1821 = vld [vmem:[#allocation3 + $0x227] sm:$0xff]
        %v1822 = vld [vmem:[#allocation3 + $0x22f] sm:$0xff]
        %v1823 = vld [vmem:[#allocation3 + $0x8] sm:$0xff]
        %v1824 = vld [vmem:[#allocation3 + $0x10] sm:$0xff]
        %v1825 = vld [vmem:[#allocation3 + $0x28] sm:$0xff]
        %v1826 = vld [vmem:[#allocation3 + $0x30] sm:$0xff]
        %v1827 = vld [vmem:[#allocation3 + $0x48] sm:$0xff]
        %v1828 = vld [vmem:[#allocation3 + $0x50] sm:$0xff]
        %v1829 = vld [vmem:[#allocation3 + $0x68] sm:$0xff]
        %v1830 = vld [vmem:[#allocation3 + $0x70] sm:$0xff]
        %v1831 = vld [vmem:[#allocation3 + $0x88] sm:$0xff]
        %v1832 = vld [vmem:[#allocation3 + $0x90] sm:$0xff]
        %v1833 = vld [vmem:[#allocation3 + $0xa8] sm:$0xff]
        %v1834 = vld [vmem:[#allocation3 + $0xb0] sm:$0xff]
        %v1835 = vld [vmem:[#allocation3 + $0xc8] sm:$0xff]
        %v1836 = vld [vmem:[#allocation3 + $0xd0] sm:$0xff]
        %v1837 = vld [vmem:[#allocation3 + $0xe8] sm:$0xff]
        %v1838 = vld [vmem:[#allocation3 + $0xf0] sm:$0xff]
        %v1839 = vld [vmem:[#allocation3 + $0x108] sm:$0xff]
        %v1840 = vld [vmem:[#allocation3 + $0x110] sm:$0xff]
        %v1841 = vld [vmem:[#allocation3 + $0x128] sm:$0xff]
        %v1842 = vld [vmem:[#allocation3 + $0x130] sm:$0xff]
        %v1843 = vld [vmem:[#allocation3 + $0x148] sm:$0xff]
        %v1844 = vld [vmem:[#allocation3 + $0x150] sm:$0xff]
        %v1845 = vld [vmem:[#allocation3 + $0x168] sm:$0xff]
        %v1846 = vld [vmem:[#allocation3 + $0x170] sm:$0xff]
        %v1847 = vld [vmem:[#allocation3 + $0x188] sm:$0xff]
        %v1848 = vld [vmem:[#allocation3 + $0x190] sm:$0xff]
        %v1849 = vld [vmem:[#allocation3 + $0x1a8] sm:$0xff]
        %v1850 = vld [vmem:[#allocation3 + $0x1b0] sm:$0xff]
        %v1851 = vld [vmem:[#allocation3 + $0x1c8] sm:$0xff]
        %v1852 = vld [vmem:[#allocation3 + $0x1d0] sm:$0xff]
        %v1853 = vld [vmem:[#allocation3 + $0x1e8] sm:$0xff]
        %v1854 = vld [vmem:[#allocation3 + $0x1f0] sm:$0xff]
        %v1855 = vld [vmem:[#allocation3 + $0x208] sm:$0xff]
        %v1856 = vld [vmem:[#allocation3 + $0x210] sm:$0xff]
        %v1857 = vld [vmem:[#allocation3 + $0x228] sm:$0xff]
        %v1858 = vld [vmem:[#allocation3 + $0x230] sm:$0xff]
        %v1859 = vld [vmem:[#allocation3 + $0x9] sm:$0xff]
        %v1860 = vld [vmem:[#allocation3 + $0x11] sm:$0xff]
        %v1861 = vld [vmem:[#allocation3 + $0x29] sm:$0xff]
        %v1862 = vld [vmem:[#allocation3 + $0x31] sm:$0xff]
        %v1863 = vld [vmem:[#allocation3 + $0x49] sm:$0xff]
        %v1864 = vld [vmem:[#allocation3 + $0x51] sm:$0xff]
        %v1865 = vld [vmem:[#allocation3 + $0x69] sm:$0xff]
        %v1866 = vld [vmem:[#allocation3 + $0x71] sm:$0xff]
        %v1867 = vld [vmem:[#allocation3 + $0x89] sm:$0xff]
        %v1868 = vld [vmem:[#allocation3 + $0x91] sm:$0xff]
        %v1869 = vld [vmem:[#allocation3 + $0xa9] sm:$0xff]
        %v1870 = vld [vmem:[#allocation3 + $0xb1] sm:$0xff]
        %v1871 = vld [vmem:[#allocation3 + $0xc9] sm:$0xff]
        %v1872 = vld [vmem:[#allocation3 + $0xd1] sm:$0xff]
        %v1873 = vld [vmem:[#allocation3 + $0xe9] sm:$0xff]
        %v1874 = vld [vmem:[#allocation3 + $0xf1] sm:$0xff]
        %v1875 = vld [vmem:[#allocation3 + $0x109] sm:$0xff]
        %v1876 = vld [vmem:[#allocation3 + $0x111] sm:$0xff]
        %v1877 = vld [vmem:[#allocation3 + $0x129] sm:$0xff]
        %v1878 = vld [vmem:[#allocation3 + $0x131] sm:$0xff]
        %v1879 = vld [vmem:[#allocation3 + $0x149] sm:$0xff]
        %v1880 = vld [vmem:[#allocation3 + $0x151] sm:$0xff]
        %v1881 = vld [vmem:[#allocation3 + $0x169] sm:$0xff]
        %v1882 = vld [vmem:[#allocation3 + $0x171] sm:$0xff]
        %v1883 = vld [vmem:[#allocation3 + $0x189] sm:$0xff]
        %v1884 = vld [vmem:[#allocation3 + $0x191] sm:$0xff]
        %v1885 = vld [vmem:[#allocation3 + $0x1a9] sm:$0xff]
        %v1886 = vld [vmem:[#allocation3 + $0x1b1] sm:$0xff]
        %v1887 = vld [vmem:[#allocation3 + $0x1c9] sm:$0xff]
        %v1888 = vld [vmem:[#allocation3 + $0x1d1] sm:$0xff]
        %v1889 = vld [vmem:[#allocation3 + $0x1e9] sm:$0xff]
        %v1890 = vld [vmem:[#allocation3 + $0x1f1] sm:$0xff]
        %v1891 = vld [vmem:[#allocation3 + $0x209] sm:$0xff]
        %v1892 = vld [vmem:[#allocation3 + $0x211] sm:$0xff]
        %v1893 = vld [vmem:[#allocation3 + $0x229] sm:$0xff]
        %v1894 = vld [vmem:[#allocation3 + $0x231] sm:$0xff]
        %v1895 = vlaneseq
        %v1896 = vshrl.u32 %v1895, 7
        %v1897 = vsub.s32 0, %v1896
        %v1898 = vrot.slane %v1765, %v1897
        %v1899 = vmul.f32 %v1787, %v1898
        %v1900 = vmul.f32 %v1788, %v1898
        %v1901 = vmul.f32 %v1789, %v1898
        %v1902 = vmul.f32 %v1790, %v1898
        %v1903 = vmul.f32 %v1791, %v1898
        %v1904 = vmul.f32 %v1792, %v1898
        %v1905 = vmul.f32 %v1793, %v1898
        %v1906 = vmul.f32 %v1794, %v1898
        %v1907 = vmul.f32 %v1795, %v1898
        %v1908 = vmul.f32 %v1796, %v1898
        %v1909 = vmul.f32 %v1797, %v1898
        %v1910 = vmul.f32 %v1798, %v1898
        %v1911 = vmul.f32 %v1799, %v1898
        %v1912 = vmul.f32 %v1800, %v1898
        %v1913 = vmul.f32 %v1801, %v1898
        %v1914 = vmul.f32 %v1802, %v1898
        %v1915 = vmul.f32 %v1803, %v1898
        %v1916 = vmul.f32 %v1804, %v1898
        %v1917 = vmul.f32 %v1805, %v1898
        %v1918 = vmul.f32 %v1806, %v1898
        %v1919 = vmul.f32 %v1807, %v1898
        %v1920 = vmul.f32 %v1808, %v1898
        %v1921 = vmul.f32 %v1809, %v1898
        %v1922 = vmul.f32 %v1810, %v1898
        %v1923 = vmul.f32 %v1811, %v1898
        %v1924 = vmul.f32 %v1812, %v1898
        %v1925 = vmul.f32 %v1813, %v1898
        %v1926 = vmul.f32 %v1814, %v1898
        %v1927 = vmul.f32 %v1815, %v1898
        %v1928 = vmul.f32 %v1816, %v1898
        %v1929 = vmul.f32 %v1817, %v1898
        %v1930 = vmul.f32 %v1818, %v1898
        %v1931 = vadd.f32 %v1899, 0.0
        %v1932 = vadd.f32 %v1900, 0.0
        %v1933 = vadd.f32 %v1901, 0.0
        %v1934 = vadd.f32 %v1902, 0.0
        %v1935 = vadd.f32 %v1903, 0.0
        %v1936 = vadd.f32 %v1904, 0.0
        %v1937 = vadd.f32 %v1905, 0.0
        %v1938 = vadd.f32 %v1906, 0.0
        %v1939 = vadd.f32 %v1907, 0.0
        %v1940 = vadd.f32 %v1908, 0.0
        %v1941 = vadd.f32 %v1909, 0.0
        %v1942 = vadd.f32 %v1910, 0.0
        %v1943 = vadd.f32 %v1911, 0.0
        %v1944 = vadd.f32 %v1912, 0.0
        %v1945 = vadd.f32 %v1913, 0.0
        %v1946 = vadd.f32 %v1914, 0.0
        %v1947 = vadd.f32 %v1915, 0.0
        %v1948 = vadd.f32 %v1916, 0.0
        %v1949 = vadd.f32 %v1917, 0.0
        %v1950 = vadd.f32 %v1918, 0.0
        %v1951 = vadd.f32 %v1919, 0.0
        %v1952 = vadd.f32 %v1920, 0.0
        %v1953 = vadd.f32 %v1921, 0.0
        %v1954 = vadd.f32 %v1922, 0.0
        %v1955 = vadd.f32 %v1923, 0.0
        %v1956 = vadd.f32 %v1924, 0.0
        %v1957 = vadd.f32 %v1925, 0.0
        %v1958 = vadd.f32 %v1926, 0.0
        %v1959 = vadd.f32 %v1927, 0.0
        %v1960 = vadd.f32 %v1928, 0.0
        %v1961 = vadd.f32 %v1929, 0.0
        %v1962 = vadd.f32 %v1930, 0.0
        %v1963 = vlaneseq
        %v1964 = vshrl.u32 %v1963, 7
        %v1965 = vsub.s32 1, %v1964
        %v1966 = vrot.slane %v1765, %v1965
        %v1967 = vmul.f32 %v1823, %v1966
        %v1968 = vmul.f32 %v1824, %v1966
        %v1969 = vmul.f32 %v1825, %v1966
        %v1970 = vmul.f32 %v1826, %v1966
        %v1971 = vmul.f32 %v1827, %v1966
        %v1972 = vmul.f32 %v1828, %v1966
        %v1973 = vmul.f32 %v1829, %v1966
        %v1974 = vmul.f32 %v1830, %v1966
        %v1975 = vmul.f32 %v1831, %v1966
        %v1976 = vmul.f32 %v1832, %v1966
        %v1977 = vmul.f32 %v1833, %v1966
        %v1978 = vmul.f32 %v1834, %v1966
        %v1979 = vmul.f32 %v1835, %v1966
        %v1980 = vmul.f32 %v1836, %v1966
        %v1981 = vmul.f32 %v1837, %v1966
        %v1982 = vmul.f32 %v1838, %v1966
        %v1983 = vmul.f32 %v1839, %v1966
        %v1984 = vmul.f32 %v1840, %v1966
        %v1985 = vmul.f32 %v1841, %v1966
        %v1986 = vmul.f32 %v1842, %v1966
        %v1987 = vmul.f32 %v1843, %v1966
        %v1988 = vmul.f32 %v1844, %v1966
        %v1989 = vmul.f32 %v1845, %v1966
        %v1990 = vmul.f32 %v1846, %v1966
        %v1991 = vmul.f32 %v1847, %v1966
        %v1992 = vmul.f32 %v1848, %v1966
        %v1993 = vmul.f32 %v1849, %v1966
        %v1994 = vmul.f32 %v1850, %v1966
        %v1995 = vmul.f32 %v1851, %v1966
        %v1996 = vmul.f32 %v1852, %v1966
        %v1997 = vmul.f32 %v1853, %v1966
        %v1998 = vmul.f32 %v1854, %v1966
        %v1999 = vadd.f32 %v1931, %v1967
        %v2000 = vadd.f32 %v1932, %v1968
        %v2001 = vadd.f32 %v1933, %v1969
        %v2002 = vadd.f32 %v1934, %v1970
        %v2003 = vadd.f32 %v1935, %v1971
        %v2004 = vadd.f32 %v1936, %v1972
        %v2005 = vadd.f32 %v1937, %v1973
        %v2006 = vadd.f32 %v1938, %v1974
        %v2007 = vadd.f32 %v1939, %v1975
        %v2008 = vadd.f32 %v1940, %v1976
        %v2009 = vadd.f32 %v1941, %v1977
        %v2010 = vadd.f32 %v1942, %v1978
        %v2011 = vadd.f32 %v1943, %v1979
        %v2012 = vadd.f32 %v1944, %v1980
        %v2013 = vadd.f32 %v1945, %v1981
        %v2014 = vadd.f32 %v1946, %v1982
        %v2015 = vadd.f32 %v1947, %v1983
        %v2016 = vadd.f32 %v1948, %v1984
        %v2017 = vadd.f32 %v1949, %v1985
        %v2018 = vadd.f32 %v1950, %v1986
        %v2019 = vadd.f32 %v1951, %v1987
        %v2020 = vadd.f32 %v1952, %v1988
        %v2021 = vadd.f32 %v1953, %v1989
        %v2022 = vadd.f32 %v1954, %v1990
        %v2023 = vadd.f32 %v1955, %v1991
        %v2024 = vadd.f32 %v1956, %v1992
        %v2025 = vadd.f32 %v1957, %v1993
        %v2026 = vadd.f32 %v1958, %v1994
        %v2027 = vadd.f32 %v1959, %v1995
        %v2028 = vadd.f32 %v1960, %v1996
        %v2029 = vadd.f32 %v1961, %v1997
        %v2030 = vadd.f32 %v1962, %v1998
        %v2031 = vlaneseq
        %v2032 = vshrl.u32 %v2031, 7
        %v2033 = vsub.s32 2, %v2032
        %v2034 = vrot.slane %v1765, %v2033
        %v2035 = vmul.f32 %v1859, %v2034
        %v2036 = vmul.f32 %v1860, %v2034
        %v2037 = vmul.f32 %v1861, %v2034
        %v2038 = vmul.f32 %v1862, %v2034
        %v2039 = vmul.f32 %v1863, %v2034
        %v2040 = vmul.f32 %v1864, %v2034
        %v2041 = vmul.f32 %v1865, %v2034
        %v2042 = vmul.f32 %v1866, %v2034
        %v2043 = vmul.f32 %v1867, %v2034
        %v2044 = vmul.f32 %v1868, %v2034
        %v2045 = vmul.f32 %v1869, %v2034
        %v2046 = vmul.f32 %v1870, %v2034
        %v2047 = vmul.f32 %v1871, %v2034
        %v2048 = vmul.f32 %v1872, %v2034
        %v2049 = vmul.f32 %v1873, %v2034
        %v2050 = vmul.f32 %v1874, %v2034
        %v2051 = vmul.f32 %v1875, %v2034
        %v2052 = vmul.f32 %v1876, %v2034
        %v2053 = vmul.f32 %v1877, %v2034
        %v2054 = vmul.f32 %v1878, %v2034
        %v2055 = vmul.f32 %v1879, %v2034
        %v2056 = vmul.f32 %v1880, %v2034
        %v2057 = vmul.f32 %v1881, %v2034
        %v2058 = vmul.f32 %v1882, %v2034
        %v2059 = vmul.f32 %v1883, %v2034
        %v2060 = vmul.f32 %v1884, %v2034
        %v2061 = vmul.f32 %v1885, %v2034
        %v2062 = vmul.f32 %v1886, %v2034
        %v2063 = vmul.f32 %v1887, %v2034
        %v2064 = vmul.f32 %v1888, %v2034
        %v2065 = vmul.f32 %v1889, %v2034
        %v2066 = vmul.f32 %v1890, %v2034
        %v2067 = vadd.f32 %v1999, %v2035
        %v2068 = vadd.f32 %v2000, %v2036
        %v2069 = vadd.f32 %v2001, %v2037
        %v2070 = vadd.f32 %v2002, %v2038
        %v2071 = vadd.f32 %v2003, %v2039
        %v2072 = vadd.f32 %v2004, %v2040
        %v2073 = vadd.f32 %v2005, %v2041
        %v2074 = vadd.f32 %v2006, %v2042
        %v2075 = vadd.f32 %v2007, %v2043
        %v2076 = vadd.f32 %v2008, %v2044
        %v2077 = vadd.f32 %v2009, %v2045
        %v2078 = vadd.f32 %v2010, %v2046
        %v2079 = vadd.f32 %v2011, %v2047
        %v2080 = vadd.f32 %v2012, %v2048
        %v2081 = vadd.f32 %v2013, %v2049
        %v2082 = vadd.f32 %v2014, %v2050
        %v2083 = vadd.f32 %v2015, %v2051
        %v2084 = vadd.f32 %v2016, %v2052
        %v2085 = vadd.f32 %v2017, %v2053
        %v2086 = vadd.f32 %v2018, %v2054
        %v2087 = vadd.f32 %v2019, %v2055
        %v2088 = vadd.f32 %v2020, %v2056
        %v2089 = vadd.f32 %v2021, %v2057
        %v2090 = vadd.f32 %v2022, %v2058
        %v2091 = vadd.f32 %v2023, %v2059
        %v2092 = vadd.f32 %v2024, %v2060
        %v2093 = vadd.f32 %v2025, %v2061
        %v2094 = vadd.f32 %v2026, %v2062
        %v2095 = vadd.f32 %v2027, %v2063
        %v2096 = vadd.f32 %v2028, %v2064
        %v2097 = vadd.f32 %v2029, %v2065
        %v2098 = vadd.f32 %v2030, %v2066
        %v2099 = vlaneseq
        %v2100 = vshrl.u32 %v2099, 7
        %v2101 = vsub.s32 0, %v2100
        %v2102 = vrot.slane %v1766, %v2101
        %v2103 = vmul.f32 %v1789, %v2102
        %v2104 = vmul.f32 %v1790, %v2102
        %v2105 = vmul.f32 %v1791, %v2102
        %v2106 = vmul.f32 %v1792, %v2102
        %v2107 = vmul.f32 %v1793, %v2102
        %v2108 = vmul.f32 %v1794, %v2102
        %v2109 = vmul.f32 %v1795, %v2102
        %v2110 = vmul.f32 %v1796, %v2102
        %v2111 = vmul.f32 %v1797, %v2102
        %v2112 = vmul.f32 %v1798, %v2102
        %v2113 = vmul.f32 %v1799, %v2102
        %v2114 = vmul.f32 %v1800, %v2102
        %v2115 = vmul.f32 %v1801, %v2102
        %v2116 = vmul.f32 %v1802, %v2102
        %v2117 = vmul.f32 %v1803, %v2102
        %v2118 = vmul.f32 %v1804, %v2102
        %v2119 = vmul.f32 %v1805, %v2102
        %v2120 = vmul.f32 %v1806, %v2102
        %v2121 = vmul.f32 %v1807, %v2102
        %v2122 = vmul.f32 %v1808, %v2102
        %v2123 = vmul.f32 %v1809, %v2102
        %v2124 = vmul.f32 %v1810, %v2102
        %v2125 = vmul.f32 %v1811, %v2102
        %v2126 = vmul.f32 %v1812, %v2102
        %v2127 = vmul.f32 %v1813, %v2102
        %v2128 = vmul.f32 %v1814, %v2102
        %v2129 = vmul.f32 %v1815, %v2102
        %v2130 = vmul.f32 %v1816, %v2102
        %v2131 = vmul.f32 %v1817, %v2102
        %v2132 = vmul.f32 %v1818, %v2102
        %v2133 = vmul.f32 %v1819, %v2102
        %v2134 = vmul.f32 %v1820, %v2102
        %v2135 = vadd.f32 %v2067, %v2103
        %v2136 = vadd.f32 %v2068, %v2104
        %v2137 = vadd.f32 %v2069, %v2105
        %v2138 = vadd.f32 %v2070, %v2106
        %v2139 = vadd.f32 %v2071, %v2107
        %v2140 = vadd.f32 %v2072, %v2108
        %v2141 = vadd.f32 %v2073, %v2109
        %v2142 = vadd.f32 %v2074, %v2110
        %v2143 = vadd.f32 %v2075, %v2111
        %v2144 = vadd.f32 %v2076, %v2112
        %v2145 = vadd.f32 %v2077, %v2113
        %v2146 = vadd.f32 %v2078, %v2114
        %v2147 = vadd.f32 %v2079, %v2115
        %v2148 = vadd.f32 %v2080, %v2116
        %v2149 = vadd.f32 %v2081, %v2117
        %v2150 = vadd.f32 %v2082, %v2118
        %v2151 = vadd.f32 %v2083, %v2119
        %v2152 = vadd.f32 %v2084, %v2120
        %v2153 = vadd.f32 %v2085, %v2121
        %v2154 = vadd.f32 %v2086, %v2122
        %v2155 = vadd.f32 %v2087, %v2123
        %v2156 = vadd.f32 %v2088, %v2124
        %v2157 = vadd.f32 %v2089, %v2125
        %v2158 = vadd.f32 %v2090, %v2126
        %v2159 = vadd.f32 %v2091, %v2127
        %v2160 = vadd.f32 %v2092, %v2128
        %v2161 = vadd.f32 %v2093, %v2129
        %v2162 = vadd.f32 %v2094, %v2130
        %v2163 = vadd.f32 %v2095, %v2131
        %v2164 = vadd.f32 %v2096, %v2132
        %v2165 = vadd.f32 %v2097, %v2133
        %v2166 = vadd.f32 %v2098, %v2134
        %v2167 = vlaneseq
        %v2168 = vshrl.u32 %v2167, 7
        %v2169 = vsub.s32 1, %v2168
        %v2170 = vrot.slane %v1766, %v2169
        %v2171 = vmul.f32 %v1825, %v2170
        %v2172 = vmul.f32 %v1826, %v2170
        %v2173 = vmul.f32 %v1827, %v2170
        %v2174 = vmul.f32 %v1828, %v2170
        %v2175 = vmul.f32 %v1829, %v2170
        %v2176 = vmul.f32 %v1830, %v2170
        %v2177 = vmul.f32 %v1831, %v2170
        %v2178 = vmul.f32 %v1832, %v2170
        %v2179 = vmul.f32 %v1833, %v2170
        %v2180 = vmul.f32 %v1834, %v2170
        %v2181 = vmul.f32 %v1835, %v2170
        %v2182 = vmul.f32 %v1836, %v2170
        %v2183 = vmul.f32 %v1837, %v2170
        %v2184 = vmul.f32 %v1838, %v2170
        %v2185 = vmul.f32 %v1839, %v2170
        %v2186 = vmul.f32 %v1840, %v2170
        %v2187 = vmul.f32 %v1841, %v2170
        %v2188 = vmul.f32 %v1842, %v2170
        %v2189 = vmul.f32 %v1843, %v2170
        %v2190 = vmul.f32 %v1844, %v2170
        %v2191 = vmul.f32 %v1845, %v2170
        %v2192 = vmul.f32 %v1846, %v2170
        %v2193 = vmul.f32 %v1847, %v2170
        %v2194 = vmul.f32 %v1848, %v2170
        %v2195 = vmul.f32 %v1849, %v2170
        %v2196 = vmul.f32 %v1850, %v2170
        %v2197 = vmul.f32 %v1851, %v2170
        %v2198 = vmul.f32 %v1852, %v2170
        %v2199 = vmul.f32 %v1853, %v2170
        %v2200 = vmul.f32 %v1854, %v2170
        %v2201 = vmul.f32 %v1855, %v2170
        %v2202 = vmul.f32 %v1856, %v2170
        %v2203 = vadd.f32 %v2135, %v2171
        %v2204 = vadd.f32 %v2136, %v2172
        %v2205 = vadd.f32 %v2137, %v2173
        %v2206 = vadd.f32 %v2138, %v2174
        %v2207 = vadd.f32 %v2139, %v2175
        %v2208 = vadd.f32 %v2140, %v2176
        %v2209 = vadd.f32 %v2141, %v2177
        %v2210 = vadd.f32 %v2142, %v2178
        %v2211 = vadd.f32 %v2143, %v2179
        %v2212 = vadd.f32 %v2144, %v2180
        %v2213 = vadd.f32 %v2145, %v2181
        %v2214 = vadd.f32 %v2146, %v2182
        %v2215 = vadd.f32 %v2147, %v2183
        %v2216 = vadd.f32 %v2148, %v2184
        %v2217 = vadd.f32 %v2149, %v2185
        %v2218 = vadd.f32 %v2150, %v2186
        %v2219 = vadd.f32 %v2151, %v2187
        %v2220 = vadd.f32 %v2152, %v2188
        %v2221 = vadd.f32 %v2153, %v2189
        %v2222 = vadd.f32 %v2154, %v2190
        %v2223 = vadd.f32 %v2155, %v2191
        %v2224 = vadd.f32 %v2156, %v2192
        %v2225 = vadd.f32 %v2157, %v2193
        %v2226 = vadd.f32 %v2158, %v2194
        %v2227 = vadd.f32 %v2159, %v2195
        %v2228 = vadd.f32 %v2160, %v2196
        %v2229 = vadd.f32 %v2161, %v2197
        %v2230 = vadd.f32 %v2162, %v2198
        %v2231 = vadd.f32 %v2163, %v2199
        %v2232 = vadd.f32 %v2164, %v2200
        %v2233 = vadd.f32 %v2165, %v2201
        %v2234 = vadd.f32 %v2166, %v2202
        %v2235 = vlaneseq
        %v2236 = vshrl.u32 %v2235, 7
        %v2237 = vsub.s32 2, %v2236
        %v2238 = vrot.slane %v1766, %v2237
        %v2239 = vmul.f32 %v1861, %v2238
        %v2240 = vmul.f32 %v1862, %v2238
        %v2241 = vmul.f32 %v1863, %v2238
        %v2242 = vmul.f32 %v1864, %v2238
        %v2243 = vmul.f32 %v1865, %v2238
        %v2244 = vmul.f32 %v1866, %v2238
        %v2245 = vmul.f32 %v1867, %v2238
        %v2246 = vmul.f32 %v1868, %v2238
        %v2247 = vmul.f32 %v1869, %v2238
        %v2248 = vmul.f32 %v1870, %v2238
        %v2249 = vmul.f32 %v1871, %v2238
        %v2250 = vmul.f32 %v1872, %v2238
        %v2251 = vmul.f32 %v1873, %v2238
        %v2252 = vmul.f32 %v1874, %v2238
        %v2253 = vmul.f32 %v1875, %v2238
        %v2254 = vmul.f32 %v1876, %v2238
        %v2255 = vmul.f32 %v1877, %v2238
        %v2256 = vmul.f32 %v1878, %v2238
        %v2257 = vmul.f32 %v1879, %v2238
        %v2258 = vmul.f32 %v1880, %v2238
        %v2259 = vmul.f32 %v1881, %v2238
        %v2260 = vmul.f32 %v1882, %v2238
        %v2261 = vmul.f32 %v1883, %v2238
        %v2262 = vmul.f32 %v1884, %v2238
        %v2263 = vmul.f32 %v1885, %v2238
        %v2264 = vmul.f32 %v1886, %v2238
        %v2265 = vmul.f32 %v1887, %v2238
        %v2266 = vmul.f32 %v1888, %v2238
        %v2267 = vmul.f32 %v1889, %v2238
        %v2268 = vmul.f32 %v1890, %v2238
        %v2269 = vmul.f32 %v1891, %v2238
        %v2270 = vmul.f32 %v1892, %v2238
        %v2271 = vadd.f32 %v2203, %v2239
        %v2272 = vadd.f32 %v2204, %v2240
        %v2273 = vadd.f32 %v2205, %v2241
        %v2274 = vadd.f32 %v2206, %v2242
        %v2275 = vadd.f32 %v2207, %v2243
        %v2276 = vadd.f32 %v2208, %v2244
        %v2277 = vadd.f32 %v2209, %v2245
        %v2278 = vadd.f32 %v2210, %v2246
        %v2279 = vadd.f32 %v2211, %v2247
        %v2280 = vadd.f32 %v2212, %v2248
        %v2281 = vadd.f32 %v2213, %v2249
        %v2282 = vadd.f32 %v2214, %v2250
        %v2283 = vadd.f32 %v2215, %v2251
        %v2284 = vadd.f32 %v2216, %v2252
        %v2285 = vadd.f32 %v2217, %v2253
        %v2286 = vadd.f32 %v2218, %v2254
        %v2287 = vadd.f32 %v2219, %v2255
        %v2288 = vadd.f32 %v2220, %v2256
        %v2289 = vadd.f32 %v2221, %v2257
        %v2290 = vadd.f32 %v2222, %v2258
        %v2291 = vadd.f32 %v2223, %v2259
        %v2292 = vadd.f32 %v2224, %v2260
        %v2293 = vadd.f32 %v2225, %v2261
        %v2294 = vadd.f32 %v2226, %v2262
        %v2295 = vadd.f32 %v2227, %v2263
        %v2296 = vadd.f32 %v2228, %v2264
        %v2297 = vadd.f32 %v2229, %v2265
        %v2298 = vadd.f32 %v2230, %v2266
        %v2299 = vadd.f32 %v2231, %v2267
        %v2300 = vadd.f32 %v2232, %v2268
        %v2301 = vadd.f32 %v2233, %v2269
        %v2302 = vadd.f32 %v2234, %v2270
        %v2303 = vlaneseq
        %v2304 = vshrl.u32 %v2303, 7
        %v2305 = vsub.s32 0, %v2304
        %v2306 = vrot.slane %v1767, %v2305
        %v2307 = vmul.f32 %v1791, %v2306
        %v2308 = vmul.f32 %v1792, %v2306
        %v2309 = vmul.f32 %v1793, %v2306
        %v2310 = vmul.f32 %v1794, %v2306
        %v2311 = vmul.f32 %v1795, %v2306
        %v2312 = vmul.f32 %v1796, %v2306
        %v2313 = vmul.f32 %v1797, %v2306
        %v2314 = vmul.f32 %v1798, %v2306
        %v2315 = vmul.f32 %v1799, %v2306
        %v2316 = vmul.f32 %v1800, %v2306
        %v2317 = vmul.f32 %v1801, %v2306
        %v2318 = vmul.f32 %v1802, %v2306
        %v2319 = vmul.f32 %v1803, %v2306
        %v2320 = vmul.f32 %v1804, %v2306
        %v2321 = vmul.f32 %v1805, %v2306
        %v2322 = vmul.f32 %v1806, %v2306
        %v2323 = vmul.f32 %v1807, %v2306
        %v2324 = vmul.f32 %v1808, %v2306
        %v2325 = vmul.f32 %v1809, %v2306
        %v2326 = vmul.f32 %v1810, %v2306
        %v2327 = vmul.f32 %v1811, %v2306
        %v2328 = vmul.f32 %v1812, %v2306
        %v2329 = vmul.f32 %v1813, %v2306
        %v2330 = vmul.f32 %v1814, %v2306
        %v2331 = vmul.f32 %v1815, %v2306
        %v2332 = vmul.f32 %v1816, %v2306
        %v2333 = vmul.f32 %v1817, %v2306
        %v2334 = vmul.f32 %v1818, %v2306
        %v2335 = vmul.f32 %v1819, %v2306
        %v2336 = vmul.f32 %v1820, %v2306
        %v2337 = vmul.f32 %v1821, %v2306
        %v2338 = vmul.f32 %v1822, %v2306
        %v2339 = vadd.f32 %v2271, %v2307
        %v2340 = vadd.f32 %v2272, %v2308
        %v2341 = vadd.f32 %v2273, %v2309
        %v2342 = vadd.f32 %v2274, %v2310
        %v2343 = vadd.f32 %v2275, %v2311
        %v2344 = vadd.f32 %v2276, %v2312
        %v2345 = vadd.f32 %v2277, %v2313
        %v2346 = vadd.f32 %v2278, %v2314
        %v2347 = vadd.f32 %v2279, %v2315
        %v2348 = vadd.f32 %v2280, %v2316
        %v2349 = vadd.f32 %v2281, %v2317
        %v2350 = vadd.f32 %v2282, %v2318
        %v2351 = vadd.f32 %v2283, %v2319
        %v2352 = vadd.f32 %v2284, %v2320
        %v2353 = vadd.f32 %v2285, %v2321
        %v2354 = vadd.f32 %v2286, %v2322
        %v2355 = vadd.f32 %v2287, %v2323
        %v2356 = vadd.f32 %v2288, %v2324
        %v2357 = vadd.f32 %v2289, %v2325
        %v2358 = vadd.f32 %v2290, %v2326
        %v2359 = vadd.f32 %v2291, %v2327
        %v2360 = vadd.f32 %v2292, %v2328
        %v2361 = vadd.f32 %v2293, %v2329
        %v2362 = vadd.f32 %v2294, %v2330
        %v2363 = vadd.f32 %v2295, %v2331
        %v2364 = vadd.f32 %v2296, %v2332
        %v2365 = vadd.f32 %v2297, %v2333
        %v2366 = vadd.f32 %v2298, %v2334
        %v2367 = vadd.f32 %v2299, %v2335
        %v2368 = vadd.f32 %v2300, %v2336
        %v2369 = vadd.f32 %v2301, %v2337
        %v2370 = vadd.f32 %v2302, %v2338
        %v2371 = vlaneseq
        %v2372 = vshrl.u32 %v2371, 7
        %v2373 = vsub.s32 1, %v2372
        %v2374 = vrot.slane %v1767, %v2373
        %v2375 = vmul.f32 %v1827, %v2374
        %v2376 = vmul.f32 %v1828, %v2374
        %v2377 = vmul.f32 %v1829, %v2374
        %v2378 = vmul.f32 %v1830, %v2374
        %v2379 = vmul.f32 %v1831, %v2374
        %v2380 = vmul.f32 %v1832, %v2374
        %v2381 = vmul.f32 %v1833, %v2374
        %v2382 = vmul.f32 %v1834, %v2374
        %v2383 = vmul.f32 %v1835, %v2374
        %v2384 = vmul.f32 %v1836, %v2374
        %v2385 = vmul.f32 %v1837, %v2374
        %v2386 = vmul.f32 %v1838, %v2374
        %v2387 = vmul.f32 %v1839, %v2374
        %v2388 = vmul.f32 %v1840, %v2374
        %v2389 = vmul.f32 %v1841, %v2374
        %v2390 = vmul.f32 %v1842, %v2374
        %v2391 = vmul.f32 %v1843, %v2374
        %v2392 = vmul.f32 %v1844, %v2374
        %v2393 = vmul.f32 %v1845, %v2374
        %v2394 = vmul.f32 %v1846, %v2374
        %v2395 = vmul.f32 %v1847, %v2374
        %v2396 = vmul.f32 %v1848, %v2374
        %v2397 = vmul.f32 %v1849, %v2374
        %v2398 = vmul.f32 %v1850, %v2374
        %v2399 = vmul.f32 %v1851, %v2374
        %v2400 = vmul.f32 %v1852, %v2374
        %v2401 = vmul.f32 %v1853, %v2374
        %v2402 = vmul.f32 %v1854, %v2374
        %v2403 = vmul.f32 %v1855, %v2374
        %v2404 = vmul.f32 %v1856, %v2374
        %v2405 = vmul.f32 %v1857, %v2374
        %v2406 = vmul.f32 %v1858, %v2374
        %v2407 = vadd.f32 %v2339, %v2375
        %v2408 = vadd.f32 %v2340, %v2376
        %v2409 = vadd.f32 %v2341, %v2377
        %v2410 = vadd.f32 %v2342, %v2378
        %v2411 = vadd.f32 %v2343, %v2379
        %v2412 = vadd.f32 %v2344, %v2380
        %v2413 = vadd.f32 %v2345, %v2381
        %v2414 = vadd.f32 %v2346, %v2382
        %v2415 = vadd.f32 %v2347, %v2383
        %v2416 = vadd.f32 %v2348, %v2384
        %v2417 = vadd.f32 %v2349, %v2385
        %v2418 = vadd.f32 %v2350, %v2386
        %v2419 = vadd.f32 %v2351, %v2387
        %v2420 = vadd.f32 %v2352, %v2388
        %v2421 = vadd.f32 %v2353, %v2389
        %v2422 = vadd.f32 %v2354, %v2390
        %v2423 = vadd.f32 %v2355, %v2391
        %v2424 = vadd.f32 %v2356, %v2392
        %v2425 = vadd.f32 %v2357, %v2393
        %v2426 = vadd.f32 %v2358, %v2394
        %v2427 = vadd.f32 %v2359, %v2395
        %v2428 = vadd.f32 %v2360, %v2396
        %v2429 = vadd.f32 %v2361, %v2397
        %v2430 = vadd.f32 %v2362, %v2398
        %v2431 = vadd.f32 %v2363, %v2399
        %v2432 = vadd.f32 %v2364, %v2400
        %v2433 = vadd.f32 %v2365, %v2401
        %v2434 = vadd.f32 %v2366, %v2402
        %v2435 = vadd.f32 %v2367, %v2403
        %v2436 = vadd.f32 %v2368, %v2404
        %v2437 = vadd.f32 %v2369, %v2405
        %v2438 = vadd.f32 %v2370, %v2406
        %v2439 = vlaneseq
        %v2440 = vshrl.u32 %v2439, 7
        %v2441 = vsub.s32 2, %v2440
        %v2442 = vrot.slane %v1767, %v2441
        %v2443 = vmul.f32 %v1863, %v2442
        %v2444 = vmul.f32 %v1864, %v2442
        %v2445 = vmul.f32 %v1865, %v2442
        %v2446 = vmul.f32 %v1866, %v2442
        %v2447 = vmul.f32 %v1867, %v2442
        %v2448 = vmul.f32 %v1868, %v2442
        %v2449 = vmul.f32 %v1869, %v2442
        %v2450 = vmul.f32 %v1870, %v2442
        %v2451 = vmul.f32 %v1871, %v2442
        %v2452 = vmul.f32 %v1872, %v2442
        %v2453 = vmul.f32 %v1873, %v2442
        %v2454 = vmul.f32 %v1874, %v2442
        %v2455 = vmul.f32 %v1875, %v2442
        %v2456 = vmul.f32 %v1876, %v2442
        %v2457 = vmul.f32 %v1877, %v2442
        %v2458 = vmul.f32 %v1878, %v2442
        %v2459 = vmul.f32 %v1879, %v2442
        %v2460 = vmul.f32 %v1880, %v2442
        %v2461 = vmul.f32 %v1881, %v2442
        %v2462 = vmul.f32 %v1882, %v2442
        %v2463 = vmul.f32 %v1883, %v2442
        %v2464 = vmul.f32 %v1884, %v2442
        %v2465 = vmul.f32 %v1885, %v2442
        %v2466 = vmul.f32 %v1886, %v2442
        %v2467 = vmul.f32 %v1887, %v2442
        %v2468 = vmul.f32 %v1888, %v2442
        %v2469 = vmul.f32 %v1889, %v2442
        %v2470 = vmul.f32 %v1890, %v2442
        %v2471 = vmul.f32 %v1891, %v2442
        %v2472 = vmul.f32 %v1892, %v2442
        %v2473 = vmul.f32 %v1893, %v2442
        %v2474 = vmul.f32 %v1894, %v2442
        %v2475 = vadd.f32 %v2407, %v2443
        %v2476 = vadd.f32 %v2408, %v2444
        %v2477 = vadd.f32 %v2409, %v2445
        %v2478 = vadd.f32 %v2410, %v2446
        %v2479 = vadd.f32 %v2411, %v2447
        %v2480 = vadd.f32 %v2412, %v2448
        %v2481 = vadd.f32 %v2413, %v2449
        %v2482 = vadd.f32 %v2414, %v2450
        %v2483 = vadd.f32 %v2415, %v2451
        %v2484 = vadd.f32 %v2416, %v2452
        %v2485 = vadd.f32 %v2417, %v2453
        %v2486 = vadd.f32 %v2418, %v2454
        %v2487 = vadd.f32 %v2419, %v2455
        %v2488 = vadd.f32 %v2420, %v2456
        %v2489 = vadd.f32 %v2421, %v2457
        %v2490 = vadd.f32 %v2422, %v2458
        %v2491 = vadd.f32 %v2423, %v2459
        %v2492 = vadd.f32 %v2424, %v2460
        %v2493 = vadd.f32 %v2425, %v2461
        %v2494 = vadd.f32 %v2426, %v2462
        %v2495 = vadd.f32 %v2427, %v2463
        %v2496 = vadd.f32 %v2428, %v2464
        %v2497 = vadd.f32 %v2429, %v2465
        %v2498 = vadd.f32 %v2430, %v2466
        %v2499 = vadd.f32 %v2431, %v2467
        %v2500 = vadd.f32 %v2432, %v2468
        %v2501 = vadd.f32 %v2433, %v2469
        %v2502 = vadd.f32 %v2434, %v2470
        %v2503 = vadd.f32 %v2435, %v2471
        %v2504 = vadd.f32 %v2436, %v2472
        %v2505 = vadd.f32 %v2437, %v2473
        %v2506 = vadd.f32 %v2438, %v2474
        %v2507 = vpack.c.bf16 %v2476, %v2475
        %v2508 = vpack.c.bf16 %v2478, %v2477
        %v2509 = vpack.c.bf16 %v2480, %v2479
        %v2510 = vpack.c.bf16 %v2482, %v2481
        %v2511 = vpack.c.bf16 %v2484, %v2483
        %v2512 = vpack.c.bf16 %v2486, %v2485
        %v2513 = vpack.c.bf16 %v2488, %v2487
        %v2514 = vpack.c.bf16 %v2490, %v2489
        %v2515 = vpack.c.bf16 %v2492, %v2491
        %v2516 = vpack.c.bf16 %v2494, %v2493
        %v2517 = vpack.c.bf16 %v2496, %v2495
        %v2518 = vpack.c.bf16 %v2498, %v2497
        %v2519 = vpack.c.bf16 %v2500, %v2499
        %v2520 = vpack.c.bf16 %v2502, %v2501
        %v2521 = vpack.c.bf16 %v2504, %v2503
        %v2522 = vpack.c.bf16 %v2506, %v2505
        %v2524 = vlaneseq
        %v2525 = vshrl.u32 %v2524, 7
        %v2526 = vsub.s32 0, %v2525
        %v2527 = vrot.slane %v1786, %v2526
        %v2545 = vunpack.c.l.b16 %v1769
        %v2546 = vunpack.c.l.b16 %v1770
        %v2547 = vunpack.c.l.b16 %v1771
        %v2548 = vunpack.c.l.b16 %v1772
        %v2549 = vunpack.c.l.b16 %v1773
        %v2550 = vunpack.c.l.b16 %v1774
        %v2551 = vunpack.c.l.b16 %v1775
        %v2552 = vunpack.c.l.b16 %v1776
        %v2553 = vunpack.c.l.b16 %v1777
        %v2554 = vunpack.c.l.b16 %v1778
        %v2555 = vunpack.c.l.b16 %v1779
        %v2556 = vunpack.c.l.b16 %v1780
        %v2557 = vunpack.c.l.b16 %v1781
        %v2558 = vunpack.c.l.b16 %v1782
        %v2559 = vunpack.c.l.b16 %v1783
        %v2560 = vunpack.c.l.b16 %v1784
        %v2561 = vpack.c.b16 %v2546, %v2545
        %v2562 = vpack.c.b16 %v2548, %v2547
        %v2563 = vpack.c.b16 %v2550, %v2549
        %v2564 = vpack.c.b16 %v2552, %v2551
        %v2565 = vpack.c.b16 %v2554, %v2553
        %v2566 = vpack.c.b16 %v2556, %v2555
        %v2567 = vpack.c.b16 %v2558, %v2557
        %v2568 = vpack.c.b16 %v2560, %v2559
        %2577 = vmatprep.subr.bf16.mxu0 0
        %2578 = vmatpush1.bf16.msra.mxu0 %v2561
        %2579 = vmatprep.subr.bf16.mxu0 0
        %2580 = vmatpush1.bf16.msra.mxu0 %v2562
        %2581 = vmatprep.subr.bf16.mxu0 0
        %2582 = vmatpush1.bf16.msra.mxu0 %v2563
        %2583 = vmatprep.subr.bf16.mxu0 0
        %2584 = vmatpush1.bf16.msra.mxu0 %v2564
        %2585 = vmatprep.subr.bf16.mxu0 0
        %2586 = vmatpush1.bf16.msra.mxu0 %v2565
        %2587 = vmatprep.subr.bf16.mxu0 0
        %2588 = vmatpush1.bf16.msra.mxu0 %v2566
        %2589 = vmatprep.subr.bf16.mxu0 0
        %2590 = vmatpush1.bf16.msra.mxu0 %v2567
        %2591 = vmatprep.subr.bf16.mxu0 0
        %2592 = vmatpush1.bf16.msra.mxu0 %v2568
        %2593 = vmatprep.subr.bf16.mxu0 0
        %2594 = vmatpush1.bf16.msra.mxu0 0
        %2595 = vmatprep.subr.bf16.mxu0 0
        %2596 = vmatpush1.bf16.msra.mxu0 0
        %2597 = vmatprep.subr.bf16.mxu0 0
        %2598 = vmatpush1.bf16.msra.mxu0 0
        %2599 = vmatprep.subr.bf16.mxu0 0
        %2600 = vmatpush1.bf16.msra.mxu0 0
        %2601 = vmatprep.subr.bf16.mxu0 0
        %2602 = vmatpush1.bf16.msra.mxu0 0
        %2603 = vmatprep.subr.bf16.mxu0 0
        %2604 = vmatpush1.bf16.msra.mxu0 0
        %2605 = vmatprep.subr.bf16.mxu0 0
        %2606 = vmatpush1.bf16.msra.mxu0 0
        %2607 = vmatprep.subr.bf16.mxu0 0
        %2608 = vmatpush1.bf16.msra.mxu0 0
        %2609 = vmatprep.mubr.bf16.mxu0 0
        %2610 = vmatmul.mubr.bf16.gmra.mrb[0].mxu0 %v2507
        %v2611 = vpop.f32.mrb[0].mxu0
        %v2612 = vadd.f32 %v2527, %v2611
        %v2613 = vpop.f32.mrb[0].mxu0
        %v2614 = vpop.f32.mrb[0].mxu0
        %v2615 = vadd.f32 %v2527, %v2614
        %v2616 = vpop.f32.mrb[0].mxu0
        %2617 = vmatprep.mubr.bf16.mxu0 0
        %2618 = vmatmul.mubr.bf16.gmra.mrb[0].mxu0 %v2508
        %v2619 = vpop.f32.mrb[0].mxu0
        %v2620 = vadd.f32 %v2527, %v2619
        %v2621 = vpop.f32.mrb[0].mxu0
        %v2622 = vpop.f32.mrb[0].mxu0
        %v2623 = vadd.f32 %v2527, %v2622
        %v2624 = vpop.f32.mrb[0].mxu0
        %2625 = vmatprep.mubr.bf16.mxu0 0
        %2626 = vmatmul.mubr.bf16.gmra.mrb[0].mxu0 %v2509
        %v2627 = vpop.f32.mrb[0].mxu0
        %v2628 = vadd.f32 %v2527, %v2627
        %v2629 = vpop.f32.mrb[0].mxu0
        %v2630 = vpop.f32.mrb[0].mxu0
        %v2631 = vadd.f32 %v2527, %v2630
        %v2632 = vpop.f32.mrb[0].mxu0
        %2633 = vmatprep.mubr.bf16.mxu0 0
        %2634 = vmatmul.mubr.bf16.gmra.mrb[0].mxu0 %v2510
        %v2635 = vpop.f32.mrb[0].mxu0
        %v2636 = vadd.f32 %v2527, %v2635
        %v2637 = vpop.f32.mrb[0].mxu0
        %v2638 = vpop.f32.mrb[0].mxu0
        %v2639 = vadd.f32 %v2527, %v2638
        %v2640 = vpop.f32.mrb[0].mxu0
        %2641 = vmatprep.mubr.bf16.mxu0 0
        %2642 = vmatmul.mubr.bf16.gmra.mrb[0].mxu0 %v2511
        %v2643 = vpop.f32.mrb[0].mxu0
        %v2644 = vadd.f32 %v2527, %v2643
        %v2645 = vpop.f32.mrb[0].mxu0
        %v2646 = vpop.f32.mrb[0].mxu0
        %v2647 = vadd.f32 %v2527, %v2646
        %v2648 = vpop.f32.mrb[0].mxu0
        %2649 = vmatprep.mubr.bf16.mxu0 0
        %2650 = vmatmul.mubr.bf16.gmra.mrb[0].mxu0 %v2512
        %v2651 = vpop.f32.mrb[0].mxu0
        %v2652 = vadd.f32 %v2527, %v2651
        %v2653 = vpop.f32.mrb[0].mxu0
        %v2654 = vpop.f32.mrb[0].mxu0
        %v2655 = vadd.f32 %v2527, %v2654
        %v2656 = vpop.f32.mrb[0].mxu0
        %2657 = vmatprep.mubr.bf16.mxu0 0
        %2658 = vmatmul.mubr.bf16.gmra.mrb[0].mxu0 %v2513
        %v2659 = vpop.f32.mrb[0].mxu0
        %v2660 = vadd.f32 %v2527, %v2659
        %v2661 = vpop.f32.mrb[0].mxu0
        %v2662 = vpop.f32.mrb[0].mxu0
        %v2663 = vadd.f32 %v2527, %v2662
        %v2664 = vpop.f32.mrb[0].mxu0
        %2665 = vmatprep.mubr.bf16.mxu0 0
        %2666 = vmatmul.mubr.bf16.gmra.mrb[0].mxu0 %v2514
        %v2667 = vpop.f32.mrb[0].mxu0
        %v2668 = vadd.f32 %v2527, %v2667
        %v2669 = vpop.f32.mrb[0].mxu0
        %v2670 = vpop.f32.mrb[0].mxu0
        %v2671 = vadd.f32 %v2527, %v2670
        %v2672 = vpop.f32.mrb[0].mxu0
        %2673 = vmatprep.mubr.bf16.mxu0 0
        %2674 = vmatmul.mubr.bf16.gmra.mrb[0].mxu0 %v2515
        %v2675 = vpop.f32.mrb[0].mxu0
        %v2676 = vadd.f32 %v2527, %v2675
        %v2677 = vpop.f32.mrb[0].mxu0
        %v2678 = vpop.f32.mrb[0].mxu0
        %v2679 = vadd.f32 %v2527, %v2678
        %v2680 = vpop.f32.mrb[0].mxu0
        %2681 = vmatprep.mubr.bf16.mxu0 0
        %2682 = vmatmul.mubr.bf16.gmra.mrb[0].mxu0 %v2516
        %v2683 = vpop.f32.mrb[0].mxu0
        %v2684 = vadd.f32 %v2527, %v2683
        %v2685 = vpop.f32.mrb[0].mxu0
        %v2686 = vpop.f32.mrb[0].mxu0
        %v2687 = vadd.f32 %v2527, %v2686
        %v2688 = vpop.f32.mrb[0].mxu0
        %2689 = vmatprep.mubr.bf16.mxu0 0
        %2690 = vmatmul.mubr.bf16.gmra.mrb[0].mxu0 %v2517
        %v2691 = vpop.f32.mrb[0].mxu0
        %v2692 = vadd.f32 %v2527, %v2691
        %v2693 = vpop.f32.mrb[0].mxu0
        %v2694 = vpop.f32.mrb[0].mxu0
        %v2695 = vadd.f32 %v2527, %v2694
        %v2696 = vpop.f32.mrb[0].mxu0
        %2697 = vmatprep.mubr.bf16.mxu0 0
        %2698 = vmatmul.mubr.bf16.gmra.mrb[0].mxu0 %v2518
        %v2699 = vpop.f32.mrb[0].mxu0
        %v2700 = vadd.f32 %v2527, %v2699
        %v2701 = vpop.f32.mrb[0].mxu0
        %v2702 = vpop.f32.mrb[0].mxu0
        %v2703 = vadd.f32 %v2527, %v2702
        %v2704 = vpop.f32.mrb[0].mxu0
        %2705 = vmatprep.mubr.bf16.mxu0 0
        %2706 = vmatmul.mubr.bf16.gmra.mrb[0].mxu0 %v2519
        %v2707 = vpop.f32.mrb[0].mxu0
        %v2708 = vadd.f32 %v2527, %v2707
        %v2709 = vpop.f32.mrb[0].mxu0
        %v2710 = vpop.f32.mrb[0].mxu0
        %v2711 = vadd.f32 %v2527, %v2710
        %v2712 = vpop.f32.mrb[0].mxu0
        %2713 = vmatprep.mubr.bf16.mxu0 0
        %2714 = vmatmul.mubr.bf16.gmra.mrb[0].mxu0 %v2520
        %v2715 = vpop.f32.mrb[0].mxu0
        %v2716 = vadd.f32 %v2527, %v2715
        %v2717 = vpop.f32.mrb[0].mxu0
        %v2718 = vpop.f32.mrb[0].mxu0
        %v2719 = vadd.f32 %v2527, %v2718
        %v2720 = vpop.f32.mrb[0].mxu0
        %2721 = vmatprep.mubr.bf16.mxu0 0
        %2722 = vmatmul.mubr.bf16.gmra.mrb[0].mxu0 %v2521
        %v2723 = vpop.f32.mrb[0].mxu0
        %v2724 = vadd.f32 %v2527, %v2723
        %v2725 = vpop.f32.mrb[0].mxu0
        %v2726 = vpop.f32.mrb[0].mxu0
        %v2727 = vadd.f32 %v2527, %v2726
        %v2728 = vpop.f32.mrb[0].mxu0
        %2729 = vmatprep.mubr.bf16.mxu0 0
        %2730 = vmatmul.mubr.bf16.gmra.mrb[0].mxu0 %v2522
        %v2731 = vpop.f32.mrb[0].mxu0
        %v2732 = vadd.f32 %v2527, %v2731
        %v2733 = vpop.f32.mrb[0].mxu0
        %v2734 = vpop.f32.mrb[0].mxu0
        %v2735 = vadd.f32 %v2527, %v2734
        %v2736 = vpop.f32.mrb[0].mxu0
        %2737 = vdwg.mxu0
        %v2738 = vxor.u32 %v2612, 2147483648
        %v2739 = vxor.u32 %v2615, 2147483648
        %v2740 = vxor.u32 %v2620, 2147483648
        %v2741 = vxor.u32 %v2623, 2147483648
        %v2742 = vxor.u32 %v2628, 2147483648
        %v2743 = vxor.u32 %v2631, 2147483648
        %v2744 = vxor.u32 %v2636, 2147483648
        %v2745 = vxor.u32 %v2639, 2147483648
        %v2746 = vxor.u32 %v2644, 2147483648
        %v2747 = vxor.u32 %v2647, 2147483648
        %v2748 = vxor.u32 %v2652, 2147483648
        %v2749 = vxor.u32 %v2655, 2147483648
        %v2750 = vxor.u32 %v2660, 2147483648
        %v2751 = vxor.u32 %v2663, 2147483648
        %v2752 = vxor.u32 %v2668, 2147483648
        %v2753 = vxor.u32 %v2671, 2147483648
        %v2754 = vxor.u32 %v2676, 2147483648
        %v2755 = vxor.u32 %v2679, 2147483648
        %v2756 = vxor.u32 %v2684, 2147483648
        %v2757 = vxor.u32 %v2687, 2147483648
        %v2758 = vxor.u32 %v2692, 2147483648
        %v2759 = vxor.u32 %v2695, 2147483648
        %v2760 = vxor.u32 %v2700, 2147483648
        %v2761 = vxor.u32 %v2703, 2147483648
        %v2762 = vxor.u32 %v2708, 2147483648
        %v2763 = vxor.u32 %v2711, 2147483648
        %v2764 = vxor.u32 %v2716, 2147483648
        %v2765 = vxor.u32 %v2719, 2147483648
        %v2766 = vxor.u32 %v2724, 2147483648
        %v2767 = vxor.u32 %v2727, 2147483648
        %v2768 = vxor.u32 %v2732, 2147483648
        %v2769 = vxor.u32 %v2735, 2147483648
        %v2770 = vmul.f32 %v2738, 1.442695
        %v2771 = vpow.pop %v2770
        %v2772 = vmul.f32 %v2739, 1.442695
        %v2773 = vpow.pop %v2772
        %v2774 = vmul.f32 %v2740, 1.442695
        %v2775 = vpow.pop %v2774
        %v2776 = vmul.f32 %v2741, 1.442695
        %v2777 = vpow.pop %v2776
        %v2778 = vmul.f32 %v2742, 1.442695
        %v2779 = vpow.pop %v2778
        %v2780 = vmul.f32 %v2743, 1.442695
        %v2781 = vpow.pop %v2780
        %v2782 = vmul.f32 %v2744, 1.442695
        %v2783 = vpow.pop %v2782
        %v2784 = vmul.f32 %v2745, 1.442695
        %v2785 = vpow.pop %v2784
        %v2786 = vmul.f32 %v2746, 1.442695
        %v2787 = vpow.pop %v2786
        %v2788 = vmul.f32 %v2747, 1.442695
        %v2789 = vpow.pop %v2788
        %v2790 = vmul.f32 %v2748, 1.442695
        %v2791 = vpow.pop %v2790
        %v2792 = vmul.f32 %v2749, 1.442695
        %v2793 = vpow.pop %v2792
        %v2794 = vmul.f32 %v2750, 1.442695
        %v2795 = vpow.pop %v2794
        %v2796 = vmul.f32 %v2751, 1.442695
        %v2797 = vpow.pop %v2796
        %v2798 = vmul.f32 %v2752, 1.442695
        %v2799 = vpow.pop %v2798
        %v2800 = vmul.f32 %v2753, 1.442695
        %v2801 = vpow.pop %v2800
        %v2802 = vmul.f32 %v2754, 1.442695
        %v2803 = vpow.pop %v2802
        %v2804 = vmul.f32 %v2755, 1.442695
        %v2805 = vpow.pop %v2804
        %v2806 = vmul.f32 %v2756, 1.442695
        %v2807 = vpow.pop %v2806
        %v2808 = vmul.f32 %v2757, 1.442695
        %v2809 = vpow.pop %v2808
        %v2810 = vmul.f32 %v2758, 1.442695
        %v2811 = vpow.pop %v2810
        %v2812 = vmul.f32 %v2759, 1.442695
        %v2813 = vpow.pop %v2812
        %v2814 = vmul.f32 %v2760, 1.442695
        %v2815 = vpow.pop %v2814
        %v2816 = vmul.f32 %v2761, 1.442695
        %v2817 = vpow.pop %v2816
        %v2818 = vmul.f32 %v2762, 1.442695
        %v2819 = vpow.pop %v2818
        %v2820 = vmul.f32 %v2763, 1.442695
        %v2821 = vpow.pop %v2820
        %v2822 = vmul.f32 %v2764, 1.442695
        %v2823 = vpow.pop %v2822
        %v2824 = vmul.f32 %v2765, 1.442695
        %v2825 = vpow.pop %v2824
        %v2826 = vmul.f32 %v2766, 1.442695
        %v2827 = vpow.pop %v2826
        %v2828 = vmul.f32 %v2767, 1.442695
        %v2829 = vpow.pop %v2828
        %v2830 = vmul.f32 %v2768, 1.442695
        %v2831 = vpow.pop %v2830
        %v2832 = vmul.f32 %v2769, 1.442695
        %v2833 = vpow.pop %v2832
        %v2834 = vadd.f32 %v2771, 1.0
        %v2835 = vadd.f32 %v2773, 1.0
        %v2836 = vadd.f32 %v2775, 1.0
        %v2837 = vadd.f32 %v2777, 1.0
        %v2838 = vadd.f32 %v2779, 1.0
        %v2839 = vadd.f32 %v2781, 1.0
        %v2840 = vadd.f32 %v2783, 1.0
        %v2841 = vadd.f32 %v2785, 1.0
        %v2842 = vadd.f32 %v2787, 1.0
        %v2843 = vadd.f32 %v2789, 1.0
        %v2844 = vadd.f32 %v2791, 1.0
        %v2845 = vadd.f32 %v2793, 1.0
        %v2846 = vadd.f32 %v2795, 1.0
        %v2847 = vadd.f32 %v2797, 1.0
        %v2848 = vadd.f32 %v2799, 1.0
        %v2849 = vadd.f32 %v2801, 1.0
        %v2850 = vadd.f32 %v2803, 1.0
        %v2851 = vadd.f32 %v2805, 1.0
        %v2852 = vadd.f32 %v2807, 1.0
        %v2853 = vadd.f32 %v2809, 1.0
        %v2854 = vadd.f32 %v2811, 1.0
        %v2855 = vadd.f32 %v2813, 1.0
        %v2856 = vadd.f32 %v2815, 1.0
        %v2857 = vadd.f32 %v2817, 1.0
        %v2858 = vadd.f32 %v2819, 1.0
        %v2859 = vadd.f32 %v2821, 1.0
        %v2860 = vadd.f32 %v2823, 1.0
        %v2861 = vadd.f32 %v2825, 1.0
        %v2862 = vadd.f32 %v2827, 1.0
        %v2863 = vadd.f32 %v2829, 1.0
        %v2864 = vadd.f32 %v2831, 1.0
        %v2865 = vadd.f32 %v2833, 1.0
        %v2866 = vrcp.pop %v2834
        %v2867 = vmul.f32 1.0, %v2866
        %v2868 = vrcp.pop %v2835
        %v2869 = vmul.f32 1.0, %v2868
        %v2870 = vrcp.pop %v2836
        %v2871 = vmul.f32 1.0, %v2870
        %v2872 = vrcp.pop %v2837
        %v2873 = vmul.f32 1.0, %v2872
        %v2874 = vrcp.pop %v2838
        %v2875 = vmul.f32 1.0, %v2874
        %v2876 = vrcp.pop %v2839
        %v2877 = vmul.f32 1.0, %v2876
        %v2878 = vrcp.pop %v2840
        %v2879 = vmul.f32 1.0, %v2878
        %v2880 = vrcp.pop %v2841
        %v2881 = vmul.f32 1.0, %v2880
        %v2882 = vrcp.pop %v2842
        %v2883 = vmul.f32 1.0, %v2882
        %v2884 = vrcp.pop %v2843
        %v2885 = vmul.f32 1.0, %v2884
        %v2886 = vrcp.pop %v2844
        %v2887 = vmul.f32 1.0, %v2886
        %v2888 = vrcp.pop %v2845
        %v2889 = vmul.f32 1.0, %v2888
        %v2890 = vrcp.pop %v2846
        %v2891 = vmul.f32 1.0, %v2890
        %v2892 = vrcp.pop %v2847
        %v2893 = vmul.f32 1.0, %v2892
        %v2894 = vrcp.pop %v2848
        %v2895 = vmul.f32 1.0, %v2894
        %v2896 = vrcp.pop %v2849
        %v2897 = vmul.f32 1.0, %v2896
        %v2898 = vrcp.pop %v2850
        %v2899 = vmul.f32 1.0, %v2898
        %v2900 = vrcp.pop %v2851
        %v2901 = vmul.f32 1.0, %v2900
        %v2902 = vrcp.pop %v2852
        %v2903 = vmul.f32 1.0, %v2902
        %v2904 = vrcp.pop %v2853
        %v2905 = vmul.f32 1.0, %v2904
        %v2906 = vrcp.pop %v2854
        %v2907 = vmul.f32 1.0, %v2906
        %v2908 = vrcp.pop %v2855
        %v2909 = vmul.f32 1.0, %v2908
        %v2910 = vrcp.pop %v2856
        %v2911 = vmul.f32 1.0, %v2910
        %v2912 = vrcp.pop %v2857
        %v2913 = vmul.f32 1.0, %v2912
        %v2914 = vrcp.pop %v2858
        %v2915 = vmul.f32 1.0, %v2914
        %v2916 = vrcp.pop %v2859
        %v2917 = vmul.f32 1.0, %v2916
        %v2918 = vrcp.pop %v2860
        %v2919 = vmul.f32 1.0, %v2918
        %v2920 = vrcp.pop %v2861
        %v2921 = vmul.f32 1.0, %v2920
        %v2922 = vrcp.pop %v2862
        %v2923 = vmul.f32 1.0, %v2922
        %v2924 = vrcp.pop %v2863
        %v2925 = vmul.f32 1.0, %v2924
        %v2926 = vrcp.pop %v2864
        %v2927 = vmul.f32 1.0, %v2926
        %v2928 = vrcp.pop %v2865
        %v2929 = vmul.f32 1.0, %v2928
        %v2930 = vmul.f32 %v2612, %v2867
        %v2931 = vmul.f32 %v2615, %v2869
        %v2932 = vmul.f32 %v2620, %v2871
        %v2933 = vmul.f32 %v2623, %v2873
        %v2934 = vmul.f32 %v2628, %v2875
        %v2935 = vmul.f32 %v2631, %v2877
        %v2936 = vmul.f32 %v2636, %v2879
        %v2937 = vmul.f32 %v2639, %v2881
        %v2938 = vmul.f32 %v2644, %v2883
        %v2939 = vmul.f32 %v2647, %v2885
        %v2940 = vmul.f32 %v2652, %v2887
        %v2941 = vmul.f32 %v2655, %v2889
        %v2942 = vmul.f32 %v2660, %v2891
        %v2943 = vmul.f32 %v2663, %v2893
        %v2944 = vmul.f32 %v2668, %v2895
        %v2945 = vmul.f32 %v2671, %v2897
        %v2946 = vmul.f32 %v2676, %v2899
        %v2947 = vmul.f32 %v2679, %v2901
        %v2948 = vmul.f32 %v2684, %v2903
        %v2949 = vmul.f32 %v2687, %v2905
        %v2950 = vmul.f32 %v2692, %v2907
        %v2951 = vmul.f32 %v2695, %v2909
        %v2952 = vmul.f32 %v2700, %v2911
        %v2953 = vmul.f32 %v2703, %v2913
        %v2954 = vmul.f32 %v2708, %v2915
        %v2955 = vmul.f32 %v2711, %v2917
        %v2956 = vmul.f32 %v2716, %v2919
        %v2957 = vmul.f32 %v2719, %v2921
        %v2958 = vmul.f32 %v2724, %v2923
        %v2959 = vmul.f32 %v2727, %v2925
        %v2960 = vmul.f32 %v2732, %v2927
        %v2961 = vmul.f32 %v2735, %v2929
        %2962 = vst [vmem:[%s503 + $0x8] sm:$0xff] %v2930
        %2963 = vst [vmem:[%s503 + $0x10] sm:$0xff] %v2931
        %2964 = vst [vmem:[%s503 + $0x28] sm:$0xff] %v2932
        %2965 = vst [vmem:[%s503 + $0x30] sm:$0xff] %v2933
        %2966 = vst [vmem:[%s503 + $0x48] sm:$0xff] %v2934
        %2967 = vst [vmem:[%s503 + $0x50] sm:$0xff] %v2935
        %2968 = vst [vmem:[%s503 + $0x68] sm:$0xff] %v2936
        %2969 = vst [vmem:[%s503 + $0x70] sm:$0xff] %v2937
        %2970 = vst [vmem:[%s503 + $0x88] sm:$0xff] %v2938
        %2971 = vst [vmem:[%s503 + $0x90] sm:$0xff] %v2939
        %2972 = vst [vmem:[%s503 + $0xa8] sm:$0xff] %v2940
        %2973 = vst [vmem:[%s503 + $0xb0] sm:$0xff] %v2941
        %2974 = vst [vmem:[%s503 + $0xc8] sm:$0xff] %v2942
        %2975 = vst [vmem:[%s503 + $0xd0] sm:$0xff] %v2943
        %2976 = vst [vmem:[%s503 + $0xe8] sm:$0xff] %v2944
        %2977 = vst [vmem:[%s503 + $0xf0] sm:$0xff] %v2945
        %2978 = vst [vmem:[%s503 + $0x108] sm:$0xff] %v2946
        %2979 = vst [vmem:[%s503 + $0x110] sm:$0xff] %v2947
        %2980 = vst [vmem:[%s503 + $0x128] sm:$0xff] %v2948
        %2981 = vst [vmem:[%s503 + $0x130] sm:$0xff] %v2949
        %2982 = vst [vmem:[%s503 + $0x148] sm:$0xff] %v2950
        %2983 = vst [vmem:[%s503 + $0x150] sm:$0xff] %v2951
        %2984 = vst [vmem:[%s503 + $0x168] sm:$0xff] %v2952
        %2985 = vst [vmem:[%s503 + $0x170] sm:$0xff] %v2953
        %2986 = vst [vmem:[%s503 + $0x188] sm:$0xff] %v2954
        %2987 = vst [vmem:[%s503 + $0x190] sm:$0xff] %v2955
        %2988 = vst [vmem:[%s503 + $0x1a8] sm:$0xff] %v2956
        %2989 = vst [vmem:[%s503 + $0x1b0] sm:$0xff] %v2957
        %2990 = vst [vmem:[%s503 + $0x1c8] sm:$0xff] %v2958
        %2991 = vst [vmem:[%s503 + $0x1d0] sm:$0xff] %v2959
        %2992 = vst [vmem:[%s503 + $0x1e8] sm:$0xff] %v2960
        %2993 = vst [vmem:[%s503 + $0x1f0] sm:$0xff] %v2961
        %v2994 = vld [vmem:[%s4] sm:$0x7]
        %v2995 = vld [vmem:[%s4 + $0x4] sm:$0x7]
        %v2996 = vld [vmem:[%s4 + $0x8] sm:$0x7]
        %v2997 = vld [vmem:[#allocation9] sm:$0xf]
        %v2998 = vld [vmem:[#allocation9 + $0x4] sm:$0xf]
        %v2999 = vld [vmem:[#allocation9 + $0x8] sm:$0xf]
        %v3000 = vld [vmem:[#allocation9 + $0xc] sm:$0xf]
        %v3001 = vld [vmem:[#allocation9 + $0x10] sm:$0xf]
        %v3002 = vld [vmem:[#allocation9 + $0x14] sm:$0xf]
        %v3003 = vld [vmem:[#allocation9 + $0x18] sm:$0xf]
        %v3004 = vld [vmem:[#allocation9 + $0x1c] sm:$0xf]
        %v3005 = vld [vmem:[#allocation9 + $0x20] sm:$0xf]
        %v3006 = vld [vmem:[#allocation9 + $0x24] sm:$0xf]
        %v3007 = vld [vmem:[#allocation9 + $0x28] sm:$0xf]
        %v3008 = vld [vmem:[#allocation9 + $0x2c] sm:$0xf]
        %v3009 = vld [vmem:[#allocation9 + $0x30] sm:$0xf]
        %v3010 = vld [vmem:[#allocation9 + $0x34] sm:$0xf]
        %v3011 = vld [vmem:[#allocation9 + $0x38] sm:$0xf]
        %v3012 = vld [vmem:[#allocation9 + $0x3c] sm:$0xf]
        %v3013 = vld [vmem:[%s6] sm:$0x1]
        %v3014 = vld [vmem:[#allocation2 + $0x7] sm:$0xff]
        %v3015 = vld [vmem:[#allocation2 + $0xf] sm:$0xff]
        %v3016 = vld [vmem:[#allocation2 + $0x27] sm:$0xff]
        %v3017 = vld [vmem:[#allocation2 + $0x2f] sm:$0xff]
        %v3018 = vld [vmem:[#allocation2 + $0x47] sm:$0xff]
        %v3019 = vld [vmem:[#allocation2 + $0x4f] sm:$0xff]
        %v3020 = vld [vmem:[#allocation2 + $0x67] sm:$0xff]
        %v3021 = vld [vmem:[#allocation2 + $0x6f] sm:$0xff]
        %v3022 = vld [vmem:[#allocation2 + $0x87] sm:$0xff]
        %v3023 = vld [vmem:[#allocation2 + $0x8f] sm:$0xff]
        %v3024 = vld [vmem:[#allocation2 + $0xa7] sm:$0xff]
        %v3025 = vld [vmem:[#allocation2 + $0xaf] sm:$0xff]
        %v3026 = vld [vmem:[#allocation2 + $0xc7] sm:$0xff]
        %v3027 = vld [vmem:[#allocation2 + $0xcf] sm:$0xff]
        %v3028 = vld [vmem:[#allocation2 + $0xe7] sm:$0xff]
        %v3029 = vld [vmem:[#allocation2 + $0xef] sm:$0xff]
        %v3030 = vld [vmem:[#allocation2 + $0x107] sm:$0xff]
        %v3031 = vld [vmem:[#allocation2 + $0x10f] sm:$0xff]
        %v3032 = vld [vmem:[#allocation2 + $0x127] sm:$0xff]
        %v3033 = vld [vmem:[#allocation2 + $0x12f] sm:$0xff]
        %v3034 = vld [vmem:[#allocation2 + $0x147] sm:$0xff]
        %v3035 = vld [vmem:[#allocation2 + $0x14f] sm:$0xff]
        %v3036 = vld [vmem:[#allocation2 + $0x167] sm:$0xff]
        %v3037 = vld [vmem:[#allocation2 + $0x16f] sm:$0xff]
        %v3038 = vld [vmem:[#allocation2 + $0x187] sm:$0xff]
        %v3039 = vld [vmem:[#allocation2 + $0x18f] sm:$0xff]
        %v3040 = vld [vmem:[#allocation2 + $0x1a7] sm:$0xff]
        %v3041 = vld [vmem:[#allocation2 + $0x1af] sm:$0xff]
        %v3042 = vld [vmem:[#allocation2 + $0x1c7] sm:$0xff]
        %v3043 = vld [vmem:[#allocation2 + $0x1cf] sm:$0xff]
        %v3044 = vld [vmem:[#allocation2 + $0x1e7] sm:$0xff]
        %v3045 = vld [vmem:[#allocation2 + $0x1ef] sm:$0xff]
        %v3046 = vld [vmem:[#allocation2 + $0x207] sm:$0xff]
        %v3047 = vld [vmem:[#allocation2 + $0x20f] sm:$0xff]
        %v3048 = vld [vmem:[#allocation2 + $0x227] sm:$0xff]
        %v3049 = vld [vmem:[#allocation2 + $0x22f] sm:$0xff]
        %v3050 = vld [vmem:[#allocation2 + $0x8] sm:$0xff]
        %v3051 = vld [vmem:[#allocation2 + $0x10] sm:$0xff]
        %v3052 = vld [vmem:[#allocation2 + $0x28] sm:$0xff]
        %v3053 = vld [vmem:[#allocation2 + $0x30] sm:$0xff]
        %v3054 = vld [vmem:[#allocation2 + $0x48] sm:$0xff]
        %v3055 = vld [vmem:[#allocation2 + $0x50] sm:$0xff]
        %v3056 = vld [vmem:[#allocation2 + $0x68] sm:$0xff]
        %v3057 = vld [vmem:[#allocation2 + $0x70] sm:$0xff]
        %v3058 = vld [vmem:[#allocation2 + $0x88] sm:$0xff]
        %v3059 = vld [vmem:[#allocation2 + $0x90] sm:$0xff]
        %v3060 = vld [vmem:[#allocation2 + $0xa8] sm:$0xff]
        %v3061 = vld [vmem:[#allocation2 + $0xb0] sm:$0xff]
        %v3062 = vld [vmem:[#allocation2 + $0xc8] sm:$0xff]
        %v3063 = vld [vmem:[#allocation2 + $0xd0] sm:$0xff]
        %v3064 = vld [vmem:[#allocation2 + $0xe8] sm:$0xff]
        %v3065 = vld [vmem:[#allocation2 + $0xf0] sm:$0xff]
        %v3066 = vld [vmem:[#allocation2 + $0x108] sm:$0xff]
        %v3067 = vld [vmem:[#allocation2 + $0x110] sm:$0xff]
        %v3068 = vld [vmem:[#allocation2 + $0x128] sm:$0xff]
        %v3069 = vld [vmem:[#allocation2 + $0x130] sm:$0xff]
        %v3070 = vld [vmem:[#allocation2 + $0x148] sm:$0xff]
        %v3071 = vld [vmem:[#allocation2 + $0x150] sm:$0xff]
        %v3072 = vld [vmem:[#allocation2 + $0x168] sm:$0xff]
        %v3073 = vld [vmem:[#allocation2 + $0x170] sm:$0xff]
        %v3074 = vld [vmem:[#allocation2 + $0x188] sm:$0xff]
        %v3075 = vld [vmem:[#allocation2 + $0x190] sm:$0xff]
        %v3076 = vld [vmem:[#allocation2 + $0x1a8] sm:$0xff]
        %v3077 = vld [vmem:[#allocation2 + $0x1b0] sm:$0xff]
        %v3078 = vld [vmem:[#allocation2 + $0x1c8] sm:$0xff]
        %v3079 = vld [vmem:[#allocation2 + $0x1d0] sm:$0xff]
        %v3080 = vld [vmem:[#allocation2 + $0x1e8] sm:$0xff]
        %v3081 = vld [vmem:[#allocation2 + $0x1f0] sm:$0xff]
        %v3082 = vld [vmem:[#allocation2 + $0x208] sm:$0xff]
        %v3083 = vld [vmem:[#allocation2 + $0x210] sm:$0xff]
        %v3084 = vld [vmem:[#allocation2 + $0x228] sm:$0xff]
        %v3085 = vld [vmem:[#allocation2 + $0x230] sm:$0xff]
        %v3086 = vld [vmem:[#allocation2 + $0x9] sm:$0xff]
        %v3087 = vld [vmem:[#allocation2 + $0x11] sm:$0xff]
        %v3088 = vld [vmem:[#allocation2 + $0x29] sm:$0xff]
        %v3089 = vld [vmem:[#allocation2 + $0x31] sm:$0xff]
        %v3090 = vld [vmem:[#allocation2 + $0x49] sm:$0xff]
        %v3091 = vld [vmem:[#allocation2 + $0x51] sm:$0xff]
        %v3092 = vld [vmem:[#allocation2 + $0x69] sm:$0xff]
        %v3093 = vld [vmem:[#allocation2 + $0x71] sm:$0xff]
        %v3094 = vld [vmem:[#allocation2 + $0x89] sm:$0xff]
        %v3095 = vld [vmem:[#allocation2 + $0x91] sm:$0xff]
        %v3096 = vld [vmem:[#allocation2 + $0xa9] sm:$0xff]
        %v3097 = vld [vmem:[#allocation2 + $0xb1] sm:$0xff]
        %v3098 = vld [vmem:[#allocation2 + $0xc9] sm:$0xff]
        %v3099 = vld [vmem:[#allocation2 + $0xd1] sm:$0xff]
        %v3100 = vld [vmem:[#allocation2 + $0xe9] sm:$0xff]
        %v3101 = vld [vmem:[#allocation2 + $0xf1] sm:$0xff]
        %v3102 = vld [vmem:[#allocation2 + $0x109] sm:$0xff]
        %v3103 = vld [vmem:[#allocation2 + $0x111] sm:$0xff]
        %v3104 = vld [vmem:[#allocation2 + $0x129] sm:$0xff]
        %v3105 = vld [vmem:[#allocation2 + $0x131] sm:$0xff]
        %v3106 = vld [vmem:[#allocation2 + $0x149] sm:$0xff]
        %v3107 = vld [vmem:[#allocation2 + $0x151] sm:$0xff]
        %v3108 = vld [vmem:[#allocation2 + $0x169] sm:$0xff]
        %v3109 = vld [vmem:[#allocation2 + $0x171] sm:$0xff]
        %v3110 = vld [vmem:[#allocation2 + $0x189] sm:$0xff]
        %v3111 = vld [vmem:[#allocation2 + $0x191] sm:$0xff]
        %v3112 = vld [vmem:[#allocation2 + $0x1a9] sm:$0xff]
        %v3113 = vld [vmem:[#allocation2 + $0x1b1] sm:$0xff]
        %v3114 = vld [vmem:[#allocation2 + $0x1c9] sm:$0xff]
        %v3115 = vld [vmem:[#allocation2 + $0x1d1] sm:$0xff]
        %v3116 = vld [vmem:[#allocation2 + $0x1e9] sm:$0xff]
        %v3117 = vld [vmem:[#allocation2 + $0x1f1] sm:$0xff]
        %v3118 = vld [vmem:[#allocation2 + $0x209] sm:$0xff]
        %v3119 = vld [vmem:[#allocation2 + $0x211] sm:$0xff]
        %v3120 = vld [vmem:[#allocation2 + $0x229] sm:$0xff]
        %v3121 = vld [vmem:[#allocation2 + $0x231] sm:$0xff]
        %v3122 = vlaneseq
        %v3123 = vshrl.u32 %v3122, 7
        %v3124 = vsub.s32 0, %v3123
        %v3125 = vrot.slane %v2994, %v3124
        %v3126 = vmul.f32 %v3014, %v3125
        %v3127 = vmul.f32 %v3015, %v3125
        %v3128 = vmul.f32 %v3016, %v3125
        %v3129 = vmul.f32 %v3017, %v3125
        %v3130 = vmul.f32 %v3018, %v3125
        %v3131 = vmul.f32 %v3019, %v3125
        %v3132 = vmul.f32 %v3020, %v3125
        %v3133 = vmul.f32 %v3021, %v3125
        %v3134 = vmul.f32 %v3022, %v3125
        %v3135 = vmul.f32 %v3023, %v3125
        %v3136 = vmul.f32 %v3024, %v3125
        %v3137 = vmul.f32 %v3025, %v3125
        %v3138 = vmul.f32 %v3026, %v3125
        %v3139 = vmul.f32 %v3027, %v3125
        %v3140 = vmul.f32 %v3028, %v3125
        %v3141 = vmul.f32 %v3029, %v3125
        %v3142 = vmul.f32 %v3030, %v3125
        %v3143 = vmul.f32 %v3031, %v3125
        %v3144 = vmul.f32 %v3032, %v3125
        %v3145 = vmul.f32 %v3033, %v3125
        %v3146 = vmul.f32 %v3034, %v3125
        %v3147 = vmul.f32 %v3035, %v3125
        %v3148 = vmul.f32 %v3036, %v3125
        %v3149 = vmul.f32 %v3037, %v3125
        %v3150 = vmul.f32 %v3038, %v3125
        %v3151 = vmul.f32 %v3039, %v3125
        %v3152 = vmul.f32 %v3040, %v3125
        %v3153 = vmul.f32 %v3041, %v3125
        %v3154 = vmul.f32 %v3042, %v3125
        %v3155 = vmul.f32 %v3043, %v3125
        %v3156 = vmul.f32 %v3044, %v3125
        %v3157 = vmul.f32 %v3045, %v3125
        %v3158 = vadd.f32 %v3126, 0.0
        %v3159 = vadd.f32 %v3127, 0.0
        %v3160 = vadd.f32 %v3128, 0.0
        %v3161 = vadd.f32 %v3129, 0.0
        %v3162 = vadd.f32 %v3130, 0.0
        %v3163 = vadd.f32 %v3131, 0.0
        %v3164 = vadd.f32 %v3132, 0.0
        %v3165 = vadd.f32 %v3133, 0.0
        %v3166 = vadd.f32 %v3134, 0.0
        %v3167 = vadd.f32 %v3135, 0.0
        %v3168 = vadd.f32 %v3136, 0.0
        %v3169 = vadd.f32 %v3137, 0.0
        %v3170 = vadd.f32 %v3138, 0.0
        %v3171 = vadd.f32 %v3139, 0.0
        %v3172 = vadd.f32 %v3140, 0.0
        %v3173 = vadd.f32 %v3141, 0.0
        %v3174 = vadd.f32 %v3142, 0.0
        %v3175 = vadd.f32 %v3143, 0.0
        %v3176 = vadd.f32 %v3144, 0.0
        %v3177 = vadd.f32 %v3145, 0.0
        %v3178 = vadd.f32 %v3146, 0.0
        %v3179 = vadd.f32 %v3147, 0.0
        %v3180 = vadd.f32 %v3148, 0.0
        %v3181 = vadd.f32 %v3149, 0.0
        %v3182 = vadd.f32 %v3150, 0.0
        %v3183 = vadd.f32 %v3151, 0.0
        %v3184 = vadd.f32 %v3152, 0.0
        %v3185 = vadd.f32 %v3153, 0.0
        %v3186 = vadd.f32 %v3154, 0.0
        %v3187 = vadd.f32 %v3155, 0.0
        %v3188 = vadd.f32 %v3156, 0.0
        %v3189 = vadd.f32 %v3157, 0.0
        %v3190 = vlaneseq
        %v3191 = vshrl.u32 %v3190, 7
        %v3192 = vsub.s32 1, %v3191
        %v3193 = vrot.slane %v2994, %v3192
        %v3194 = vmul.f32 %v3050, %v3193
        %v3195 = vmul.f32 %v3051, %v3193
        %v3196 = vmul.f32 %v3052, %v3193
        %v3197 = vmul.f32 %v3053, %v3193
        %v3198 = vmul.f32 %v3054, %v3193
        %v3199 = vmul.f32 %v3055, %v3193
        %v3200 = vmul.f32 %v3056, %v3193
        %v3201 = vmul.f32 %v3057, %v3193
        %v3202 = vmul.f32 %v3058, %v3193
        %v3203 = vmul.f32 %v3059, %v3193
        %v3204 = vmul.f32 %v3060, %v3193
        %v3205 = vmul.f32 %v3061, %v3193
        %v3206 = vmul.f32 %v3062, %v3193
        %v3207 = vmul.f32 %v3063, %v3193
        %v3208 = vmul.f32 %v3064, %v3193
        %v3209 = vmul.f32 %v3065, %v3193
        %v3210 = vmul.f32 %v3066, %v3193
        %v3211 = vmul.f32 %v3067, %v3193
        %v3212 = vmul.f32 %v3068, %v3193
        %v3213 = vmul.f32 %v3069, %v3193
        %v3214 = vmul.f32 %v3070, %v3193
        %v3215 = vmul.f32 %v3071, %v3193
        %v3216 = vmul.f32 %v3072, %v3193
        %v3217 = vmul.f32 %v3073, %v3193
        %v3218 = vmul.f32 %v3074, %v3193
        %v3219 = vmul.f32 %v3075, %v3193
        %v3220 = vmul.f32 %v3076, %v3193
        %v3221 = vmul.f32 %v3077, %v3193
        %v3222 = vmul.f32 %v3078, %v3193
        %v3223 = vmul.f32 %v3079, %v3193
        %v3224 = vmul.f32 %v3080, %v3193
        %v3225 = vmul.f32 %v3081, %v3193
        %v3226 = vadd.f32 %v3158, %v3194
        %v3227 = vadd.f32 %v3159, %v3195
        %v3228 = vadd.f32 %v3160, %v3196
        %v3229 = vadd.f32 %v3161, %v3197
        %v3230 = vadd.f32 %v3162, %v3198
        %v3231 = vadd.f32 %v3163, %v3199
        %v3232 = vadd.f32 %v3164, %v3200
        %v3233 = vadd.f32 %v3165, %v3201
        %v3234 = vadd.f32 %v3166, %v3202
        %v3235 = vadd.f32 %v3167, %v3203
        %v3236 = vadd.f32 %v3168, %v3204
        %v3237 = vadd.f32 %v3169, %v3205
        %v3238 = vadd.f32 %v3170, %v3206
        %v3239 = vadd.f32 %v3171, %v3207
        %v3240 = vadd.f32 %v3172, %v3208
        %v3241 = vadd.f32 %v3173, %v3209
        %v3242 = vadd.f32 %v3174, %v3210
        %v3243 = vadd.f32 %v3175, %v3211
        %v3244 = vadd.f32 %v3176, %v3212
        %v3245 = vadd.f32 %v3177, %v3213
        %v3246 = vadd.f32 %v3178, %v3214
        %v3247 = vadd.f32 %v3179, %v3215
        %v3248 = vadd.f32 %v3180, %v3216
        %v3249 = vadd.f32 %v3181, %v3217
        %v3250 = vadd.f32 %v3182, %v3218
        %v3251 = vadd.f32 %v3183, %v3219
        %v3252 = vadd.f32 %v3184, %v3220
        %v3253 = vadd.f32 %v3185, %v3221
        %v3254 = vadd.f32 %v3186, %v3222
        %v3255 = vadd.f32 %v3187, %v3223
        %v3256 = vadd.f32 %v3188, %v3224
        %v3257 = vadd.f32 %v3189, %v3225
        %v3258 = vlaneseq
        %v3259 = vshrl.u32 %v3258, 7
        %v3260 = vsub.s32 2, %v3259
        %v3261 = vrot.slane %v2994, %v3260
        %v3262 = vmul.f32 %v3086, %v3261
        %v3263 = vmul.f32 %v3087, %v3261
        %v3264 = vmul.f32 %v3088, %v3261
        %v3265 = vmul.f32 %v3089, %v3261
        %v3266 = vmul.f32 %v3090, %v3261
        %v3267 = vmul.f32 %v3091, %v3261
        %v3268 = vmul.f32 %v3092, %v3261
        %v3269 = vmul.f32 %v3093, %v3261
        %v3270 = vmul.f32 %v3094, %v3261
        %v3271 = vmul.f32 %v3095, %v3261
        %v3272 = vmul.f32 %v3096, %v3261
        %v3273 = vmul.f32 %v3097, %v3261
        %v3274 = vmul.f32 %v3098, %v3261
        %v3275 = vmul.f32 %v3099, %v3261
        %v3276 = vmul.f32 %v3100, %v3261
        %v3277 = vmul.f32 %v3101, %v3261
        %v3278 = vmul.f32 %v3102, %v3261
        %v3279 = vmul.f32 %v3103, %v3261
        %v3280 = vmul.f32 %v3104, %v3261
        %v3281 = vmul.f32 %v3105, %v3261
        %v3282 = vmul.f32 %v3106, %v3261
        %v3283 = vmul.f32 %v3107, %v3261
        %v3284 = vmul.f32 %v3108, %v3261
        %v3285 = vmul.f32 %v3109, %v3261
        %v3286 = vmul.f32 %v3110, %v3261
        %v3287 = vmul.f32 %v3111, %v3261
        %v3288 = vmul.f32 %v3112, %v3261
        %v3289 = vmul.f32 %v3113, %v3261
        %v3290 = vmul.f32 %v3114, %v3261
        %v3291 = vmul.f32 %v3115, %v3261
        %v3292 = vmul.f32 %v3116, %v3261
        %v3293 = vmul.f32 %v3117, %v3261
        %v3294 = vadd.f32 %v3226, %v3262
        %v3295 = vadd.f32 %v3227, %v3263
        %v3296 = vadd.f32 %v3228, %v3264
        %v3297 = vadd.f32 %v3229, %v3265
        %v3298 = vadd.f32 %v3230, %v3266
        %v3299 = vadd.f32 %v3231, %v3267
        %v3300 = vadd.f32 %v3232, %v3268
        %v3301 = vadd.f32 %v3233, %v3269
        %v3302 = vadd.f32 %v3234, %v3270
        %v3303 = vadd.f32 %v3235, %v3271
        %v3304 = vadd.f32 %v3236, %v3272
        %v3305 = vadd.f32 %v3237, %v3273
        %v3306 = vadd.f32 %v3238, %v3274
        %v3307 = vadd.f32 %v3239, %v3275
        %v3308 = vadd.f32 %v3240, %v3276
        %v3309 = vadd.f32 %v3241, %v3277
        %v3310 = vadd.f32 %v3242, %v3278
        %v3311 = vadd.f32 %v3243, %v3279
        %v3312 = vadd.f32 %v3244, %v3280
        %v3313 = vadd.f32 %v3245, %v3281
        %v3314 = vadd.f32 %v3246, %v3282
        %v3315 = vadd.f32 %v3247, %v3283
        %v3316 = vadd.f32 %v3248, %v3284
        %v3317 = vadd.f32 %v3249, %v3285
        %v3318 = vadd.f32 %v3250, %v3286
        %v3319 = vadd.f32 %v3251, %v3287
        %v3320 = vadd.f32 %v3252, %v3288
        %v3321 = vadd.f32 %v3253, %v3289
        %v3322 = vadd.f32 %v3254, %v3290
        %v3323 = vadd.f32 %v3255, %v3291
        %v3324 = vadd.f32 %v3256, %v3292
        %v3325 = vadd.f32 %v3257, %v3293
        %v3326 = vlaneseq
        %v3327 = vshrl.u32 %v3326, 7
        %v3328 = vsub.s32 0, %v3327
        %v3329 = vrot.slane %v2995, %v3328
        %v3330 = vmul.f32 %v3016, %v3329
        %v3331 = vmul.f32 %v3017, %v3329
        %v3332 = vmul.f32 %v3018, %v3329
        %v3333 = vmul.f32 %v3019, %v3329
        %v3334 = vmul.f32 %v3020, %v3329
        %v3335 = vmul.f32 %v3021, %v3329
        %v3336 = vmul.f32 %v3022, %v3329
        %v3337 = vmul.f32 %v3023, %v3329
        %v3338 = vmul.f32 %v3024, %v3329
        %v3339 = vmul.f32 %v3025, %v3329
        %v3340 = vmul.f32 %v3026, %v3329
        %v3341 = vmul.f32 %v3027, %v3329
        %v3342 = vmul.f32 %v3028, %v3329
        %v3343 = vmul.f32 %v3029, %v3329
        %v3344 = vmul.f32 %v3030, %v3329
        %v3345 = vmul.f32 %v3031, %v3329
        %v3346 = vmul.f32 %v3032, %v3329
        %v3347 = vmul.f32 %v3033, %v3329
        %v3348 = vmul.f32 %v3034, %v3329
        %v3349 = vmul.f32 %v3035, %v3329
        %v3350 = vmul.f32 %v3036, %v3329
        %v3351 = vmul.f32 %v3037, %v3329
        %v3352 = vmul.f32 %v3038, %v3329
        %v3353 = vmul.f32 %v3039, %v3329
        %v3354 = vmul.f32 %v3040, %v3329
        %v3355 = vmul.f32 %v3041, %v3329
        %v3356 = vmul.f32 %v3042, %v3329
        %v3357 = vmul.f32 %v3043, %v3329
        %v3358 = vmul.f32 %v3044, %v3329
        %v3359 = vmul.f32 %v3045, %v3329
        %v3360 = vmul.f32 %v3046, %v3329
        %v3361 = vmul.f32 %v3047, %v3329
        %v3362 = vadd.f32 %v3294, %v3330
        %v3363 = vadd.f32 %v3295, %v3331
        %v3364 = vadd.f32 %v3296, %v3332
        %v3365 = vadd.f32 %v3297, %v3333
        %v3366 = vadd.f32 %v3298, %v3334
        %v3367 = vadd.f32 %v3299, %v3335
        %v3368 = vadd.f32 %v3300, %v3336
        %v3369 = vadd.f32 %v3301, %v3337
        %v3370 = vadd.f32 %v3302, %v3338
        %v3371 = vadd.f32 %v3303, %v3339
        %v3372 = vadd.f32 %v3304, %v3340
        %v3373 = vadd.f32 %v3305, %v3341
        %v3374 = vadd.f32 %v3306, %v3342
        %v3375 = vadd.f32 %v3307, %v3343
        %v3376 = vadd.f32 %v3308, %v3344
        %v3377 = vadd.f32 %v3309, %v3345
        %v3378 = vadd.f32 %v3310, %v3346
        %v3379 = vadd.f32 %v3311, %v3347
        %v3380 = vadd.f32 %v3312, %v3348
        %v3381 = vadd.f32 %v3313, %v3349
        %v3382 = vadd.f32 %v3314, %v3350
        %v3383 = vadd.f32 %v3315, %v3351
        %v3384 = vadd.f32 %v3316, %v3352
        %v3385 = vadd.f32 %v3317, %v3353
        %v3386 = vadd.f32 %v3318, %v3354
        %v3387 = vadd.f32 %v3319, %v3355
        %v3388 = vadd.f32 %v3320, %v3356
        %v3389 = vadd.f32 %v3321, %v3357
        %v3390 = vadd.f32 %v3322, %v3358
        %v3391 = vadd.f32 %v3323, %v3359
        %v3392 = vadd.f32 %v3324, %v3360
        %v3393 = vadd.f32 %v3325, %v3361
        %v3394 = vlaneseq
        %v3395 = vshrl.u32 %v3394, 7
        %v3396 = vsub.s32 1, %v3395
        %v3397 = vrot.slane %v2995, %v3396
        %v3398 = vmul.f32 %v3052, %v3397
        %v3399 = vmul.f32 %v3053, %v3397
        %v3400 = vmul.f32 %v3054, %v3397
        %v3401 = vmul.f32 %v3055, %v3397
        %v3402 = vmul.f32 %v3056, %v3397
        %v3403 = vmul.f32 %v3057, %v3397
        %v3404 = vmul.f32 %v3058, %v3397
        %v3405 = vmul.f32 %v3059, %v3397
        %v3406 = vmul.f32 %v3060, %v3397
        %v3407 = vmul.f32 %v3061, %v3397
        %v3408 = vmul.f32 %v3062, %v3397
        %v3409 = vmul.f32 %v3063, %v3397
        %v3410 = vmul.f32 %v3064, %v3397
        %v3411 = vmul.f32 %v3065, %v3397
        %v3412 = vmul.f32 %v3066, %v3397
        %v3413 = vmul.f32 %v3067, %v3397
        %v3414 = vmul.f32 %v3068, %v3397
        %v3415 = vmul.f32 %v3069, %v3397
        %v3416 = vmul.f32 %v3070, %v3397
        %v3417 = vmul.f32 %v3071, %v3397
        %v3418 = vmul.f32 %v3072, %v3397
        %v3419 = vmul.f32 %v3073, %v3397
        %v3420 = vmul.f32 %v3074, %v3397
        %v3421 = vmul.f32 %v3075, %v3397
        %v3422 = vmul.f32 %v3076, %v3397
        %v3423 = vmul.f32 %v3077, %v3397
        %v3424 = vmul.f32 %v3078, %v3397
        %v3425 = vmul.f32 %v3079, %v3397
        %v3426 = vmul.f32 %v3080, %v3397
        %v3427 = vmul.f32 %v3081, %v3397
        %v3428 = vmul.f32 %v3082, %v3397
        %v3429 = vmul.f32 %v3083, %v3397
        %v3430 = vadd.f32 %v3362, %v3398
        %v3431 = vadd.f32 %v3363, %v3399
        %v3432 = vadd.f32 %v3364, %v3400
        %v3433 = vadd.f32 %v3365, %v3401
        %v3434 = vadd.f32 %v3366, %v3402
        %v3435 = vadd.f32 %v3367, %v3403
        %v3436 = vadd.f32 %v3368, %v3404
        %v3437 = vadd.f32 %v3369, %v3405
        %v3438 = vadd.f32 %v3370, %v3406
        %v3439 = vadd.f32 %v3371, %v3407
        %v3440 = vadd.f32 %v3372, %v3408
        %v3441 = vadd.f32 %v3373, %v3409
        %v3442 = vadd.f32 %v3374, %v3410
        %v3443 = vadd.f32 %v3375, %v3411
        %v3444 = vadd.f32 %v3376, %v3412
        %v3445 = vadd.f32 %v3377, %v3413
        %v3446 = vadd.f32 %v3378, %v3414
        %v3447 = vadd.f32 %v3379, %v3415
        %v3448 = vadd.f32 %v3380, %v3416
        %v3449 = vadd.f32 %v3381, %v3417
        %v3450 = vadd.f32 %v3382, %v3418
        %v3451 = vadd.f32 %v3383, %v3419
        %v3452 = vadd.f32 %v3384, %v3420
        %v3453 = vadd.f32 %v3385, %v3421
        %v3454 = vadd.f32 %v3386, %v3422
        %v3455 = vadd.f32 %v3387, %v3423
        %v3456 = vadd.f32 %v3388, %v3424
        %v3457 = vadd.f32 %v3389, %v3425
        %v3458 = vadd.f32 %v3390, %v3426
        %v3459 = vadd.f32 %v3391, %v3427
        %v3460 = vadd.f32 %v3392, %v3428
        %v3461 = vadd.f32 %v3393, %v3429
        %v3462 = vlaneseq
        %v3463 = vshrl.u32 %v3462, 7
        %v3464 = vsub.s32 2, %v3463
        %v3465 = vrot.slane %v2995, %v3464
        %v3466 = vmul.f32 %v3088, %v3465
        %v3467 = vmul.f32 %v3089, %v3465
        %v3468 = vmul.f32 %v3090, %v3465
        %v3469 = vmul.f32 %v3091, %v3465
        %v3470 = vmul.f32 %v3092, %v3465
        %v3471 = vmul.f32 %v3093, %v3465
        %v3472 = vmul.f32 %v3094, %v3465
        %v3473 = vmul.f32 %v3095, %v3465
        %v3474 = vmul.f32 %v3096, %v3465
        %v3475 = vmul.f32 %v3097, %v3465
        %v3476 = vmul.f32 %v3098, %v3465
        %v3477 = vmul.f32 %v3099, %v3465
        %v3478 = vmul.f32 %v3100, %v3465
        %v3479 = vmul.f32 %v3101, %v3465
        %v3480 = vmul.f32 %v3102, %v3465
        %v3481 = vmul.f32 %v3103, %v3465
        %v3482 = vmul.f32 %v3104, %v3465
        %v3483 = vmul.f32 %v3105, %v3465
        %v3484 = vmul.f32 %v3106, %v3465
        %v3485 = vmul.f32 %v3107, %v3465
        %v3486 = vmul.f32 %v3108, %v3465
        %v3487 = vmul.f32 %v3109, %v3465
        %v3488 = vmul.f32 %v3110, %v3465
        %v3489 = vmul.f32 %v3111, %v3465
        %v3490 = vmul.f32 %v3112, %v3465
        %v3491 = vmul.f32 %v3113, %v3465
        %v3492 = vmul.f32 %v3114, %v3465
        %v3493 = vmul.f32 %v3115, %v3465
        %v3494 = vmul.f32 %v3116, %v3465
        %v3495 = vmul.f32 %v3117, %v3465
        %v3496 = vmul.f32 %v3118, %v3465
        %v3497 = vmul.f32 %v3119, %v3465
        %v3498 = vadd.f32 %v3430, %v3466
        %v3499 = vadd.f32 %v3431, %v3467
        %v3500 = vadd.f32 %v3432, %v3468
        %v3501 = vadd.f32 %v3433, %v3469
        %v3502 = vadd.f32 %v3434, %v3470
        %v3503 = vadd.f32 %v3435, %v3471
        %v3504 = vadd.f32 %v3436, %v3472
        %v3505 = vadd.f32 %v3437, %v3473
        %v3506 = vadd.f32 %v3438, %v3474
        %v3507 = vadd.f32 %v3439, %v3475
        %v3508 = vadd.f32 %v3440, %v3476
        %v3509 = vadd.f32 %v3441, %v3477
        %v3510 = vadd.f32 %v3442, %v3478
        %v3511 = vadd.f32 %v3443, %v3479
        %v3512 = vadd.f32 %v3444, %v3480
        %v3513 = vadd.f32 %v3445, %v3481
        %v3514 = vadd.f32 %v3446, %v3482
        %v3515 = vadd.f32 %v3447, %v3483
        %v3516 = vadd.f32 %v3448, %v3484
        %v3517 = vadd.f32 %v3449, %v3485
        %v3518 = vadd.f32 %v3450, %v3486
        %v3519 = vadd.f32 %v3451, %v3487
        %v3520 = vadd.f32 %v3452, %v3488
        %v3521 = vadd.f32 %v3453, %v3489
        %v3522 = vadd.f32 %v3454, %v3490
        %v3523 = vadd.f32 %v3455, %v3491
        %v3524 = vadd.f32 %v3456, %v3492
        %v3525 = vadd.f32 %v3457, %v3493
        %v3526 = vadd.f32 %v3458, %v3494
        %v3527 = vadd.f32 %v3459, %v3495
        %v3528 = vadd.f32 %v3460, %v3496
        %v3529 = vadd.f32 %v3461, %v3497
        %v3530 = vlaneseq
        %v3531 = vshrl.u32 %v3530, 7
        %v3532 = vsub.s32 0, %v3531
        %v3533 = vrot.slane %v2996, %v3532
        %v3534 = vmul.f32 %v3018, %v3533
        %v3535 = vmul.f32 %v3019, %v3533
        %v3536 = vmul.f32 %v3020, %v3533
        %v3537 = vmul.f32 %v3021, %v3533
        %v3538 = vmul.f32 %v3022, %v3533
        %v3539 = vmul.f32 %v3023, %v3533
        %v3540 = vmul.f32 %v3024, %v3533
        %v3541 = vmul.f32 %v3025, %v3533
        %v3542 = vmul.f32 %v3026, %v3533
        %v3543 = vmul.f32 %v3027, %v3533
        %v3544 = vmul.f32 %v3028, %v3533
        %v3545 = vmul.f32 %v3029, %v3533
        %v3546 = vmul.f32 %v3030, %v3533
        %v3547 = vmul.f32 %v3031, %v3533
        %v3548 = vmul.f32 %v3032, %v3533
        %v3549 = vmul.f32 %v3033, %v3533
        %v3550 = vmul.f32 %v3034, %v3533
        %v3551 = vmul.f32 %v3035, %v3533
        %v3552 = vmul.f32 %v3036, %v3533
        %v3553 = vmul.f32 %v3037, %v3533
        %v3554 = vmul.f32 %v3038, %v3533
        %v3555 = vmul.f32 %v3039, %v3533
        %v3556 = vmul.f32 %v3040, %v3533
        %v3557 = vmul.f32 %v3041, %v3533
        %v3558 = vmul.f32 %v3042, %v3533
        %v3559 = vmul.f32 %v3043, %v3533
        %v3560 = vmul.f32 %v3044, %v3533
        %v3561 = vmul.f32 %v3045, %v3533
        %v3562 = vmul.f32 %v3046, %v3533
        %v3563 = vmul.f32 %v3047, %v3533
        %v3564 = vmul.f32 %v3048, %v3533
        %v3565 = vmul.f32 %v3049, %v3533
        %v3566 = vadd.f32 %v3498, %v3534
        %v3567 = vadd.f32 %v3499, %v3535
        %v3568 = vadd.f32 %v3500, %v3536
        %v3569 = vadd.f32 %v3501, %v3537
        %v3570 = vadd.f32 %v3502, %v3538
        %v3571 = vadd.f32 %v3503, %v3539
        %v3572 = vadd.f32 %v3504, %v3540
        %v3573 = vadd.f32 %v3505, %v3541
        %v3574 = vadd.f32 %v3506, %v3542
        %v3575 = vadd.f32 %v3507, %v3543
        %v3576 = vadd.f32 %v3508, %v3544
        %v3577 = vadd.f32 %v3509, %v3545
        %v3578 = vadd.f32 %v3510, %v3546
        %v3579 = vadd.f32 %v3511, %v3547
        %v3580 = vadd.f32 %v3512, %v3548
        %v3581 = vadd.f32 %v3513, %v3549
        %v3582 = vadd.f32 %v3514, %v3550
        %v3583 = vadd.f32 %v3515, %v3551
        %v3584 = vadd.f32 %v3516, %v3552
        %v3585 = vadd.f32 %v3517, %v3553
        %v3586 = vadd.f32 %v3518, %v3554
        %v3587 = vadd.f32 %v3519, %v3555
        %v3588 = vadd.f32 %v3520, %v3556
        %v3589 = vadd.f32 %v3521, %v3557
        %v3590 = vadd.f32 %v3522, %v3558
        %v3591 = vadd.f32 %v3523, %v3559
        %v3592 = vadd.f32 %v3524, %v3560
        %v3593 = vadd.f32 %v3525, %v3561
        %v3594 = vadd.f32 %v3526, %v3562
        %v3595 = vadd.f32 %v3527, %v3563
        %v3596 = vadd.f32 %v3528, %v3564
        %v3597 = vadd.f32 %v3529, %v3565
        %v3598 = vlaneseq
        %v3599 = vshrl.u32 %v3598, 7
        %v3600 = vsub.s32 1, %v3599
        %v3601 = vrot.slane %v2996, %v3600
        %v3602 = vmul.f32 %v3054, %v3601
        %v3603 = vmul.f32 %v3055, %v3601
        %v3604 = vmul.f32 %v3056, %v3601
        %v3605 = vmul.f32 %v3057, %v3601
        %v3606 = vmul.f32 %v3058, %v3601
        %v3607 = vmul.f32 %v3059, %v3601
        %v3608 = vmul.f32 %v3060, %v3601
        %v3609 = vmul.f32 %v3061, %v3601
        %v3610 = vmul.f32 %v3062, %v3601
        %v3611 = vmul.f32 %v3063, %v3601
        %v3612 = vmul.f32 %v3064, %v3601
        %v3613 = vmul.f32 %v3065, %v3601
        %v3614 = vmul.f32 %v3066, %v3601
        %v3615 = vmul.f32 %v3067, %v3601
        %v3616 = vmul.f32 %v3068, %v3601
        %v3617 = vmul.f32 %v3069, %v3601
        %v3618 = vmul.f32 %v3070, %v3601
        %v3619 = vmul.f32 %v3071, %v3601
        %v3620 = vmul.f32 %v3072, %v3601
        %v3621 = vmul.f32 %v3073, %v3601
        %v3622 = vmul.f32 %v3074, %v3601
        %v3623 = vmul.f32 %v3075, %v3601
        %v3624 = vmul.f32 %v3076, %v3601
        %v3625 = vmul.f32 %v3077, %v3601
        %v3626 = vmul.f32 %v3078, %v3601
        %v3627 = vmul.f32 %v3079, %v3601
        %v3628 = vmul.f32 %v3080, %v3601
        %v3629 = vmul.f32 %v3081, %v3601
        %v3630 = vmul.f32 %v3082, %v3601
        %v3631 = vmul.f32 %v3083, %v3601
        %v3632 = vmul.f32 %v3084, %v3601
        %v3633 = vmul.f32 %v3085, %v3601
        %v3634 = vadd.f32 %v3566, %v3602
        %v3635 = vadd.f32 %v3567, %v3603
        %v3636 = vadd.f32 %v3568, %v3604
        %v3637 = vadd.f32 %v3569, %v3605
        %v3638 = vadd.f32 %v3570, %v3606
        %v3639 = vadd.f32 %v3571, %v3607
        %v3640 = vadd.f32 %v3572, %v3608
        %v3641 = vadd.f32 %v3573, %v3609
        %v3642 = vadd.f32 %v3574, %v3610
        %v3643 = vadd.f32 %v3575, %v3611
        %v3644 = vadd.f32 %v3576, %v3612
        %v3645 = vadd.f32 %v3577, %v3613
        %v3646 = vadd.f32 %v3578, %v3614
        %v3647 = vadd.f32 %v3579, %v3615
        %v3648 = vadd.f32 %v3580, %v3616
        %v3649 = vadd.f32 %v3581, %v3617
        %v3650 = vadd.f32 %v3582, %v3618
        %v3651 = vadd.f32 %v3583, %v3619
        %v3652 = vadd.f32 %v3584, %v3620
        %v3653 = vadd.f32 %v3585, %v3621
        %v3654 = vadd.f32 %v3586, %v3622
        %v3655 = vadd.f32 %v3587, %v3623
        %v3656 = vadd.f32 %v3588, %v3624
        %v3657 = vadd.f32 %v3589, %v3625
        %v3658 = vadd.f32 %v3590, %v3626
        %v3659 = vadd.f32 %v3591, %v3627
        %v3660 = vadd.f32 %v3592, %v3628
        %v3661 = vadd.f32 %v3593, %v3629
        %v3662 = vadd.f32 %v3594, %v3630
        %v3663 = vadd.f32 %v3595, %v3631
        %v3664 = vadd.f32 %v3596, %v3632
        %v3665 = vadd.f32 %v3597, %v3633
        %v3666 = vlaneseq
        %v3667 = vshrl.u32 %v3666, 7
        %v3668 = vsub.s32 2, %v3667
        %v3669 = vrot.slane %v2996, %v3668
        %v3670 = vmul.f32 %v3090, %v3669
        %v3671 = vmul.f32 %v3091, %v3669
        %v3672 = vmul.f32 %v3092, %v3669
        %v3673 = vmul.f32 %v3093, %v3669
        %v3674 = vmul.f32 %v3094, %v3669
        %v3675 = vmul.f32 %v3095, %v3669
        %v3676 = vmul.f32 %v3096, %v3669
        %v3677 = vmul.f32 %v3097, %v3669
        %v3678 = vmul.f32 %v3098, %v3669
        %v3679 = vmul.f32 %v3099, %v3669
        %v3680 = vmul.f32 %v3100, %v3669
        %v3681 = vmul.f32 %v3101, %v3669
        %v3682 = vmul.f32 %v3102, %v3669
        %v3683 = vmul.f32 %v3103, %v3669
        %v3684 = vmul.f32 %v3104, %v3669
        %v3685 = vmul.f32 %v3105, %v3669
        %v3686 = vmul.f32 %v3106, %v3669
        %v3687 = vmul.f32 %v3107, %v3669
        %v3688 = vmul.f32 %v3108, %v3669
        %v3689 = vmul.f32 %v3109, %v3669
        %v3690 = vmul.f32 %v3110, %v3669
        %v3691 = vmul.f32 %v3111, %v3669
        %v3692 = vmul.f32 %v3112, %v3669
        %v3693 = vmul.f32 %v3113, %v3669
        %v3694 = vmul.f32 %v3114, %v3669
        %v3695 = vmul.f32 %v3115, %v3669
        %v3696 = vmul.f32 %v3116, %v3669
        %v3697 = vmul.f32 %v3117, %v3669
        %v3698 = vmul.f32 %v3118, %v3669
        %v3699 = vmul.f32 %v3119, %v3669
        %v3700 = vmul.f32 %v3120, %v3669
        %v3701 = vmul.f32 %v3121, %v3669
        %v3702 = vadd.f32 %v3634, %v3670
        %v3703 = vadd.f32 %v3635, %v3671
        %v3704 = vadd.f32 %v3636, %v3672
        %v3705 = vadd.f32 %v3637, %v3673
        %v3706 = vadd.f32 %v3638, %v3674
        %v3707 = vadd.f32 %v3639, %v3675
        %v3708 = vadd.f32 %v3640, %v3676
        %v3709 = vadd.f32 %v3641, %v3677
        %v3710 = vadd.f32 %v3642, %v3678
        %v3711 = vadd.f32 %v3643, %v3679
        %v3712 = vadd.f32 %v3644, %v3680
        %v3713 = vadd.f32 %v3645, %v3681
        %v3714 = vadd.f32 %v3646, %v3682
        %v3715 = vadd.f32 %v3647, %v3683
        %v3716 = vadd.f32 %v3648, %v3684
        %v3717 = vadd.f32 %v3649, %v3685
        %v3718 = vadd.f32 %v3650, %v3686
        %v3719 = vadd.f32 %v3651, %v3687
        %v3720 = vadd.f32 %v3652, %v3688
        %v3721 = vadd.f32 %v3653, %v3689
        %v3722 = vadd.f32 %v3654, %v3690
        %v3723 = vadd.f32 %v3655, %v3691
        %v3724 = vadd.f32 %v3656, %v3692
        %v3725 = vadd.f32 %v3657, %v3693
        %v3726 = vadd.f32 %v3658, %v3694
        %v3727 = vadd.f32 %v3659, %v3695
        %v3728 = vadd.f32 %v3660, %v3696
        %v3729 = vadd.f32 %v3661, %v3697
        %v3730 = vadd.f32 %v3662, %v3698
        %v3731 = vadd.f32 %v3663, %v3699
        %v3732 = vadd.f32 %v3664, %v3700
        %v3733 = vadd.f32 %v3665, %v3701
        %v3734 = vpack.c.bf16 %v3703, %v3702
        %v3735 = vpack.c.bf16 %v3705, %v3704
        %v3736 = vpack.c.bf16 %v3707, %v3706
        %v3737 = vpack.c.bf16 %v3709, %v3708
        %v3738 = vpack.c.bf16 %v3711, %v3710
        %v3739 = vpack.c.bf16 %v3713, %v3712
        %v3740 = vpack.c.bf16 %v3715, %v3714
        %v3741 = vpack.c.bf16 %v3717, %v3716
        %v3742 = vpack.c.bf16 %v3719, %v3718
        %v3743 = vpack.c.bf16 %v3721, %v3720
        %v3744 = vpack.c.bf16 %v3723, %v3722
        %v3745 = vpack.c.bf16 %v3725, %v3724
        %v3746 = vpack.c.bf16 %v3727, %v3726
        %v3747 = vpack.c.bf16 %v3729, %v3728
        %v3748 = vpack.c.bf16 %v3731, %v3730
        %v3749 = vpack.c.bf16 %v3733, %v3732
        %v3751 = vlaneseq
        %v3752 = vshrl.u32 %v3751, 7
        %v3753 = vsub.s32 0, %v3752
        %v3754 = vrot.slane %v3013, %v3753
        %v3772 = vunpack.c.l.b16 %v2997
        %v3773 = vunpack.c.l.b16 %v2998
        %v3774 = vunpack.c.l.b16 %v2999
        %v3775 = vunpack.c.l.b16 %v3000
        %v3776 = vunpack.c.l.b16 %v3001
        %v3777 = vunpack.c.l.b16 %v3002
        %v3778 = vunpack.c.l.b16 %v3003
        %v3779 = vunpack.c.l.b16 %v3004
        %v3780 = vunpack.c.l.b16 %v3005
        %v3781 = vunpack.c.l.b16 %v3006
        %v3782 = vunpack.c.l.b16 %v3007
        %v3783 = vunpack.c.l.b16 %v3008
        %v3784 = vunpack.c.l.b16 %v3009
        %v3785 = vunpack.c.l.b16 %v3010
        %v3786 = vunpack.c.l.b16 %v3011
        %v3787 = vunpack.c.l.b16 %v3012
        %v3788 = vpack.c.b16 %v3773, %v3772
        %v3789 = vpack.c.b16 %v3775, %v3774
        %v3790 = vpack.c.b16 %v3777, %v3776
        %v3791 = vpack.c.b16 %v3779, %v3778
        %v3792 = vpack.c.b16 %v3781, %v3780
        %v3793 = vpack.c.b16 %v3783, %v3782
        %v3794 = vpack.c.b16 %v3785, %v3784
        %v3795 = vpack.c.b16 %v3787, %v3786
        %3804 = vmatprep.subr.bf16.mxu0 0
        %3805 = vmatpush1.bf16.msra.mxu0 %v3788
        %3806 = vmatprep.subr.bf16.mxu0 0
        %3807 = vmatpush1.bf16.msra.mxu0 %v3789
        %3808 = vmatprep.subr.bf16.mxu0 0
        %3809 = vmatpush1.bf16.msra.mxu0 %v3790
        %3810 = vmatprep.subr.bf16.mxu0 0
        %3811 = vmatpush1.bf16.msra.mxu0 %v3791
        %3812 = vmatprep.subr.bf16.mxu0 0
        %3813 = vmatpush1.bf16.msra.mxu0 %v3792
        %3814 = vmatprep.subr.bf16.mxu0 0
        %3815 = vmatpush1.bf16.msra.mxu0 %v3793
        %3816 = vmatprep.subr.bf16.mxu0 0
        %3817 = vmatpush1.bf16.msra.mxu0 %v3794
        %3818 = vmatprep.subr.bf16.mxu0 0
        %3819 = vmatpush1.bf16.msra.mxu0 %v3795
        %3820 = vmatprep.subr.bf16.mxu0 0
        %3821 = vmatpush1.bf16.msra.mxu0 0
        %3822 = vmatprep.subr.bf16.mxu0 0
        %3823 = vmatpush1.bf16.msra.mxu0 0
        %3824 = vmatprep.subr.bf16.mxu0 0
        %3825 = vmatpush1.bf16.msra.mxu0 0
        %3826 = vmatprep.subr.bf16.mxu0 0
        %3827 = vmatpush1.bf16.msra.mxu0 0
        %3828 = vmatprep.subr.bf16.mxu0 0
        %3829 = vmatpush1.bf16.msra.mxu0 0
        %3830 = vmatprep.subr.bf16.mxu0 0
        %3831 = vmatpush1.bf16.msra.mxu0 0
        %3832 = vmatprep.subr.bf16.mxu0 0
        %3833 = vmatpush1.bf16.msra.mxu0 0
        %3834 = vmatprep.subr.bf16.mxu0 0
        %3835 = vmatpush1.bf16.msra.mxu0 0
        %3836 = vmatprep.mubr.bf16.mxu0 0
        %3837 = vmatmul.mubr.bf16.gmra.mrb[0].mxu0 %v3734
        %v3838 = vpop.f32.mrb[0].mxu0
        %v3839 = vadd.f32 %v3754, %v3838
        %v3840 = vpop.f32.mrb[0].mxu0
        %v3841 = vpop.f32.mrb[0].mxu0
        %v3842 = vadd.f32 %v3754, %v3841
        %v3843 = vpop.f32.mrb[0].mxu0
        %3844 = vmatprep.mubr.bf16.mxu0 0
        %3845 = vmatmul.mubr.bf16.gmra.mrb[0].mxu0 %v3735
        %v3846 = vpop.f32.mrb[0].mxu0
        %v3847 = vadd.f32 %v3754, %v3846
        %v3848 = vpop.f32.mrb[0].mxu0
        %v3849 = vpop.f32.mrb[0].mxu0
        %v3850 = vadd.f32 %v3754, %v3849
        %v3851 = vpop.f32.mrb[0].mxu0
        %3852 = vmatprep.mubr.bf16.mxu0 0
        %3853 = vmatmul.mubr.bf16.gmra.mrb[0].mxu0 %v3736
        %v3854 = vpop.f32.mrb[0].mxu0
        %v3855 = vadd.f32 %v3754, %v3854
        %v3856 = vpop.f32.mrb[0].mxu0
        %v3857 = vpop.f32.mrb[0].mxu0
        %v3858 = vadd.f32 %v3754, %v3857
        %v3859 = vpop.f32.mrb[0].mxu0
        %3860 = vmatprep.mubr.bf16.mxu0 0
        %3861 = vmatmul.mubr.bf16.gmra.mrb[0].mxu0 %v3737
        %v3862 = vpop.f32.mrb[0].mxu0
        %v3863 = vadd.f32 %v3754, %v3862
        %v3864 = vpop.f32.mrb[0].mxu0
        %v3865 = vpop.f32.mrb[0].mxu0
        %v3866 = vadd.f32 %v3754, %v3865
        %v3867 = vpop.f32.mrb[0].mxu0
        %3868 = vmatprep.mubr.bf16.mxu0 0
        %3869 = vmatmul.mubr.bf16.gmra.mrb[0].mxu0 %v3738
        %v3870 = vpop.f32.mrb[0].mxu0
        %v3871 = vadd.f32 %v3754, %v3870
        %v3872 = vpop.f32.mrb[0].mxu0
        %v3873 = vpop.f32.mrb[0].mxu0
        %v3874 = vadd.f32 %v3754, %v3873
        %v3875 = vpop.f32.mrb[0].mxu0
        %3876 = vmatprep.mubr.bf16.mxu0 0
        %3877 = vmatmul.mubr.bf16.gmra.mrb[0].mxu0 %v3739
        %v3878 = vpop.f32.mrb[0].mxu0
        %v3879 = vadd.f32 %v3754, %v3878
        %v3880 = vpop.f32.mrb[0].mxu0
        %v3881 = vpop.f32.mrb[0].mxu0
        %v3882 = vadd.f32 %v3754, %v3881
        %v3883 = vpop.f32.mrb[0].mxu0
        %3884 = vmatprep.mubr.bf16.mxu0 0
        %3885 = vmatmul.mubr.bf16.gmra.mrb[0].mxu0 %v3740
        %v3886 = vpop.f32.mrb[0].mxu0
        %v3887 = vadd.f32 %v3754, %v3886
        %v3888 = vpop.f32.mrb[0].mxu0
        %v3889 = vpop.f32.mrb[0].mxu0
        %v3890 = vadd.f32 %v3754, %v3889
        %v3891 = vpop.f32.mrb[0].mxu0
        %3892 = vmatprep.mubr.bf16.mxu0 0
        %3893 = vmatmul.mubr.bf16.gmra.mrb[0].mxu0 %v3741
        %v3894 = vpop.f32.mrb[0].mxu0
        %v3895 = vadd.f32 %v3754, %v3894
        %v3896 = vpop.f32.mrb[0].mxu0
        %v3897 = vpop.f32.mrb[0].mxu0
        %v3898 = vadd.f32 %v3754, %v3897
        %v3899 = vpop.f32.mrb[0].mxu0
        %3900 = vmatprep.mubr.bf16.mxu0 0
        %3901 = vmatmul.mubr.bf16.gmra.mrb[0].mxu0 %v3742
        %v3902 = vpop.f32.mrb[0].mxu0
        %v3903 = vadd.f32 %v3754, %v3902
        %v3904 = vpop.f32.mrb[0].mxu0
        %v3905 = vpop.f32.mrb[0].mxu0
        %v3906 = vadd.f32 %v3754, %v3905
        %v3907 = vpop.f32.mrb[0].mxu0
        %3908 = vmatprep.mubr.bf16.mxu0 0
        %3909 = vmatmul.mubr.bf16.gmra.mrb[0].mxu0 %v3743
        %v3910 = vpop.f32.mrb[0].mxu0
        %v3911 = vadd.f32 %v3754, %v3910
        %v3912 = vpop.f32.mrb[0].mxu0
        %v3913 = vpop.f32.mrb[0].mxu0
        %v3914 = vadd.f32 %v3754, %v3913
        %v3915 = vpop.f32.mrb[0].mxu0
        %3916 = vmatprep.mubr.bf16.mxu0 0
        %3917 = vmatmul.mubr.bf16.gmra.mrb[0].mxu0 %v3744
        %v3918 = vpop.f32.mrb[0].mxu0
        %v3919 = vadd.f32 %v3754, %v3918
        %v3920 = vpop.f32.mrb[0].mxu0
        %v3921 = vpop.f32.mrb[0].mxu0
        %v3922 = vadd.f32 %v3754, %v3921
        %v3923 = vpop.f32.mrb[0].mxu0
        %3924 = vmatprep.mubr.bf16.mxu0 0
        %3925 = vmatmul.mubr.bf16.gmra.mrb[0].mxu0 %v3745
        %v3926 = vpop.f32.mrb[0].mxu0
        %v3927 = vadd.f32 %v3754, %v3926
        %v3928 = vpop.f32.mrb[0].mxu0
        %v3929 = vpop.f32.mrb[0].mxu0
        %v3930 = vadd.f32 %v3754, %v3929
        %v3931 = vpop.f32.mrb[0].mxu0
        %3932 = vmatprep.mubr.bf16.mxu0 0
        %3933 = vmatmul.mubr.bf16.gmra.mrb[0].mxu0 %v3746
        %v3934 = vpop.f32.mrb[0].mxu0
        %v3935 = vadd.f32 %v3754, %v3934
        %v3936 = vpop.f32.mrb[0].mxu0
        %v3937 = vpop.f32.mrb[0].mxu0
        %v3938 = vadd.f32 %v3754, %v3937
        %v3939 = vpop.f32.mrb[0].mxu0
        %3940 = vmatprep.mubr.bf16.mxu0 0
        %3941 = vmatmul.mubr.bf16.gmra.mrb[0].mxu0 %v3747
        %v3942 = vpop.f32.mrb[0].mxu0
        %v3943 = vadd.f32 %v3754, %v3942
        %v3944 = vpop.f32.mrb[0].mxu0
        %v3945 = vpop.f32.mrb[0].mxu0
        %v3946 = vadd.f32 %v3754, %v3945
        %v3947 = vpop.f32.mrb[0].mxu0
        %3948 = vmatprep.mubr.bf16.mxu0 0
        %3949 = vmatmul.mubr.bf16.gmra.mrb[0].mxu0 %v3748
        %v3950 = vpop.f32.mrb[0].mxu0
        %v3951 = vadd.f32 %v3754, %v3950
        %v3952 = vpop.f32.mrb[0].mxu0
        %v3953 = vpop.f32.mrb[0].mxu0
        %v3954 = vadd.f32 %v3754, %v3953
        %v3955 = vpop.f32.mrb[0].mxu0
        %3956 = vmatprep.mubr.bf16.mxu0 0
        %3957 = vmatmul.mubr.bf16.gmra.mrb[0].mxu0 %v3749
        %v3958 = vpop.f32.mrb[0].mxu0
        %v3959 = vadd.f32 %v3754, %v3958
        %v3960 = vpop.f32.mrb[0].mxu0
        %v3961 = vpop.f32.mrb[0].mxu0
        %v3962 = vadd.f32 %v3754, %v3961
        %v3963 = vpop.f32.mrb[0].mxu0
        %3964 = vdwg.mxu0
        %3965 = vst [vmem:[%s325] sm:$0xff] %v3839
        %3966 = vst [vmem:[%s325 + $0x8] sm:$0xff] %v3842
        %3967 = vst [vmem:[%s325 + $0x10] sm:$0xff] %v3847
        %3968 = vst [vmem:[%s325 + $0x18] sm:$0xff] %v3850
        %3969 = vst [vmem:[%s325 + $0x20] sm:$0xff] %v3855
        %3970 = vst [vmem:[%s325 + $0x28] sm:$0xff] %v3858
        %3971 = vst [vmem:[%s325 + $0x30] sm:$0xff] %v3863
        %3972 = vst [vmem:[%s325 + $0x38] sm:$0xff] %v3866
        %3973 = vst [vmem:[%s325 + $0x40] sm:$0xff] %v3871
        %3974 = vst [vmem:[%s325 + $0x48] sm:$0xff] %v3874
        %3975 = vst [vmem:[%s325 + $0x50] sm:$0xff] %v3879
        %3976 = vst [vmem:[%s325 + $0x58] sm:$0xff] %v3882
        %3977 = vst [vmem:[%s325 + $0x60] sm:$0xff] %v3887
        %3978 = vst [vmem:[%s325 + $0x68] sm:$0xff] %v3890
        %3979 = vst [vmem:[%s325 + $0x70] sm:$0xff] %v3895
        %3980 = vst [vmem:[%s325 + $0x78] sm:$0xff] %v3898
        %3981 = vst [vmem:[%s325 + $0x80] sm:$0xff] %v3903
        %3982 = vst [vmem:[%s325 + $0x88] sm:$0xff] %v3906
        %3983 = vst [vmem:[%s325 + $0x90] sm:$0xff] %v3911
        %3984 = vst [vmem:[%s325 + $0x98] sm:$0xff] %v3914
        %3985 = vst [vmem:[%s325 + $0xa0] sm:$0xff] %v3919
        %3986 = vst [vmem:[%s325 + $0xa8] sm:$0xff] %v3922
        %3987 = vst [vmem:[%s325 + $0xb0] sm:$0xff] %v3927
        %3988 = vst [vmem:[%s325 + $0xb8] sm:$0xff] %v3930
        %3989 = vst [vmem:[%s325 + $0xc0] sm:$0xff] %v3935
        %3990 = vst [vmem:[%s325 + $0xc8] sm:$0xff] %v3938
        %3991 = vst [vmem:[%s325 + $0xd0] sm:$0xff] %v3943
        %3992 = vst [vmem:[%s325 + $0xd8] sm:$0xff] %v3946
        %3993 = vst [vmem:[%s325 + $0xe0] sm:$0xff] %v3951
        %3994 = vst [vmem:[%s325 + $0xe8] sm:$0xff] %v3954
        %3995 = vst [vmem:[%s325 + $0xf0] sm:$0xff] %v3959
        %3996 = vst [vmem:[%s325 + $0xf8] sm:$0xff] %v3962
        %s3997 = sand.u32 %s185, 1
        %s3998 = scalar_lea.sflag [#allocation6], %s3997
        %s3999 = sand.u32 %s185, 1
        %s4000 = smul.addr %s3999, 256
        %s4001 = scalar_lea.vmem [#allocation10], %s4000
        // Predicated region
        $region61: #{tpu_custom_call.1} parent=47 // pred_check
          %p4002 = pneg %p195
        $region62: #{tpu_custom_call.1} parent=47 // pred_check_branch
          %4004 = sbr.rel (%p4002) target = $region64
        $region63: #{tpu_custom_call.1} parent=47 // pred_region
          %s4006 = ssub.s32 4096, 4096
          %4007 = vsyncadd %s3998, %s4006
          %s4008 = smul.addr %s25, 32
          %s4009 = smul.addr %s4008, 128
          %s4010 = scalar_lea.hbm %s7, %s4009
          %s4011 = sshll.u32 %s4001, 4
          %s4012 = int_to_ptr.vmem [resolvable:$true] %s4011
          %4017 = dma.vmem_to_hbm [thread:$0]  %s4012, 4096, %s4010, %s3998, 128, 128, 8
        $region64: #{tpu_custom_call.1} parent=47 // pred_fallthru
          _
      $region48: #{tpu_custom_call.1} parent=5 // pred_fallthru
        _
      %p4018 = scmp.le.s32.totalorder 2, %s20
      // Predicated region
      $region65: #{tpu_custom_call.1} parent=5 // pred_check
        %p4019 = pneg %p4018
      $region66: #{tpu_custom_call.1} parent=5 // pred_check_branch
        %4021 = sbr.rel (%p4019) target = $region68
      $region67: #{tpu_custom_call.1} parent=5 // pred_region
        %s4022 = ssub.s32 %s20, 2
        // Predicated region
        $region69: #{tpu_custom_call.1} parent=67 // pred_check
          %p4023 = pneg %p201
        $region70: #{tpu_custom_call.1} parent=67 // pred_check_branch
          %4025 = sbr.rel (%p4023) target = $region72
        $region71: #{tpu_custom_call.1} parent=67 // pred_region
          %s4026 = sand.u32 %s186, 1
          %s4027 = scalar_lea.sflag [#allocation6], %s4026
          %s4028 = sand.u32 %s186, 1
          %s4029 = smul.addr %s4028, 256
          %s4030 = scalar_lea.vmem [#allocation10], %s4029
          %4031 = dma.done %s4027, 4096
        $region72: #{tpu_custom_call.1} parent=67 // pred_fallthru
          _
      $region68: #{tpu_custom_call.1} parent=5 // pred_fallthru
        _
    $region6: #{tpu_custom_call.1} parent=1 // loop_footer
      %s24 = sadd.s32 1, %s20
    $region7: #{tpu_custom_call.1} parent=1 // loop_footer_branch
      %19 = sbr.rel target = $region3
    $region8: #{tpu_custom_call.1} parent=1 // loop_exit
      _
    %4032 = vsyncpa [#allocation5], 1
    %s4033 = scalar_lea.sflag [#allocation5], 1
    %4034 = vsyncpa %s4033, 1
    %4035 = vsyncpa [#allocation8], 1
    %4036 = vsyncpa [#allocation6], 1
    %s4037 = scalar_lea.sflag [#allocation6], 1
    %4038 = vsyncpa %s4037, 1

</llo_original>
